<compile_context>
chip_gen: v5e
topology: v5e:2x2
jax: 0.10.0
libtpu: 0.0.40
codegen_flags: <defaults>
</compile_context>

<pallas_src>
import functools
import math

import numpy as np
import jax
import jax.numpy as jnp
from jax import lax
from jax.experimental import pallas as pl
from jax.experimental.pallas import tpu as pltpu


def _layernorm(v, gamma, beta, eps=1e-6):
    """transocr LayerNorm: a2 * (x - mean) / (std_unbiased + eps) + b2."""
    mu = jnp.mean(v, axis=-1, keepdims=True)
    c = v - mu
    var = jnp.sum(c * c, axis=-1, keepdims=True) / (v.shape[-1] - 1)  # torch.std -> unbiased
    return gamma * c * (1.0 / (jnp.sqrt(var) + eps)) + beta


# --------------------------------------------------------------------------------------
# Kernel
# --------------------------------------------------------------------------------------
def decoder_kernel(num_heads,
                   text_ref, cf_ref,
                   wqkv1_ref, bqkv1_ref, wo1_ref, bo1_ref, g1_ref, b1_ref,
                   wq2_ref, bq2_ref, wkv2_ref, bkv2_ref, wo2_ref, bo2_ref, g2_ref, b2_ref,
                   wf1_ref, bf1_ref, wf2_ref, bf2_ref, g3_ref, b3_ref,
                   out_ref, amap_ref):
    f32, bf16 = jnp.float32, jnp.bfloat16
    B, T, D = text_ref.shape
    _, N, _ = cf_ref.shape
    H = num_heads
    dk = D // H

    def softmax_rows(s):
        m = jnp.max(s, axis=-1, keepdims=True)
        e = jnp.exp(s - m)
        return e * pl.reciprocal(jnp.sum(e, axis=-1, keepdims=True), approx=True)

    x = text_ref[...].astype(f32).reshape(B * T, D)                    # (B*T, D) row slab

    # ---------------- masked multi-head self attention ----------------
    # Fused QKV projection; 1/sqrt(dk) already folded into the Q columns in the wrapper.
    qkv = jnp.dot(x.astype(bf16), wqkv1_ref[...],
                  preferred_element_type=f32) + bqkv1_ref[...]          # (B*T, 3D)

    # Additive causal bias hoisted out of the head loop (subsequent_mask semantics).
    row = lax.broadcasted_iota(jnp.int32, (T, T), 0)
    col = lax.broadcasted_iota(jnp.int32, (T, T), 1)
    causal = jnp.where(col <= row, 0.0, -1e30).astype(f32)              # (T, T)

    # Per-head attention; the output projection is folded into the head loop
    # (Wo1 is pre-reshaped to (H, dk, D)), so no (B*T, D) ctx buffer is materialized
    # and every intermediate keeps a lane-dense (…, D) last dim at store time.
    attn1 = jnp.zeros((B * T, D), f32)
    for h in range(H):          # static unroll; each einsum batches over B on the MXU
        lo = h * dk
        qh = qkv[:, lo:lo + dk].reshape(B, T, dk).astype(bf16)
        kh = qkv[:, D + lo:D + lo + dk].reshape(B, T, dk).astype(bf16)
        vh = qkv[:, 2 * D + lo:2 * D + lo + dk].reshape(B, T, dk).astype(bf16)
        s = jnp.einsum('bqd,bkd->bqk', qh, kh, preferred_element_type=f32)   # (B, T, T)
        p = softmax_rows(s + causal[None, :, :])
        ctx_h = jnp.einsum('bqk,bkd->bqd', p.astype(bf16), vh,
                           preferred_element_type=f32).reshape(B * T, dk)    # (B*T, dk)
        attn1 = attn1 + jnp.dot(ctx_h.astype(bf16), wo1_ref[h],
                                preferred_element_type=f32)                  # (B*T, D)
    attn1 = attn1 + bo1_ref[...]
    r1 = _layernorm(x + attn1, g1_ref[...], b1_ref[...])

    # ---------------- cross attention: q from text path, k/v from conv feature --------
    cf = cf_ref[...].astype(bf16).reshape(B * N, D)
    q2 = jnp.dot(r1.astype(bf16), wq2_ref[...],
                 preferred_element_type=f32) + bq2_ref[...]              # (B*T, D)
    kv2 = jnp.dot(cf, wkv2_ref[...],
                  preferred_element_type=f32) + bkv2_ref[...]            # (B*N, 2D)

    align = jnp.zeros((B * T, D), f32)
    for h in range(H):
        lo = h * dk
        qh = q2[:, lo:lo + dk].reshape(B, T, dk).astype(bf16)
        kh = kv2[:, lo:lo + dk].reshape(B, N, dk).astype(bf16)
        vh = kv2[:, D + lo:D + lo + dk].reshape(B, N, dk).astype(bf16)
        s = jnp.einsum('bqd,bkd->bqk', qh, kh, preferred_element_type=f32)    # (B, T, N)
        p = softmax_rows(s)
        amap_ref[h] = p.astype(amap_ref.dtype)              # attention_map (head-major)
        ctx_h = jnp.einsum('bqk,bkd->bqd', p.astype(bf16), vh,
                           preferred_element_type=f32).reshape(B * T, dk)
        align = align + jnp.dot(ctx_h.astype(bf16), wo2_ref[h],
                                preferred_element_type=f32)
    align = align + bo2_ref[...]
    r2 = _layernorm(r1 + align, g2_ref[...], b2_ref[...])

    # ---------------- position-wise feed forward ----------------
    ff = jnp.maximum(jnp.dot(r2.astype(bf16), wf1_ref[...],
                             preferred_element_type=f32) + bf1_ref[...], 0.0)
    ff = jnp.dot(ff.astype(bf16), wf2_ref[...],
                 preferred_element_type=f32) + bf2_ref[...]
    r3 = _layernorm(r2 + ff, g3_ref[...], b3_ref[...])

    out_ref[...] = r3.reshape(B, T, D).astype(out_ref.dtype)


# --------------------------------------------------------------------------------------
# Wrapper
# --------------------------------------------------------------------------------------
def prepare_params(p, num_heads):
    """Fuse QKV / KV weights, fold 1/sqrt(dk) into Q, split Wo per head, pre-cast to bf16."""
    D = p["wq1"].shape[0]
    dk = D // num_heads
    scale = 1.0 / math.sqrt(dk)
    bf16, f32 = jnp.bfloat16, jnp.float32
    return dict(
        wqkv1=jnp.concatenate([p["wq1"] * scale, p["wk1"], p["wv1"]], axis=1).astype(bf16),
        bqkv1=jnp.concatenate([p["bq1"] * scale, p["bk1"], p["bv1"]], axis=1).astype(f32),
        wo1=p["wo1"].reshape(num_heads, dk, D).astype(bf16), bo1=p["bo1"].astype(f32),
        g1=p["g1"].astype(f32), b1=p["b1"].astype(f32),
        wq2=(p["wq2"] * scale).astype(bf16), bq2=(p["bq2"] * scale).astype(f32),
        wkv2=jnp.concatenate([p["wk2"], p["wv2"]], axis=1).astype(bf16),
        bkv2=jnp.concatenate([p["bk2"], p["bv2"]], axis=1).astype(f32),
        wo2=p["wo2"].reshape(num_heads, dk, D).astype(bf16), bo2=p["bo2"].astype(f32),
        g2=p["g2"].astype(f32), b2=p["b2"].astype(f32),
        wf1=p["wf1"].astype(bf16), bf1=p["bf1"].astype(f32),
        wf2=p["wf2"].astype(bf16), bf2=p["bf2"].astype(f32),
        g3=p["g3"].astype(f32), b3=p["b3"].astype(f32),
    )


def decoder_forward(text, conv_feature, params, num_heads):
    B, T, D = text.shape
    _, C, fh, fw = conv_feature.shape
    assert C == D and D % num_heads == 0
    N = fh * fw

    # conv_feature.view(b, c, h*w).permute(0, 2, 1)  -> (B, N, D)   (layout plumbing)
    cf = jnp.transpose(conv_feature.reshape(B, C, N), (0, 2, 1))

    prep = prepare_params(params, num_heads)
    ordered = (prep["wqkv1"], prep["bqkv1"], prep["wo1"], prep["bo1"], prep["g1"], prep["b1"],
               prep["wq2"], prep["bq2"], prep["wkv2"], prep["bkv2"], prep["wo2"], prep["bo2"],
               prep["g2"], prep["b2"],
               prep["wf1"], prep["bf1"], prep["wf2"], prep["bf2"], prep["g3"], prep["b3"])

    def full_spec(a):
        nd = a.ndim
        return pl.BlockSpec(a.shape, lambda i, _nd=nd: (0,) * _nd)

    in_specs = [full_spec(text), full_spec(cf)] + [full_spec(a) for a in ordered]
    out_specs = (pl.BlockSpec((B, T, D), lambda i: (0, 0, 0)),
                 pl.BlockSpec((num_heads, B, T, N), lambda i: (0, 0, 0, 0)))
    out_shape = (jax.ShapeDtypeStruct((B, T, D), jnp.float32),
                 jax.ShapeDtypeStruct((num_heads, B, T, N), jnp.float32))

    kernel = functools.partial(decoder_kernel, num_heads)

    result, amap = pl.pallas_call(
        kernel,
        out_shape=out_shape,
        grid_spec=pltpu.PrefetchScalarGridSpec(
            num_scalar_prefetch=0,
            grid=(1,),                                   # everything resident, one step
            in_specs=in_specs,
            out_specs=out_specs,
            scratch_shapes=[]),
        compiler_params=pltpu.CompilerParams(
            dimension_semantics=("arbitrary",),
            vmem_limit_bytes=32 * 1024 * 1024),          # explicit VMEM budget (v7x-safe)
    )(text, cf, *ordered)

    attention_map = jnp.transpose(amap, (1, 0, 2, 3))    # -> (B, H, T, N), PyTorch layout
    return result, attention_map


# --------------------------------------------------------------------------------------
# Pure-JAX reference (PyTorch-faithful structure; same bf16 matmul-operand policy)
# --------------------------------------------------------------------------------------
def reference(text, conv_feature, p, H):
    bf16, f32 = jnp.bfloat16, jnp.float32
    B, T, D = text.shape
    _, C, fh, fw = conv_feature.shape
    N = fh * fw
    dk = D // H

    def lin(x, w, b):
        return jnp.dot(x.astype(bf16), w.astype(bf16), preferred_element_type=f32) + b

    def mha(q_in, kv_in, wq, bq, wk, bk, wv, bv, wo, bo, mask_bias):
        Lq, Lk = q_in.shape[1], kv_in.shape[1]
        q = lin(q_in, wq, bq).reshape(B, Lq, H, dk).transpose(0, 2, 1, 3)
        k = lin(kv_in, wk, bk).reshape(B, Lk, H, dk).transpose(0, 2, 1, 3)
        v = lin(kv_in, wv, bv).reshape(B, Lk, H, dk).transpose(0, 2, 1, 3)
        s = jnp.einsum('bhqd,bhkd->bhqk', q.astype(bf16), k.astype(bf16),
                       preferred_element_type=f32) / math.sqrt(dk)
        if mask_bias is not None:
            s = s + mask_bias
        pattn = jax.nn.softmax(s, axis=-1)
        ctx = jnp.einsum('bhqk,bhkd->bhqd', pattn.astype(bf16), v.astype(bf16),
                         preferred_element_type=f32)
        ctx = ctx.transpose(0, 2, 1, 3).reshape(B, Lq, D)
        return lin(ctx, wo, bo), pattn

    idx = jnp.arange(T)
    causal = jnp.where(idx[None, :] <= idx[:, None], 0.0, -1e30)[None, None]   # (1,1,T,T)

    attn1, _ = mha(text, text, p["wq1"], p["bq1"], p["wk1"], p["bk1"],
                   p["wv1"], p["bv1"], p["wo1"], p["bo1"], causal)
    r1 = _layernorm(text + attn1, p["g1"], p["b1"])

    cf = jnp.transpose(conv_feature.reshape(B, C, N), (0, 2, 1))
    align, amap = mha(r1, cf, p["wq2"], p["bq2"], p["wk2"], p["bk2"],
                      p["wv2"], p["bv2"], p["wo2"], p["bo2"], None)
    r2 = _layernorm(r1 + align, p["g2"], p["b2"])

    ff = jnp.maximum(lin(r2, p["wf1"], p["bf1"]), 0.0)
    r3 = _layernorm(r2 + lin(ff, p["wf2"], p["bf2"]), p["g3"], p["b3"])
    return r3, amap


# --------------------------------------------------------------------------------------
if __name__ == "__main__":
    # Small shapes consistent with the module (d_model % h == 0); D and h*w chosen as
    # multiples of 128 so every output block store is lane-dense.
    B, T, D, H, FF = 2, 8, 128, 4, 256
    FH, FW = 8, 16            # conv-feature spatial -> N = 128 keys
    C = D

    key = jax.random.PRNGKey(0)
    ks = iter(jax.random.split(key, 32))

    def w(shape, s=0.05):
        return jax.random.normal(next(ks), shape, jnp.float32) * s

    params = {
        # masked self-attention (4 x Linear(d_model, d_model); weights stored [in, out])
        "wq1": w((D, D)), "bq1": w((1, D)), "wk1": w((D, D)), "bk1": w((1, D)),
        "wv1": w((D, D)), "bv1": w((1, D)), "wo1": w((D, D)), "bo1": w((1, D)),
        "g1": 1.0 + w((1, D), 0.1), "b1": w((1, D), 0.1),
        # cross attention
        "wq2": w((D, D)), "bq2": w((1, D)), "wk2": w((D, D)), "bk2": w((1, D)),
        "wv2": w((D, D)), "bv2": w((1, D)), "wo2": w((D, D)), "bo2": w((1, D)),
        "g2": 1.0 + w((1, D), 0.1), "b2": w((1, D), 0.1),
        # position-wise feed forward
        "wf1": w((D, FF)), "bf1": w((1, FF)), "wf2": w((FF, D)), "bf2": w((1, D)),
        "g3": 1.0 + w((1, D), 0.1), "b3": w((1, D), 0.1),
    }

    text = jax.random.normal(next(ks), (B, T, D), jnp.float32)
    conv_feature = jax.random.normal(next(ks), (B, C, FH, FW), jnp.float32)

    result, attention_map = decoder_forward(text, conv_feature, params, H)
    result = jax.block_until_ready(result)
    attention_map = jax.block_until_ready(attention_map)

    ref_res, ref_amap = reference(text, conv_feature, params, H)
    ref_res = jax.block_until_ready(ref_res)

    # Tolerance covers bf16 matmul operands + approx-reciprocal softmax denominator.
    np.testing.assert_allclose(np.asarray(result), np.asarray(ref_res), rtol=2e-2, atol=2e-2)
    np.testing.assert_allclose(np.asarray(attention_map), np.asarray(ref_amap),
                               rtol=2e-2, atol=2e-2)

    print("KERNEL_OK")
</pallas_src>

<mosaic_0001>
module attributes {stable_mosaic.version = 11 : i64} {
  func.func @decoder_kernel(%arg0: i32, %arg1: memref<2x8x128xf32, #tpu.memory_space<vmem>>, %arg2: memref<2x128x128xf32, #tpu.memory_space<vmem>>, %arg3: memref<128x384xbf16, #tpu.memory_space<vmem>>, %arg4: memref<1x384xf32, #tpu.memory_space<vmem>>, %arg5: memref<4x32x128xbf16, #tpu.memory_space<vmem>>, %arg6: memref<1x128xf32, #tpu.memory_space<vmem>>, %arg7: memref<1x128xf32, #tpu.memory_space<vmem>>, %arg8: memref<1x128xf32, #tpu.memory_space<vmem>>, %arg9: memref<128x128xbf16, #tpu.memory_space<vmem>>, %arg10: memref<1x128xf32, #tpu.memory_space<vmem>>, %arg11: memref<128x256xbf16, #tpu.memory_space<vmem>>, %arg12: memref<1x256xf32, #tpu.memory_space<vmem>>, %arg13: memref<4x32x128xbf16, #tpu.memory_space<vmem>>, %arg14: memref<1x128xf32, #tpu.memory_space<vmem>>, %arg15: memref<1x128xf32, #tpu.memory_space<vmem>>, %arg16: memref<1x128xf32, #tpu.memory_space<vmem>>, %arg17: memref<128x256xbf16, #tpu.memory_space<vmem>>, %arg18: memref<1x256xf32, #tpu.memory_space<vmem>>, %arg19: memref<256x128xbf16, #tpu.memory_space<vmem>>, %arg20: memref<1x128xf32, #tpu.memory_space<vmem>>, %arg21: memref<1x128xf32, #tpu.memory_space<vmem>>, %arg22: memref<1x128xf32, #tpu.memory_space<vmem>>, %arg23: memref<2x8x128xf32, #tpu.memory_space<vmem>>, %arg24: memref<4x2x8x128xf32, #tpu.memory_space<vmem>>) attributes {dimension_semantics = [#tpu.dimension_semantics<arbitrary>], iteration_bounds = array<i64: 1>, scalar_prefetch = 0 : i64, scratch_operands = 0 : i64, tpu.core_type = #tpu.core_type<tc>, window_params = [{pipeline_mode = #tpu.pipeline_mode<synchronous>, transform_indices = @transform_0, window_bounds = array<i64: 2, 8, 128>}, {pipeline_mode = #tpu.pipeline_mode<synchronous>, transform_indices = @transform_1, window_bounds = array<i64: 2, 128, 128>}, {pipeline_mode = #tpu.pipeline_mode<synchronous>, transform_indices = @transform_2, window_bounds = array<i64: 128, 384>}, {pipeline_mode = #tpu.pipeline_mode<synchronous>, transform_indices = @transform_3, window_bounds = array<i64: 1, 384>}, {pipeline_mode = #tpu.pipeline_mode<synchronous>, transform_indices = @transform_4, window_bounds = array<i64: 4, 32, 128>}, {pipeline_mode = #tpu.pipeline_mode<synchronous>, transform_indices = @transform_5, window_bounds = array<i64: 1, 128>}, {pipeline_mode = #tpu.pipeline_mode<synchronous>, transform_indices = @transform_6, window_bounds = array<i64: 1, 128>}, {pipeline_mode = #tpu.pipeline_mode<synchronous>, transform_indices = @transform_7, window_bounds = array<i64: 1, 128>}, {pipeline_mode = #tpu.pipeline_mode<synchronous>, transform_indices = @transform_8, window_bounds = array<i64: 128, 128>}, {pipeline_mode = #tpu.pipeline_mode<synchronous>, transform_indices = @transform_9, window_bounds = array<i64: 1, 128>}, {pipeline_mode = #tpu.pipeline_mode<synchronous>, transform_indices = @transform_10, window_bounds = array<i64: 128, 256>}, {pipeline_mode = #tpu.pipeline_mode<synchronous>, transform_indices = @transform_11, window_bounds = array<i64: 1, 256>}, {pipeline_mode = #tpu.pipeline_mode<synchronous>, transform_indices = @transform_12, window_bounds = array<i64: 4, 32, 128>}, {pipeline_mode = #tpu.pipeline_mode<synchronous>, transform_indices = @transform_13, window_bounds = array<i64: 1, 128>}, {pipeline_mode = #tpu.pipeline_mode<synchronous>, transform_indices = @transform_14, window_bounds = array<i64: 1, 128>}, {pipeline_mode = #tpu.pipeline_mode<synchronous>, transform_indices = @transform_15, window_bounds = array<i64: 1, 128>}, {pipeline_mode = #tpu.pipeline_mode<synchronous>, transform_indices = @transform_16, window_bounds = array<i64: 128, 256>}, {pipeline_mode = #tpu.pipeline_mode<synchronous>, transform_indices = @transform_17, window_bounds = array<i64: 1, 256>}, {pipeline_mode = #tpu.pipeline_mode<synchronous>, transform_indices = @transform_18, window_bounds = array<i64: 256, 128>}, {pipeline_mode = #tpu.pipeline_mode<synchronous>, transform_indices = @transform_19, window_bounds = array<i64: 1, 128>}, {pipeline_mode = #tpu.pipeline_mode<synchronous>, transform_indices = @transform_20, window_bounds = array<i64: 1, 128>}, {pipeline_mode = #tpu.pipeline_mode<synchronous>, transform_indices = @transform_21, window_bounds = array<i64: 1, 128>}, {pipeline_mode = #tpu.pipeline_mode<synchronous>, transform_indices = @transform_22, window_bounds = array<i64: 2, 8, 128>}, {pipeline_mode = #tpu.pipeline_mode<synchronous>, transform_indices = @transform_23, window_bounds = array<i64: 4, 2, 8, 128>}]} {
    %c0 = arith.constant 0 : index
    %c0_0 = arith.constant 0 : index
    %c0_1 = arith.constant 0 : index
    %0 = vector.load %arg1[%c0, %c0_0, %c0_1] : memref<2x8x128xf32, #tpu.memory_space<vmem>>, vector<2x8x128xf32>
    %1 = vector.shape_cast %0 : vector<2x8x128xf32> to vector<16x128xf32>
    %2 = arith.truncf %1 : vector<16x128xf32> to vector<16x128xbf16>
    %c0_2 = arith.constant 0 : index
    %c0_3 = arith.constant 0 : index
    %3 = vector.load %arg3[%c0_2, %c0_3] : memref<128x384xbf16, #tpu.memory_space<vmem>>, vector<128x384xbf16>
    %cst = arith.constant dense<0.000000e+00> : vector<16x384xf32>
    %4 = tpu.matmul %2, %3, %cst {dimension_numbers = #tpu.dot_dimension_numbers<[1], [0], [0], [1], [0, 0, 1, 1], [], []>} : vector<16x128xbf16>, vector<128x384xbf16>, vector<16x384xf32> -> vector<16x384xf32>
    %c0_4 = arith.constant 0 : index
    %c0_5 = arith.constant 0 : index
    %5 = vector.load %arg4[%c0_4, %c0_5] : memref<1x384xf32, #tpu.memory_space<vmem>>, vector<1x384xf32>
    %6 = vector.broadcast %5 : vector<1x384xf32> to vector<16x384xf32>
    %7 = arith.addf %4, %6 : vector<16x384xf32>
    %8 = tpu.iota {dimensions = array<i32: 0>} : vector<8x8xi32>
    %9 = tpu.iota {dimensions = array<i32: 1>} : vector<8x8xi32>
    %10 = arith.cmpi sle, %9, %8 : vector<8x8xi32>
    %cst_6 = arith.constant 0.000000e+00 : f32
    %cst_7 = arith.constant -1.000000e+30 : f32
    %11 = vector.broadcast %cst_6 : f32 to vector<8x8xf32>
    %12 = vector.broadcast %cst_7 : f32 to vector<8x8xf32>
    %13 = arith.select %10, %11, %12 : vector<8x8xi1>, vector<8x8xf32>
    %cst_8 = arith.constant 0.000000e+00 : f32
    %14 = vector.broadcast %cst_8 : f32 to vector<16x128xf32>
    %15 = vector.extract_strided_slice %7 {offsets = [0, 0], sizes = [16, 32], strides = [1, 1]} : vector<16x384xf32> to vector<16x32xf32>
    %16 = vector.shape_cast %15 : vector<16x32xf32> to vector<2x8x32xf32>
    %17 = arith.truncf %16 : vector<2x8x32xf32> to vector<2x8x32xbf16>
    %18 = vector.extract_strided_slice %7 {offsets = [0, 128], sizes = [16, 32], strides = [1, 1]} : vector<16x384xf32> to vector<16x32xf32>
    %19 = vector.shape_cast %18 : vector<16x32xf32> to vector<2x8x32xf32>
    %20 = arith.truncf %19 : vector<2x8x32xf32> to vector<2x8x32xbf16>
    %21 = vector.extract_strided_slice %7 {offsets = [0, 256], sizes = [16, 32], strides = [1, 1]} : vector<16x384xf32> to vector<16x32xf32>
    %22 = vector.shape_cast %21 : vector<16x32xf32> to vector<2x8x32xf32>
    %23 = arith.truncf %22 : vector<2x8x32xf32> to vector<2x8x32xbf16>
    "tpu.trace_start"() <{level = 10 : i32, message = "bqd,bkd->bqk"}> : () -> ()
    %cst_9 = arith.constant dense<0.000000e+00> : vector<2x8x8xf32>
    %24 = tpu.matmul %17, %20, %cst_9 {dimension_numbers = #tpu.dot_dimension_numbers<[2], [2], [1], [1], [0, 0, 0, 1, 1, 1], [0], [0]>} : vector<2x8x32xbf16>, vector<2x8x32xbf16>, vector<2x8x8xf32> -> vector<2x8x8xf32>
    "tpu.trace_stop"() : () -> ()
    %25 = vector.shape_cast %13 : vector<8x8xf32> to vector<1x8x8xf32>
    %26 = vector.broadcast %25 : vector<1x8x8xf32> to vector<2x8x8xf32>
    %27 = arith.addf %24, %26 : vector<2x8x8xf32>
    %cst_10 = arith.constant dense<0xFF800000> : vector<2x8xf32>
    %28 = vector.multi_reduction <maximumf>, %27, %cst_10 [2] : vector<2x8x8xf32> to vector<2x8xf32>
    %29 = vector.shape_cast %28 : vector<2x8xf32> to vector<2x8x1xf32>
    %30 = vector.broadcast %29 : vector<2x8x1xf32> to vector<2x8x8xf32>
    %31 = arith.subf %27, %30 : vector<2x8x8xf32>
    %32 = math.exp %31 : vector<2x8x8xf32>
    %cst_11 = arith.constant dense<0.000000e+00> : vector<2x8xf32>
    %33 = vector.multi_reduction <add>, %32, %cst_11 [2] : vector<2x8x8xf32> to vector<2x8xf32>
    %34 = vector.shape_cast %33 : vector<2x8xf32> to vector<2x8x1xf32>
    %35 = tpu.reciprocal %34 {approx = true} : vector<2x8x1xf32> -> vector<2x8x1xf32>
    %36 = vector.broadcast %35 : vector<2x8x1xf32> to vector<2x8x8xf32>
    %37 = arith.mulf %32, %36 : vector<2x8x8xf32>
    %38 = arith.truncf %37 : vector<2x8x8xf32> to vector<2x8x8xbf16>
    "tpu.trace_start"() <{level = 10 : i32, message = "bqk,bkd->bqd"}> : () -> ()
    %cst_12 = arith.constant dense<0.000000e+00> : vector<2x8x32xf32>
    %39 = tpu.matmul %38, %23, %cst_12 {dimension_numbers = #tpu.dot_dimension_numbers<[2], [1], [1], [2], [0, 0, 0, 1, 1, 2], [0], [0]>} : vector<2x8x8xbf16>, vector<2x8x32xbf16>, vector<2x8x32xf32> -> vector<2x8x32xf32>
    "tpu.trace_stop"() : () -> ()
    %40 = vector.shape_cast %39 : vector<2x8x32xf32> to vector<16x32xf32>
    %41 = arith.truncf %40 : vector<16x32xf32> to vector<16x32xbf16>
    %c0_13 = arith.constant 0 : index
    %c0_14 = arith.constant 0 : index
    %c0_15 = arith.constant 0 : index
    %42 = vector.load %arg5[%c0_13, %c0_14, %c0_15] : memref<4x32x128xbf16, #tpu.memory_space<vmem>>, vector<1x32x128xbf16>
    %43 = vector.shape_cast %42 : vector<1x32x128xbf16> to vector<32x128xbf16>
    %cst_16 = arith.constant dense<0.000000e+00> : vector<16x128xf32>
    %44 = tpu.matmul %41, %43, %cst_16 {dimension_numbers = #tpu.dot_dimension_numbers<[1], [0], [0], [1], [0, 0, 1, 1], [], []>} : vector<16x32xbf16>, vector<32x128xbf16>, vector<16x128xf32> -> vector<16x128xf32>
    %45 = arith.addf %14, %44 : vector<16x128xf32>
    %46 = vector.extract_strided_slice %7 {offsets = [0, 32], sizes = [16, 32], strides = [1, 1]} : vector<16x384xf32> to vector<16x32xf32>
    %47 = vector.shape_cast %46 : vector<16x32xf32> to vector<2x8x32xf32>
    %48 = arith.truncf %47 : vector<2x8x32xf32> to vector<2x8x32xbf16>
    %49 = vector.extract_strided_slice %7 {offsets = [0, 160], sizes = [16, 32], strides = [1, 1]} : vector<16x384xf32> to vector<16x32xf32>
    %50 = vector.shape_cast %49 : vector<16x32xf32> to vector<2x8x32xf32>
    %51 = arith.truncf %50 : vector<2x8x32xf32> to vector<2x8x32xbf16>
    %52 = vector.extract_strided_slice %7 {offsets = [0, 288], sizes = [16, 32], strides = [1, 1]} : vector<16x384xf32> to vector<16x32xf32>
    %53 = vector.shape_cast %52 : vector<16x32xf32> to vector<2x8x32xf32>
    %54 = arith.truncf %53 : vector<2x8x32xf32> to vector<2x8x32xbf16>
    "tpu.trace_start"() <{level = 10 : i32, message = "bqd,bkd->bqk"}> : () -> ()
    %cst_17 = arith.constant dense<0.000000e+00> : vector<2x8x8xf32>
    %55 = tpu.matmul %48, %51, %cst_17 {dimension_numbers = #tpu.dot_dimension_numbers<[2], [2], [1], [1], [0, 0, 0, 1, 1, 1], [0], [0]>} : vector<2x8x32xbf16>, vector<2x8x32xbf16>, vector<2x8x8xf32> -> vector<2x8x8xf32>
    "tpu.trace_stop"() : () -> ()
    %56 = vector.shape_cast %13 : vector<8x8xf32> to vector<1x8x8xf32>
    %57 = vector.broadcast %56 : vector<1x8x8xf32> to vector<2x8x8xf32>
    %58 = arith.addf %55, %57 : vector<2x8x8xf32>
    %cst_18 = arith.constant dense<0xFF800000> : vector<2x8xf32>
    %59 = vector.multi_reduction <maximumf>, %58, %cst_18 [2] : vector<2x8x8xf32> to vector<2x8xf32>
    %60 = vector.shape_cast %59 : vector<2x8xf32> to vector<2x8x1xf32>
    %61 = vector.broadcast %60 : vector<2x8x1xf32> to vector<2x8x8xf32>
    %62 = arith.subf %58, %61 : vector<2x8x8xf32>
    %63 = math.exp %62 : vector<2x8x8xf32>
    %cst_19 = arith.constant dense<0.000000e+00> : vector<2x8xf32>
    %64 = vector.multi_reduction <add>, %63, %cst_19 [2] : vector<2x8x8xf32> to vector<2x8xf32>
    %65 = vector.shape_cast %64 : vector<2x8xf32> to vector<2x8x1xf32>
    %66 = tpu.reciprocal %65 {approx = true} : vector<2x8x1xf32> -> vector<2x8x1xf32>
    %67 = vector.broadcast %66 : vector<2x8x1xf32> to vector<2x8x8xf32>
    %68 = arith.mulf %63, %67 : vector<2x8x8xf32>
    %69 = arith.truncf %68 : vector<2x8x8xf32> to vector<2x8x8xbf16>
    "tpu.trace_start"() <{level = 10 : i32, message = "bqk,bkd->bqd"}> : () -> ()
    %cst_20 = arith.constant dense<0.000000e+00> : vector<2x8x32xf32>
    %70 = tpu.matmul %69, %54, %cst_20 {dimension_numbers = #tpu.dot_dimension_numbers<[2], [1], [1], [2], [0, 0, 0, 1, 1, 2], [0], [0]>} : vector<2x8x8xbf16>, vector<2x8x32xbf16>, vector<2x8x32xf32> -> vector<2x8x32xf32>
    "tpu.trace_stop"() : () -> ()
    %71 = vector.shape_cast %70 : vector<2x8x32xf32> to vector<16x32xf32>
    %72 = arith.truncf %71 : vector<16x32xf32> to vector<16x32xbf16>
    %c1 = arith.constant 1 : index
    %c0_21 = arith.constant 0 : index
    %c0_22 = arith.constant 0 : index
    %73 = vector.load %arg5[%c1, %c0_21, %c0_22] : memref<4x32x128xbf16, #tpu.memory_space<vmem>>, vector<1x32x128xbf16>
    %74 = vector.shape_cast %73 : vector<1x32x128xbf16> to vector<32x128xbf16>
    %cst_23 = arith.constant dense<0.000000e+00> : vector<16x128xf32>
    %75 = tpu.matmul %72, %74, %cst_23 {dimension_numbers = #tpu.dot_dimension_numbers<[1], [0], [0], [1], [0, 0, 1, 1], [], []>} : vector<16x32xbf16>, vector<32x128xbf16>, vector<16x128xf32> -> vector<16x128xf32>
    %76 = arith.addf %45, %75 : vector<16x128xf32>
    %77 = vector.extract_strided_slice %7 {offsets = [0, 64], sizes = [16, 32], strides = [1, 1]} : vector<16x384xf32> to vector<16x32xf32>
    %78 = vector.shape_cast %77 : vector<16x32xf32> to vector<2x8x32xf32>
    %79 = arith.truncf %78 : vector<2x8x32xf32> to vector<2x8x32xbf16>
    %80 = vector.extract_strided_slice %7 {offsets = [0, 192], sizes = [16, 32], strides = [1, 1]} : vector<16x384xf32> to vector<16x32xf32>
    %81 = vector.shape_cast %80 : vector<16x32xf32> to vector<2x8x32xf32>
    %82 = arith.truncf %81 : vector<2x8x32xf32> to vector<2x8x32xbf16>
    %83 = vector.extract_strided_slice %7 {offsets = [0, 320], sizes = [16, 32], strides = [1, 1]} : vector<16x384xf32> to vector<16x32xf32>
    %84 = vector.shape_cast %83 : vector<16x32xf32> to vector<2x8x32xf32>
    %85 = arith.truncf %84 : vector<2x8x32xf32> to vector<2x8x32xbf16>
    "tpu.trace_start"() <{level = 10 : i32, message = "bqd,bkd->bqk"}> : () -> ()
    %cst_24 = arith.constant dense<0.000000e+00> : vector<2x8x8xf32>
    %86 = tpu.matmul %79, %82, %cst_24 {dimension_numbers = #tpu.dot_dimension_numbers<[2], [2], [1], [1], [0, 0, 0, 1, 1, 1], [0], [0]>} : vector<2x8x32xbf16>, vector<2x8x32xbf16>, vector<2x8x8xf32> -> vector<2x8x8xf32>
    "tpu.trace_stop"() : () -> ()
    %87 = vector.shape_cast %13 : vector<8x8xf32> to vector<1x8x8xf32>
    %88 = vector.broadcast %87 : vector<1x8x8xf32> to vector<2x8x8xf32>
    %89 = arith.addf %86, %88 : vector<2x8x8xf32>
    %cst_25 = arith.constant dense<0xFF800000> : vector<2x8xf32>
    %90 = vector.multi_reduction <maximumf>, %89, %cst_25 [2] : vector<2x8x8xf32> to vector<2x8xf32>
    %91 = vector.shape_cast %90 : vector<2x8xf32> to vector<2x8x1xf32>
    %92 = vector.broadcast %91 : vector<2x8x1xf32> to vector<2x8x8xf32>
    %93 = arith.subf %89, %92 : vector<2x8x8xf32>
    %94 = math.exp %93 : vector<2x8x8xf32>
    %cst_26 = arith.constant dense<0.000000e+00> : vector<2x8xf32>
    %95 = vector.multi_reduction <add>, %94, %cst_26 [2] : vector<2x8x8xf32> to vector<2x8xf32>
    %96 = vector.shape_cast %95 : vector<2x8xf32> to vector<2x8x1xf32>
    %97 = tpu.reciprocal %96 {approx = true} : vector<2x8x1xf32> -> vector<2x8x1xf32>
    %98 = vector.broadcast %97 : vector<2x8x1xf32> to vector<2x8x8xf32>
    %99 = arith.mulf %94, %98 : vector<2x8x8xf32>
    %100 = arith.truncf %99 : vector<2x8x8xf32> to vector<2x8x8xbf16>
    "tpu.trace_start"() <{level = 10 : i32, message = "bqk,bkd->bqd"}> : () -> ()
    %cst_27 = arith.constant dense<0.000000e+00> : vector<2x8x32xf32>
    %101 = tpu.matmul %100, %85, %cst_27 {dimension_numbers = #tpu.dot_dimension_numbers<[2], [1], [1], [2], [0, 0, 0, 1, 1, 2], [0], [0]>} : vector<2x8x8xbf16>, vector<2x8x32xbf16>, vector<2x8x32xf32> -> vector<2x8x32xf32>
    "tpu.trace_stop"() : () -> ()
    %102 = vector.shape_cast %101 : vector<2x8x32xf32> to vector<16x32xf32>
    %103 = arith.truncf %102 : vector<16x32xf32> to vector<16x32xbf16>
    %c2 = arith.constant 2 : index
    %c0_28 = arith.constant 0 : index
    %c0_29 = arith.constant 0 : index
    %104 = vector.load %arg5[%c2, %c0_28, %c0_29] : memref<4x32x128xbf16, #tpu.memory_space<vmem>>, vector<1x32x128xbf16>
    %105 = vector.shape_cast %104 : vector<1x32x128xbf16> to vector<32x128xbf16>
    %cst_30 = arith.constant dense<0.000000e+00> : vector<16x128xf32>
    %106 = tpu.matmul %103, %105, %cst_30 {dimension_numbers = #tpu.dot_dimension_numbers<[1], [0], [0], [1], [0, 0, 1, 1], [], []>} : vector<16x32xbf16>, vector<32x128xbf16>, vector<16x128xf32> -> vector<16x128xf32>
    %107 = arith.addf %76, %106 : vector<16x128xf32>
    %108 = vector.extract_strided_slice %7 {offsets = [0, 96], sizes = [16, 32], strides = [1, 1]} : vector<16x384xf32> to vector<16x32xf32>
    %109 = vector.shape_cast %108 : vector<16x32xf32> to vector<2x8x32xf32>
    %110 = arith.truncf %109 : vector<2x8x32xf32> to vector<2x8x32xbf16>
    %111 = vector.extract_strided_slice %7 {offsets = [0, 224], sizes = [16, 32], strides = [1, 1]} : vector<16x384xf32> to vector<16x32xf32>
    %112 = vector.shape_cast %111 : vector<16x32xf32> to vector<2x8x32xf32>
    %113 = arith.truncf %112 : vector<2x8x32xf32> to vector<2x8x32xbf16>
    %114 = vector.extract_strided_slice %7 {offsets = [0, 352], sizes = [16, 32], strides = [1, 1]} : vector<16x384xf32> to vector<16x32xf32>
    %115 = vector.shape_cast %114 : vector<16x32xf32> to vector<2x8x32xf32>
    %116 = arith.truncf %115 : vector<2x8x32xf32> to vector<2x8x32xbf16>
    "tpu.trace_start"() <{level = 10 : i32, message = "bqd,bkd->bqk"}> : () -> ()
    %cst_31 = arith.constant dense<0.000000e+00> : vector<2x8x8xf32>
    %117 = tpu.matmul %110, %113, %cst_31 {dimension_numbers = #tpu.dot_dimension_numbers<[2], [2], [1], [1], [0, 0, 0, 1, 1, 1], [0], [0]>} : vector<2x8x32xbf16>, vector<2x8x32xbf16>, vector<2x8x8xf32> -> vector<2x8x8xf32>
    "tpu.trace_stop"() : () -> ()
    %118 = vector.shape_cast %13 : vector<8x8xf32> to vector<1x8x8xf32>
    %119 = vector.broadcast %118 : vector<1x8x8xf32> to vector<2x8x8xf32>
    %120 = arith.addf %117, %119 : vector<2x8x8xf32>
    %cst_32 = arith.constant dense<0xFF800000> : vector<2x8xf32>
    %121 = vector.multi_reduction <maximumf>, %120, %cst_32 [2] : vector<2x8x8xf32> to vector<2x8xf32>
    %122 = vector.shape_cast %121 : vector<2x8xf32> to vector<2x8x1xf32>
    %123 = vector.broadcast %122 : vector<2x8x1xf32> to vector<2x8x8xf32>
    %124 = arith.subf %120, %123 : vector<2x8x8xf32>
    %125 = math.exp %124 : vector<2x8x8xf32>
    %cst_33 = arith.constant dense<0.000000e+00> : vector<2x8xf32>
    %126 = vector.multi_reduction <add>, %125, %cst_33 [2] : vector<2x8x8xf32> to vector<2x8xf32>
    %127 = vector.shape_cast %126 : vector<2x8xf32> to vector<2x8x1xf32>
    %128 = tpu.reciprocal %127 {approx = true} : vector<2x8x1xf32> -> vector<2x8x1xf32>
    %129 = vector.broadcast %128 : vector<2x8x1xf32> to vector<2x8x8xf32>
    %130 = arith.mulf %125, %129 : vector<2x8x8xf32>
    %131 = arith.truncf %130 : vector<2x8x8xf32> to vector<2x8x8xbf16>
    "tpu.trace_start"() <{level = 10 : i32, message = "bqk,bkd->bqd"}> : () -> ()
    %cst_34 = arith.constant dense<0.000000e+00> : vector<2x8x32xf32>
    %132 = tpu.matmul %131, %116, %cst_34 {dimension_numbers = #tpu.dot_dimension_numbers<[2], [1], [1], [2], [0, 0, 0, 1, 1, 2], [0], [0]>} : vector<2x8x8xbf16>, vector<2x8x32xbf16>, vector<2x8x32xf32> -> vector<2x8x32xf32>
    "tpu.trace_stop"() : () -> ()
    %133 = vector.shape_cast %132 : vector<2x8x32xf32> to vector<16x32xf32>
    %134 = arith.truncf %133 : vector<16x32xf32> to vector<16x32xbf16>
    %c3 = arith.constant 3 : index
    %c0_35 = arith.constant 0 : index
    %c0_36 = arith.constant 0 : index
    %135 = vector.load %arg5[%c3, %c0_35, %c0_36] : memref<4x32x128xbf16, #tpu.memory_space<vmem>>, vector<1x32x128xbf16>
    %136 = vector.shape_cast %135 : vector<1x32x128xbf16> to vector<32x128xbf16>
    %cst_37 = arith.constant dense<0.000000e+00> : vector<16x128xf32>
    %137 = tpu.matmul %134, %136, %cst_37 {dimension_numbers = #tpu.dot_dimension_numbers<[1], [0], [0], [1], [0, 0, 1, 1], [], []>} : vector<16x32xbf16>, vector<32x128xbf16>, vector<16x128xf32> -> vector<16x128xf32>
    %138 = arith.addf %107, %137 : vector<16x128xf32>
    %c0_38 = arith.constant 0 : index
    %c0_39 = arith.constant 0 : index
    %139 = vector.load %arg6[%c0_38, %c0_39] : memref<1x128xf32, #tpu.memory_space<vmem>>, vector<1x128xf32>
    %140 = vector.broadcast %139 : vector<1x128xf32> to vector<16x128xf32>
    %141 = arith.addf %138, %140 : vector<16x128xf32>
    %142 = arith.addf %1, %141 : vector<16x128xf32>
    %c0_40 = arith.constant 0 : index
    %c0_41 = arith.constant 0 : index
    %143 = vector.load %arg7[%c0_40, %c0_41] : memref<1x128xf32, #tpu.memory_space<vmem>>, vector<1x128xf32>
    %c0_42 = arith.constant 0 : index
    %c0_43 = arith.constant 0 : index
    %144 = vector.load %arg8[%c0_42, %c0_43] : memref<1x128xf32, #tpu.memory_space<vmem>>, vector<1x128xf32>
    %cst_44 = arith.constant dense<0.000000e+00> : vector<16xf32>
    %145 = vector.multi_reduction <add>, %142, %cst_44 [1] : vector<16x128xf32> to vector<16xf32>
    %146 = vector.shape_cast %145 : vector<16xf32> to vector<16x1xf32>
    %cst_45 = arith.constant 1.280000e+02 : f32
    %147 = vector.broadcast %cst_45 : f32 to vector<16x1xf32>
    %148 = arith.divf %146, %147 : vector<16x1xf32>
    %149 = vector.broadcast %148 : vector<16x1xf32> to vector<16x128xf32>
    %150 = arith.subf %142, %149 : vector<16x128xf32>
    %151 = arith.mulf %150, %150 : vector<16x128xf32>
    %cst_46 = arith.constant dense<0.000000e+00> : vector<16xf32>
    %152 = vector.multi_reduction <add>, %151, %cst_46 [1] : vector<16x128xf32> to vector<16xf32>
    %153 = vector.shape_cast %152 : vector<16xf32> to vector<16x1xf32>
    %cst_47 = arith.constant 1.270000e+02 : f32
    %154 = vector.broadcast %cst_47 : f32 to vector<16x1xf32>
    %155 = arith.divf %153, %154 : vector<16x1xf32>
    %156 = vector.broadcast %143 : vector<1x128xf32> to vector<16x128xf32>
    %157 = arith.mulf %156, %150 : vector<16x128xf32>
    %158 = math.sqrt %155 : vector<16x1xf32>
    %cst_48 = arith.constant 9.99999997E-7 : f32
    %159 = vector.broadcast %cst_48 : f32 to vector<16x1xf32>
    %160 = arith.addf %158, %159 : vector<16x1xf32>
    %cst_49 = arith.constant 1.000000e+00 : f32
    %161 = vector.broadcast %cst_49 : f32 to vector<16x1xf32>
    %162 = arith.divf %161, %160 : vector<16x1xf32>
    %163 = vector.broadcast %162 : vector<16x1xf32> to vector<16x128xf32>
    %164 = arith.mulf %157, %163 : vector<16x128xf32>
    %165 = vector.broadcast %144 : vector<1x128xf32> to vector<16x128xf32>
    %166 = arith.addf %164, %165 : vector<16x128xf32>
    %c0_50 = arith.constant 0 : index
    %c0_51 = arith.constant 0 : index
    %c0_52 = arith.constant 0 : index
    %167 = vector.load %arg2[%c0_50, %c0_51, %c0_52] : memref<2x128x128xf32, #tpu.memory_space<vmem>>, vector<2x128x128xf32>
    %168 = arith.truncf %167 : vector<2x128x128xf32> to vector<2x128x128xbf16>
    %169 = vector.shape_cast %168 : vector<2x128x128xbf16> to vector<256x128xbf16>
    %170 = arith.truncf %166 : vector<16x128xf32> to vector<16x128xbf16>
    %c0_53 = arith.constant 0 : index
    %c0_54 = arith.constant 0 : index
    %171 = vector.load %arg9[%c0_53, %c0_54] : memref<128x128xbf16, #tpu.memory_space<vmem>>, vector<128x128xbf16>
    %cst_55 = arith.constant dense<0.000000e+00> : vector<16x128xf32>
    %172 = tpu.matmul %170, %171, %cst_55 {dimension_numbers = #tpu.dot_dimension_numbers<[1], [0], [0], [1], [0, 0, 1, 1], [], []>} : vector<16x128xbf16>, vector<128x128xbf16>, vector<16x128xf32> -> vector<16x128xf32>
    %c0_56 = arith.constant 0 : index
    %c0_57 = arith.constant 0 : index
    %173 = vector.load %arg10[%c0_56, %c0_57] : memref<1x128xf32, #tpu.memory_space<vmem>>, vector<1x128xf32>
    %174 = vector.broadcast %173 : vector<1x128xf32> to vector<16x128xf32>
    %175 = arith.addf %172, %174 : vector<16x128xf32>
    %c0_58 = arith.constant 0 : index
    %c0_59 = arith.constant 0 : index
    %176 = vector.load %arg11[%c0_58, %c0_59] : memref<128x256xbf16, #tpu.memory_space<vmem>>, vector<128x256xbf16>
    %cst_60 = arith.constant dense<0.000000e+00> : vector<256x256xf32>
    %177 = tpu.matmul %169, %176, %cst_60 {dimension_numbers = #tpu.dot_dimension_numbers<[1], [0], [0], [1], [0, 0, 1, 1], [], []>} : vector<256x128xbf16>, vector<128x256xbf16>, vector<256x256xf32> -> vector<256x256xf32>
    %c0_61 = arith.constant 0 : index
    %c0_62 = arith.constant 0 : index
    %178 = vector.load %arg12[%c0_61, %c0_62] : memref<1x256xf32, #tpu.memory_space<vmem>>, vector<1x256xf32>
    %179 = vector.broadcast %178 : vector<1x256xf32> to vector<256x256xf32>
    %180 = arith.addf %177, %179 : vector<256x256xf32>
    %cst_63 = arith.constant 0.000000e+00 : f32
    %181 = vector.broadcast %cst_63 : f32 to vector<16x128xf32>
    %182 = vector.extract_strided_slice %175 {offsets = [0, 0], sizes = [16, 32], strides = [1, 1]} : vector<16x128xf32> to vector<16x32xf32>
    %183 = vector.shape_cast %182 : vector<16x32xf32> to vector<2x8x32xf32>
    %184 = arith.truncf %183 : vector<2x8x32xf32> to vector<2x8x32xbf16>
    %185 = vector.extract_strided_slice %180 {offsets = [0, 0], sizes = [256, 32], strides = [1, 1]} : vector<256x256xf32> to vector<256x32xf32>
    %186 = vector.shape_cast %185 : vector<256x32xf32> to vector<2x128x32xf32>
    %187 = arith.truncf %186 : vector<2x128x32xf32> to vector<2x128x32xbf16>
    %188 = vector.extract_strided_slice %180 {offsets = [0, 128], sizes = [256, 32], strides = [1, 1]} : vector<256x256xf32> to vector<256x32xf32>
    %189 = vector.shape_cast %188 : vector<256x32xf32> to vector<2x128x32xf32>
    %190 = arith.truncf %189 : vector<2x128x32xf32> to vector<2x128x32xbf16>
    "tpu.trace_start"() <{level = 10 : i32, message = "bqd,bkd->bqk"}> : () -> ()
    %cst_64 = arith.constant dense<0.000000e+00> : vector<2x8x128xf32>
    %191 = tpu.matmul %184, %187, %cst_64 {dimension_numbers = #tpu.dot_dimension_numbers<[2], [2], [1], [1], [0, 0, 0, 1, 1, 1], [0], [0]>} : vector<2x8x32xbf16>, vector<2x128x32xbf16>, vector<2x8x128xf32> -> vector<2x8x128xf32>
    "tpu.trace_stop"() : () -> ()
    %cst_65 = arith.constant dense<0xFF800000> : vector<2x8xf32>
    %192 = vector.multi_reduction <maximumf>, %191, %cst_65 [2] : vector<2x8x128xf32> to vector<2x8xf32>
    %193 = vector.shape_cast %192 : vector<2x8xf32> to vector<2x8x1xf32>
    %194 = vector.broadcast %193 : vector<2x8x1xf32> to vector<2x8x128xf32>
    %195 = arith.subf %191, %194 : vector<2x8x128xf32>
    %196 = math.exp %195 : vector<2x8x128xf32>
    %cst_66 = arith.constant dense<0.000000e+00> : vector<2x8xf32>
    %197 = vector.multi_reduction <add>, %196, %cst_66 [2] : vector<2x8x128xf32> to vector<2x8xf32>
    %198 = vector.shape_cast %197 : vector<2x8xf32> to vector<2x8x1xf32>
    %199 = tpu.reciprocal %198 {approx = true} : vector<2x8x1xf32> -> vector<2x8x1xf32>
    %200 = vector.broadcast %199 : vector<2x8x1xf32> to vector<2x8x128xf32>
    %201 = arith.mulf %196, %200 : vector<2x8x128xf32>
    %c0_67 = arith.constant 0 : index
    %c0_68 = arith.constant 0 : index
    %c0_69 = arith.constant 0 : index
    %c0_70 = arith.constant 0 : index
    %202 = vector.load %arg24[%c0_67, %c0_68, %c0_69, %c0_70] : memref<4x2x8x128xf32, #tpu.memory_space<vmem>>, vector<1x2x8x128xf32>
    %203 = vector.shape_cast %202 : vector<1x2x8x128xf32> to vector<2x8x128xf32>
    %204 = vector.shape_cast %201 : vector<2x8x128xf32> to vector<1x2x8x128xf32>
    tpu.vector_store %arg24[%c0_67, %c0_68, %c0_69, %c0_70], %204 {strides = array<i32>} : memref<4x2x8x128xf32, #tpu.memory_space<vmem>>, vector<1x2x8x128xf32>,
    %205 = arith.truncf %201 : vector<2x8x128xf32> to vector<2x8x128xbf16>
    "tpu.trace_start"() <{level = 10 : i32, message = "bqk,bkd->bqd"}> : () -> ()
    %cst_71 = arith.constant dense<0.000000e+00> : vector<2x8x32xf32>
    %206 = tpu.matmul %205, %190, %cst_71 {dimension_numbers = #tpu.dot_dimension_numbers<[2], [1], [1], [2], [0, 0, 0, 1, 1, 2], [0], [0]>} : vector<2x8x128xbf16>, vector<2x128x32xbf16>, vector<2x8x32xf32> -> vector<2x8x32xf32>
    "tpu.trace_stop"() : () -> ()
    %207 = vector.shape_cast %206 : vector<2x8x32xf32> to vector<16x32xf32>
    %208 = arith.truncf %207 : vector<16x32xf32> to vector<16x32xbf16>
    %c0_72 = arith.constant 0 : index
    %c0_73 = arith.constant 0 : index
    %c0_74 = arith.constant 0 : index
    %209 = vector.load %arg13[%c0_72, %c0_73, %c0_74] : memref<4x32x128xbf16, #tpu.memory_space<vmem>>, vector<1x32x128xbf16>
    %210 = vector.shape_cast %209 : vector<1x32x128xbf16> to vector<32x128xbf16>
    %cst_75 = arith.constant dense<0.000000e+00> : vector<16x128xf32>
    %211 = tpu.matmul %208, %210, %cst_75 {dimension_numbers = #tpu.dot_dimension_numbers<[1], [0], [0], [1], [0, 0, 1, 1], [], []>} : vector<16x32xbf16>, vector<32x128xbf16>, vector<16x128xf32> -> vector<16x128xf32>
    %212 = arith.addf %181, %211 : vector<16x128xf32>
    %213 = vector.extract_strided_slice %175 {offsets = [0, 32], sizes = [16, 32], strides = [1, 1]} : vector<16x128xf32> to vector<16x32xf32>
    %214 = vector.shape_cast %213 : vector<16x32xf32> to vector<2x8x32xf32>
    %215 = arith.truncf %214 : vector<2x8x32xf32> to vector<2x8x32xbf16>
    %216 = vector.extract_strided_slice %180 {offsets = [0, 32], sizes = [256, 32], strides = [1, 1]} : vector<256x256xf32> to vector<256x32xf32>
    %217 = vector.shape_cast %216 : vector<256x32xf32> to vector<2x128x32xf32>
    %218 = arith.truncf %217 : vector<2x128x32xf32> to vector<2x128x32xbf16>
    %219 = vector.extract_strided_slice %180 {offsets = [0, 160], sizes = [256, 32], strides = [1, 1]} : vector<256x256xf32> to vector<256x32xf32>
    %220 = vector.shape_cast %219 : vector<256x32xf32> to vector<2x128x32xf32>
    %221 = arith.truncf %220 : vector<2x128x32xf32> to vector<2x128x32xbf16>
    "tpu.trace_start"() <{level = 10 : i32, message = "bqd,bkd->bqk"}> : () -> ()
    %cst_76 = arith.constant dense<0.000000e+00> : vector<2x8x128xf32>
    %222 = tpu.matmul %215, %218, %cst_76 {dimension_numbers = #tpu.dot_dimension_numbers<[2], [2], [1], [1], [0, 0, 0, 1, 1, 1], [0], [0]>} : vector<2x8x32xbf16>, vector<2x128x32xbf16>, vector<2x8x128xf32> -> vector<2x8x128xf32>
    "tpu.trace_stop"() : () -> ()
    %cst_77 = arith.constant dense<0xFF800000> : vector<2x8xf32>
    %223 = vector.multi_reduction <maximumf>, %222, %cst_77 [2] : vector<2x8x128xf32> to vector<2x8xf32>
    %224 = vector.shape_cast %223 : vector<2x8xf32> to vector<2x8x1xf32>
    %225 = vector.broadcast %224 : vector<2x8x1xf32> to vector<2x8x128xf32>
    %226 = arith.subf %222, %225 : vector<2x8x128xf32>
    %227 = math.exp %226 : vector<2x8x128xf32>
    %cst_78 = arith.constant dense<0.000000e+00> : vector<2x8xf32>
    %228 = vector.multi_reduction <add>, %227, %cst_78 [2] : vector<2x8x128xf32> to vector<2x8xf32>
    %229 = vector.shape_cast %228 : vector<2x8xf32> to vector<2x8x1xf32>
    %230 = tpu.reciprocal %229 {approx = true} : vector<2x8x1xf32> -> vector<2x8x1xf32>
    %231 = vector.broadcast %230 : vector<2x8x1xf32> to vector<2x8x128xf32>
    %232 = arith.mulf %227, %231 : vector<2x8x128xf32>
    %c1_79 = arith.constant 1 : index
    %c0_80 = arith.constant 0 : index
    %c0_81 = arith.constant 0 : index
    %c0_82 = arith.constant 0 : index
    %233 = vector.load %arg24[%c1_79, %c0_80, %c0_81, %c0_82] : memref<4x2x8x128xf32, #tpu.memory_space<vmem>>, vector<1x2x8x128xf32>
    %234 = vector.shape_cast %233 : vector<1x2x8x128xf32> to vector<2x8x128xf32>
    %235 = vector.shape_cast %232 : vector<2x8x128xf32> to vector<1x2x8x128xf32>
    tpu.vector_store %arg24[%c1_79, %c0_80, %c0_81, %c0_82], %235 {strides = array<i32>} : memref<4x2x8x128xf32, #tpu.memory_space<vmem>>, vector<1x2x8x128xf32>,
    %236 = arith.truncf %232 : vector<2x8x128xf32> to vector<2x8x128xbf16>
    "tpu.trace_start"() <{level = 10 : i32, message = "bqk,bkd->bqd"}> : () -> ()
    %cst_83 = arith.constant dense<0.000000e+00> : vector<2x8x32xf32>
    %237 = tpu.matmul %236, %221, %cst_83 {dimension_numbers = #tpu.dot_dimension_numbers<[2], [1], [1], [2], [0, 0, 0, 1, 1, 2], [0], [0]>} : vector<2x8x128xbf16>, vector<2x128x32xbf16>, vector<2x8x32xf32> -> vector<2x8x32xf32>
    "tpu.trace_stop"() : () -> ()
    %238 = vector.shape_cast %237 : vector<2x8x32xf32> to vector<16x32xf32>
    %239 = arith.truncf %238 : vector<16x32xf32> to vector<16x32xbf16>
    %c1_84 = arith.constant 1 : index
    %c0_85 = arith.constant 0 : index
    %c0_86 = arith.constant 0 : index
    %240 = vector.load %arg13[%c1_84, %c0_85, %c0_86] : memref<4x32x128xbf16, #tpu.memory_space<vmem>>, vector<1x32x128xbf16>
    %241 = vector.shape_cast %240 : vector<1x32x128xbf16> to vector<32x128xbf16>
    %cst_87 = arith.constant dense<0.000000e+00> : vector<16x128xf32>
    %242 = tpu.matmul %239, %241, %cst_87 {dimension_numbers = #tpu.dot_dimension_numbers<[1], [0], [0], [1], [0, 0, 1, 1], [], []>} : vector<16x32xbf16>, vector<32x128xbf16>, vector<16x128xf32> -> vector<16x128xf32>
    %243 = arith.addf %212, %242 : vector<16x128xf32>
    %244 = vector.extract_strided_slice %175 {offsets = [0, 64], sizes = [16, 32], strides = [1, 1]} : vector<16x128xf32> to vector<16x32xf32>
    %245 = vector.shape_cast %244 : vector<16x32xf32> to vector<2x8x32xf32>
    %246 = arith.truncf %245 : vector<2x8x32xf32> to vector<2x8x32xbf16>
    %247 = vector.extract_strided_slice %180 {offsets = [0, 64], sizes = [256, 32], strides = [1, 1]} : vector<256x256xf32> to vector<256x32xf32>
    %248 = vector.shape_cast %247 : vector<256x32xf32> to vector<2x128x32xf32>
    %249 = arith.truncf %248 : vector<2x128x32xf32> to vector<2x128x32xbf16>
    %250 = vector.extract_strided_slice %180 {offsets = [0, 192], sizes = [256, 32], strides = [1, 1]} : vector<256x256xf32> to vector<256x32xf32>
    %251 = vector.shape_cast %250 : vector<256x32xf32> to vector<2x128x32xf32>
    %252 = arith.truncf %251 : vector<2x128x32xf32> to vector<2x128x32xbf16>
    "tpu.trace_start"() <{level = 10 : i32, message = "bqd,bkd->bqk"}> : () -> ()
    %cst_88 = arith.constant dense<0.000000e+00> : vector<2x8x128xf32>
    %253 = tpu.matmul %246, %249, %cst_88 {dimension_numbers = #tpu.dot_dimension_numbers<[2], [2], [1], [1], [0, 0, 0, 1, 1, 1], [0], [0]>} : vector<2x8x32xbf16>, vector<2x128x32xbf16>, vector<2x8x128xf32> -> vector<2x8x128xf32>
    "tpu.trace_stop"() : () -> ()
    %cst_89 = arith.constant dense<0xFF800000> : vector<2x8xf32>
    %254 = vector.multi_reduction <maximumf>, %253, %cst_89 [2] : vector<2x8x128xf32> to vector<2x8xf32>
    %255 = vector.shape_cast %254 : vector<2x8xf32> to vector<2x8x1xf32>
    %256 = vector.broadcast %255 : vector<2x8x1xf32> to vector<2x8x128xf32>
    %257 = arith.subf %253, %256 : vector<2x8x128xf32>
    %258 = math.exp %257 : vector<2x8x128xf32>
    %cst_90 = arith.constant dense<0.000000e+00> : vector<2x8xf32>
    %259 = vector.multi_reduction <add>, %258, %cst_90 [2] : vector<2x8x128xf32> to vector<2x8xf32>
    %260 = vector.shape_cast %259 : vector<2x8xf32> to vector<2x8x1xf32>
    %261 = tpu.reciprocal %260 {approx = true} : vector<2x8x1xf32> -> vector<2x8x1xf32>
    %262 = vector.broadcast %261 : vector<2x8x1xf32> to vector<2x8x128xf32>
    %263 = arith.mulf %258, %262 : vector<2x8x128xf32>
    %c2_91 = arith.constant 2 : index
    %c0_92 = arith.constant 0 : index
    %c0_93 = arith.constant 0 : index
    %c0_94 = arith.constant 0 : index
    %264 = vector.load %arg24[%c2_91, %c0_92, %c0_93, %c0_94] : memref<4x2x8x128xf32, #tpu.memory_space<vmem>>, vector<1x2x8x128xf32>
    %265 = vector.shape_cast %264 : vector<1x2x8x128xf32> to vector<2x8x128xf32>
    %266 = vector.shape_cast %263 : vector<2x8x128xf32> to vector<1x2x8x128xf32>
    tpu.vector_store %arg24[%c2_91, %c0_92, %c0_93, %c0_94], %266 {strides = array<i32>} : memref<4x2x8x128xf32, #tpu.memory_space<vmem>>, vector<1x2x8x128xf32>,
    %267 = arith.truncf %263 : vector<2x8x128xf32> to vector<2x8x128xbf16>
    "tpu.trace_start"() <{level = 10 : i32, message = "bqk,bkd->bqd"}> : () -> ()
    %cst_95 = arith.constant dense<0.000000e+00> : vector<2x8x32xf32>
    %268 = tpu.matmul %267, %252, %cst_95 {dimension_numbers = #tpu.dot_dimension_numbers<[2], [1], [1], [2], [0, 0, 0, 1, 1, 2], [0], [0]>} : vector<2x8x128xbf16>, vector<2x128x32xbf16>, vector<2x8x32xf32> -> vector<2x8x32xf32>
    "tpu.trace_stop"() : () -> ()
    %269 = vector.shape_cast %268 : vector<2x8x32xf32> to vector<16x32xf32>
    %270 = arith.truncf %269 : vector<16x32xf32> to vector<16x32xbf16>
    %c2_96 = arith.constant 2 : index
    %c0_97 = arith.constant 0 : index
    %c0_98 = arith.constant 0 : index
    %271 = vector.load %arg13[%c2_96, %c0_97, %c0_98] : memref<4x32x128xbf16, #tpu.memory_space<vmem>>, vector<1x32x128xbf16>
    %272 = vector.shape_cast %271 : vector<1x32x128xbf16> to vector<32x128xbf16>
    %cst_99 = arith.constant dense<0.000000e+00> : vector<16x128xf32>
    %273 = tpu.matmul %270, %272, %cst_99 {dimension_numbers = #tpu.dot_dimension_numbers<[1], [0], [0], [1], [0, 0, 1, 1], [], []>} : vector<16x32xbf16>, vector<32x128xbf16>, vector<16x128xf32> -> vector<16x128xf32>
    %274 = arith.addf %243, %273 : vector<16x128xf32>
    %275 = vector.extract_strided_slice %175 {offsets = [0, 96], sizes = [16, 32], strides = [1, 1]} : vector<16x128xf32> to vector<16x32xf32>
    %276 = vector.shape_cast %275 : vector<16x32xf32> to vector<2x8x32xf32>
    %277 = arith.truncf %276 : vector<2x8x32xf32> to vector<2x8x32xbf16>
    %278 = vector.extract_strided_slice %180 {offsets = [0, 96], sizes = [256, 32], strides = [1, 1]} : vector<256x256xf32> to vector<256x32xf32>
    %279 = vector.shape_cast %278 : vector<256x32xf32> to vector<2x128x32xf32>
    %280 = arith.truncf %279 : vector<2x128x32xf32> to vector<2x128x32xbf16>
    %281 = vector.extract_strided_slice %180 {offsets = [0, 224], sizes = [256, 32], strides = [1, 1]} : vector<256x256xf32> to vector<256x32xf32>
    %282 = vector.shape_cast %281 : vector<256x32xf32> to vector<2x128x32xf32>
    %283 = arith.truncf %282 : vector<2x128x32xf32> to vector<2x128x32xbf16>
    "tpu.trace_start"() <{level = 10 : i32, message = "bqd,bkd->bqk"}> : () -> ()
    %cst_100 = arith.constant dense<0.000000e+00> : vector<2x8x128xf32>
    %284 = tpu.matmul %277, %280, %cst_100 {dimension_numbers = #tpu.dot_dimension_numbers<[2], [2], [1], [1], [0, 0, 0, 1, 1, 1], [0], [0]>} : vector<2x8x32xbf16>, vector<2x128x32xbf16>, vector<2x8x128xf32> -> vector<2x8x128xf32>
    "tpu.trace_stop"() : () -> ()
    %cst_101 = arith.constant dense<0xFF800000> : vector<2x8xf32>
    %285 = vector.multi_reduction <maximumf>, %284, %cst_101 [2] : vector<2x8x128xf32> to vector<2x8xf32>
    %286 = vector.shape_cast %285 : vector<2x8xf32> to vector<2x8x1xf32>
    %287 = vector.broadcast %286 : vector<2x8x1xf32> to vector<2x8x128xf32>
    %288 = arith.subf %284, %287 : vector<2x8x128xf32>
    %289 = math.exp %288 : vector<2x8x128xf32>
    %cst_102 = arith.constant dense<0.000000e+00> : vector<2x8xf32>
    %290 = vector.multi_reduction <add>, %289, %cst_102 [2] : vector<2x8x128xf32> to vector<2x8xf32>
    %291 = vector.shape_cast %290 : vector<2x8xf32> to vector<2x8x1xf32>
    %292 = tpu.reciprocal %291 {approx = true} : vector<2x8x1xf32> -> vector<2x8x1xf32>
    %293 = vector.broadcast %292 : vector<2x8x1xf32> to vector<2x8x128xf32>
    %294 = arith.mulf %289, %293 : vector<2x8x128xf32>
    %c3_103 = arith.constant 3 : index
    %c0_104 = arith.constant 0 : index
    %c0_105 = arith.constant 0 : index
    %c0_106 = arith.constant 0 : index
    %295 = vector.load %arg24[%c3_103, %c0_104, %c0_105, %c0_106] : memref<4x2x8x128xf32, #tpu.memory_space<vmem>>, vector<1x2x8x128xf32>
    %296 = vector.shape_cast %295 : vector<1x2x8x128xf32> to vector<2x8x128xf32>
    %297 = vector.shape_cast %294 : vector<2x8x128xf32> to vector<1x2x8x128xf32>
    tpu.vector_store %arg24[%c3_103, %c0_104, %c0_105, %c0_106], %297 {strides = array<i32>} : memref<4x2x8x128xf32, #tpu.memory_space<vmem>>, vector<1x2x8x128xf32>,
    %298 = arith.truncf %294 : vector<2x8x128xf32> to vector<2x8x128xbf16>
    "tpu.trace_start"() <{level = 10 : i32, message = "bqk,bkd->bqd"}> : () -> ()
    %cst_107 = arith.constant dense<0.000000e+00> : vector<2x8x32xf32>
    %299 = tpu.matmul %298, %283, %cst_107 {dimension_numbers = #tpu.dot_dimension_numbers<[2], [1], [1], [2], [0, 0, 0, 1, 1, 2], [0], [0]>} : vector<2x8x128xbf16>, vector<2x128x32xbf16>, vector<2x8x32xf32> -> vector<2x8x32xf32>
    "tpu.trace_stop"() : () -> ()
    %300 = vector.shape_cast %299 : vector<2x8x32xf32> to vector<16x32xf32>
    %301 = arith.truncf %300 : vector<16x32xf32> to vector<16x32xbf16>
    %c3_108 = arith.constant 3 : index
    %c0_109 = arith.constant 0 : index
    %c0_110 = arith.constant 0 : index
    %302 = vector.load %arg13[%c3_108, %c0_109, %c0_110] : memref<4x32x128xbf16, #tpu.memory_space<vmem>>, vector<1x32x128xbf16>
    %303 = vector.shape_cast %302 : vector<1x32x128xbf16> to vector<32x128xbf16>
    %cst_111 = arith.constant dense<0.000000e+00> : vector<16x128xf32>
    %304 = tpu.matmul %301, %303, %cst_111 {dimension_numbers = #tpu.dot_dimension_numbers<[1], [0], [0], [1], [0, 0, 1, 1], [], []>} : vector<16x32xbf16>, vector<32x128xbf16>, vector<16x128xf32> -> vector<16x128xf32>
    %305 = arith.addf %274, %304 : vector<16x128xf32>
    %c0_112 = arith.constant 0 : index
    %c0_113 = arith.constant 0 : index
    %306 = vector.load %arg14[%c0_112, %c0_113] : memref<1x128xf32, #tpu.memory_space<vmem>>, vector<1x128xf32>
    %307 = vector.broadcast %306 : vector<1x128xf32> to vector<16x128xf32>
    %308 = arith.addf %305, %307 : vector<16x128xf32>
    %309 = arith.addf %166, %308 : vector<16x128xf32>
    %c0_114 = arith.constant 0 : index
    %c0_115 = arith.constant 0 : index
    %310 = vector.load %arg15[%c0_114, %c0_115] : memref<1x128xf32, #tpu.memory_space<vmem>>, vector<1x128xf32>
    %c0_116 = arith.constant 0 : index
    %c0_117 = arith.constant 0 : index
    %311 = vector.load %arg16[%c0_116, %c0_117] : memref<1x128xf32, #tpu.memory_space<vmem>>, vector<1x128xf32>
    %cst_118 = arith.constant dense<0.000000e+00> : vector<16xf32>
    %312 = vector.multi_reduction <add>, %309, %cst_118 [1] : vector<16x128xf32> to vector<16xf32>
    %313 = vector.shape_cast %312 : vector<16xf32> to vector<16x1xf32>
    %cst_119 = arith.constant 1.280000e+02 : f32
    %314 = vector.broadcast %cst_119 : f32 to vector<16x1xf32>
    %315 = arith.divf %313, %314 : vector<16x1xf32>
    %316 = vector.broadcast %315 : vector<16x1xf32> to vector<16x128xf32>
    %317 = arith.subf %309, %316 : vector<16x128xf32>
    %318 = arith.mulf %317, %317 : vector<16x128xf32>
    %cst_120 = arith.constant dense<0.000000e+00> : vector<16xf32>
    %319 = vector.multi_reduction <add>, %318, %cst_120 [1] : vector<16x128xf32> to vector<16xf32>
    %320 = vector.shape_cast %319 : vector<16xf32> to vector<16x1xf32>
    %cst_121 = arith.constant 1.270000e+02 : f32
    %321 = vector.broadcast %cst_121 : f32 to vector<16x1xf32>
    %322 = arith.divf %320, %321 : vector<16x1xf32>
    %323 = vector.broadcast %310 : vector<1x128xf32> to vector<16x128xf32>
    %324 = arith.mulf %323, %317 : vector<16x128xf32>
    %325 = math.sqrt %322 : vector<16x1xf32>
    %cst_122 = arith.constant 9.99999997E-7 : f32
    %326 = vector.broadcast %cst_122 : f32 to vector<16x1xf32>
    %327 = arith.addf %325, %326 : vector<16x1xf32>
    %cst_123 = arith.constant 1.000000e+00 : f32
    %328 = vector.broadcast %cst_123 : f32 to vector<16x1xf32>
    %329 = arith.divf %328, %327 : vector<16x1xf32>
    %330 = vector.broadcast %329 : vector<16x1xf32> to vector<16x128xf32>
    %331 = arith.mulf %324, %330 : vector<16x128xf32>
    %332 = vector.broadcast %311 : vector<1x128xf32> to vector<16x128xf32>
    %333 = arith.addf %331, %332 : vector<16x128xf32>
    %334 = arith.truncf %333 : vector<16x128xf32> to vector<16x128xbf16>
    %c0_124 = arith.constant 0 : index
    %c0_125 = arith.constant 0 : index
    %335 = vector.load %arg17[%c0_124, %c0_125] : memref<128x256xbf16, #tpu.memory_space<vmem>>, vector<128x256xbf16>
    %cst_126 = arith.constant dense<0.000000e+00> : vector<16x256xf32>
    %336 = tpu.matmul %334, %335, %cst_126 {dimension_numbers = #tpu.dot_dimension_numbers<[1], [0], [0], [1], [0, 0, 1, 1], [], []>} : vector<16x128xbf16>, vector<128x256xbf16>, vector<16x256xf32> -> vector<16x256xf32>
    %c0_127 = arith.constant 0 : index
    %c0_128 = arith.constant 0 : index
    %337 = vector.load %arg18[%c0_127, %c0_128] : memref<1x256xf32, #tpu.memory_space<vmem>>, vector<1x256xf32>
    %338 = vector.broadcast %337 : vector<1x256xf32> to vector<16x256xf32>
    %339 = arith.addf %336, %338 : vector<16x256xf32>
    %cst_129 = arith.constant 0.000000e+00 : f32
    %340 = vector.broadcast %cst_129 : f32 to vector<16x256xf32>
    %341 = arith.maximumf %339, %340 : vector<16x256xf32>
    %342 = arith.truncf %341 : vector<16x256xf32> to vector<16x256xbf16>
    %c0_130 = arith.constant 0 : index
    %c0_131 = arith.constant 0 : index
    %343 = vector.load %arg19[%c0_130, %c0_131] : memref<256x128xbf16, #tpu.memory_space<vmem>>, vector<256x128xbf16>
    %cst_132 = arith.constant dense<0.000000e+00> : vector<16x128xf32>
    %344 = tpu.matmul %342, %343, %cst_132 {dimension_numbers = #tpu.dot_dimension_numbers<[1], [0], [0], [1], [0, 0, 1, 1], [], []>} : vector<16x256xbf16>, vector<256x128xbf16>, vector<16x128xf32> -> vector<16x128xf32>
    %c0_133 = arith.constant 0 : index
    %c0_134 = arith.constant 0 : index
    %345 = vector.load %arg20[%c0_133, %c0_134] : memref<1x128xf32, #tpu.memory_space<vmem>>, vector<1x128xf32>
    %346 = vector.broadcast %345 : vector<1x128xf32> to vector<16x128xf32>
    %347 = arith.addf %344, %346 : vector<16x128xf32>
    %348 = arith.addf %333, %347 : vector<16x128xf32>
    %c0_135 = arith.constant 0 : index
    %c0_136 = arith.constant 0 : index
    %349 = vector.load %arg21[%c0_135, %c0_136] : memref<1x128xf32, #tpu.memory_space<vmem>>, vector<1x128xf32>
    %c0_137 = arith.constant 0 : index
    %c0_138 = arith.constant 0 : index
    %350 = vector.load %arg22[%c0_137, %c0_138] : memref<1x128xf32, #tpu.memory_space<vmem>>, vector<1x128xf32>
    %cst_139 = arith.constant dense<0.000000e+00> : vector<16xf32>
    %351 = vector.multi_reduction <add>, %348, %cst_139 [1] : vector<16x128xf32> to vector<16xf32>
    %352 = vector.shape_cast %351 : vector<16xf32> to vector<16x1xf32>
    %cst_140 = arith.constant 1.280000e+02 : f32
    %353 = vector.broadcast %cst_140 : f32 to vector<16x1xf32>
    %354 = arith.divf %352, %353 : vector<16x1xf32>
    %355 = vector.broadcast %354 : vector<16x1xf32> to vector<16x128xf32>
    %356 = arith.subf %348, %355 : vector<16x128xf32>
    %357 = arith.mulf %356, %356 : vector<16x128xf32>
    %cst_141 = arith.constant dense<0.000000e+00> : vector<16xf32>
    %358 = vector.multi_reduction <add>, %357, %cst_141 [1] : vector<16x128xf32> to vector<16xf32>
    %359 = vector.shape_cast %358 : vector<16xf32> to vector<16x1xf32>
    %cst_142 = arith.constant 1.270000e+02 : f32
    %360 = vector.broadcast %cst_142 : f32 to vector<16x1xf32>
    %361 = arith.divf %359, %360 : vector<16x1xf32>
    %362 = vector.broadcast %349 : vector<1x128xf32> to vector<16x128xf32>
    %363 = arith.mulf %362, %356 : vector<16x128xf32>
    %364 = math.sqrt %361 : vector<16x1xf32>
    %cst_143 = arith.constant 9.99999997E-7 : f32
    %365 = vector.broadcast %cst_143 : f32 to vector<16x1xf32>
    %366 = arith.addf %364, %365 : vector<16x1xf32>
    %cst_144 = arith.constant 1.000000e+00 : f32
    %367 = vector.broadcast %cst_144 : f32 to vector<16x1xf32>
    %368 = arith.divf %367, %366 : vector<16x1xf32>
    %369 = vector.broadcast %368 : vector<16x1xf32> to vector<16x128xf32>
    %370 = arith.mulf %363, %369 : vector<16x128xf32>
    %371 = vector.broadcast %350 : vector<1x128xf32> to vector<16x128xf32>
    %372 = arith.addf %370, %371 : vector<16x128xf32>
    %373 = vector.shape_cast %372 : vector<16x128xf32> to vector<2x8x128xf32>
    %c0_145 = arith.constant 0 : index
    %c0_146 = arith.constant 0 : index
    %c0_147 = arith.constant 0 : index
    %374 = vector.load %arg23[%c0_145, %c0_146, %c0_147] : memref<2x8x128xf32, #tpu.memory_space<vmem>>, vector<2x8x128xf32>
    tpu.vector_store %arg23[%c0_145, %c0_146, %c0_147], %373 {strides = array<i32>} : memref<2x8x128xf32, #tpu.memory_space<vmem>>, vector<2x8x128xf32>,
    return
  }
  func.func @transform_0(%arg0: i32) -> (i32, i32, i32) {
    %c0_i32 = arith.constant 0 : i32
    %c0_i32_0 = arith.constant 0 : i32
    %c0_i32_1 = arith.constant 0 : i32
    %c0_i32_2 = arith.constant 0 : i32
    return %c0_i32, %c0_i32_0, %c0_i32_1 : i32, i32, i32
  }
  func.func @transform_1(%arg0: i32) -> (i32, i32, i32) {
    %c0_i32 = arith.constant 0 : i32
    %c0_i32_0 = arith.constant 0 : i32
    %c0_i32_1 = arith.constant 0 : i32
    %c0_i32_2 = arith.constant 0 : i32
    return %c0_i32, %c0_i32_0, %c0_i32_1 : i32, i32, i32
  }
  func.func @transform_2(%arg0: i32) -> (i32, i32) {
    %c0_i32 = arith.constant 0 : i32
    %c0_i32_0 = arith.constant 0 : i32
    %c0_i32_1 = arith.constant 0 : i32
    return %c0_i32, %c0_i32_0 : i32, i32
  }
  func.func @transform_3(%arg0: i32) -> (i32, i32) {
    %c0_i32 = arith.constant 0 : i32
    %c0_i32_0 = arith.constant 0 : i32
    %c0_i32_1 = arith.constant 0 : i32
    return %c0_i32, %c0_i32_0 : i32, i32
  }
  func.func @transform_4(%arg0: i32) -> (i32, i32, i32) {
    %c0_i32 = arith.constant 0 : i32
    %c0_i32_0 = arith.constant 0 : i32
    %c0_i32_1 = arith.constant 0 : i32
    %c0_i32_2 = arith.constant 0 : i32
    return %c0_i32, %c0_i32_0, %c0_i32_1 : i32, i32, i32
  }
  func.func @transform_5(%arg0: i32) -> (i32, i32) {
    %c0_i32 = arith.constant 0 : i32
    %c0_i32_0 = arith.constant 0 : i32
    %c0_i32_1 = arith.constant 0 : i32
    return %c0_i32, %c0_i32_0 : i32, i32
  }
  func.func @transform_6(%arg0: i32) -> (i32, i32) {
    %c0_i32 = arith.constant 0 : i32
    %c0_i32_0 = arith.constant 0 : i32
    %c0_i32_1 = arith.constant 0 : i32
    return %c0_i32, %c0_i32_0 : i32, i32
  }
  func.func @transform_7(%arg0: i32) -> (i32, i32) {
    %c0_i32 = arith.constant 0 : i32
    %c0_i32_0 = arith.constant 0 : i32
    %c0_i32_1 = arith.constant 0 : i32
    return %c0_i32, %c0_i32_0 : i32, i32
  }
  func.func @transform_8(%arg0: i32) -> (i32, i32) {
    %c0_i32 = arith.constant 0 : i32
    %c0_i32_0 = arith.constant 0 : i32
    %c0_i32_1 = arith.constant 0 : i32
    return %c0_i32, %c0_i32_0 : i32, i32
  }
  func.func @transform_9(%arg0: i32) -> (i32, i32) {
    %c0_i32 = arith.constant 0 : i32
    %c0_i32_0 = arith.constant 0 : i32
    %c0_i32_1 = arith.constant 0 : i32
    return %c0_i32, %c0_i32_0 : i32, i32
  }
  func.func @transform_10(%arg0: i32) -> (i32, i32) {
    %c0_i32 = arith.constant 0 : i32
    %c0_i32_0 = arith.constant 0 : i32
    %c0_i32_1 = arith.constant 0 : i32
    return %c0_i32, %c0_i32_0 : i32, i32
  }
  func.func @transform_11(%arg0: i32) -> (i32, i32) {
    %c0_i32 = arith.constant 0 : i32
    %c0_i32_0 = arith.constant 0 : i32
    %c0_i32_1 = arith.constant 0 : i32
    return %c0_i32, %c0_i32_0 : i32, i32
  }
  func.func @transform_12(%arg0: i32) -> (i32, i32, i32) {
    %c0_i32 = arith.constant 0 : i32
    %c0_i32_0 = arith.constant 0 : i32
    %c0_i32_1 = arith.constant 0 : i32
    %c0_i32_2 = arith.constant 0 : i32
    return %c0_i32, %c0_i32_0, %c0_i32_1 : i32, i32, i32
  }
  func.func @transform_13(%arg0: i32) -> (i32, i32) {
    %c0_i32 = arith.constant 0 : i32
    %c0_i32_0 = arith.constant 0 : i32
    %c0_i32_1 = arith.constant 0 : i32
    return %c0_i32, %c0_i32_0 : i32, i32
  }
  func.func @transform_14(%arg0: i32) -> (i32, i32) {
    %c0_i32 = arith.constant 0 : i32
    %c0_i32_0 = arith.constant 0 : i32
    %c0_i32_1 = arith.constant 0 : i32
    return %c0_i32, %c0_i32_0 : i32, i32
  }
  func.func @transform_15(%arg0: i32) -> (i32, i32) {
    %c0_i32 = arith.constant 0 : i32
    %c0_i32_0 = arith.constant 0 : i32
    %c0_i32_1 = arith.constant 0 : i32
    return %c0_i32, %c0_i32_0 : i32, i32
  }
  func.func @transform_16(%arg0: i32) -> (i32, i32) {
    %c0_i32 = arith.constant 0 : i32
    %c0_i32_0 = arith.constant 0 : i32
    %c0_i32_1 = arith.constant 0 : i32
    return %c0_i32, %c0_i32_0 : i32, i32
  }
  func.func @transform_17(%arg0: i32) -> (i32, i32) {
    %c0_i32 = arith.constant 0 : i32
    %c0_i32_0 = arith.constant 0 : i32
    %c0_i32_1 = arith.constant 0 : i32
    return %c0_i32, %c0_i32_0 : i32, i32
  }
  func.func @transform_18(%arg0: i32) -> (i32, i32) {
    %c0_i32 = arith.constant 0 : i32
    %c0_i32_0 = arith.constant 0 : i32
    %c0_i32_1 = arith.constant 0 : i32
    return %c0_i32, %c0_i32_0 : i32, i32
  }
  func.func @transform_19(%arg0: i32) -> (i32, i32) {
    %c0_i32 = arith.constant 0 : i32
    %c0_i32_0 = arith.constant 0 : i32
    %c0_i32_1 = arith.constant 0 : i32
    return %c0_i32, %c0_i32_0 : i32, i32
  }
  func.func @transform_20(%arg0: i32) -> (i32, i32) {
    %c0_i32 = arith.constant 0 : i32
    %c0_i32_0 = arith.constant 0 : i32
    %c0_i32_1 = arith.constant 0 : i32
    return %c0_i32, %c0_i32_0 : i32, i32
  }
  func.func @transform_21(%arg0: i32) -> (i32, i32) {
    %c0_i32 = arith.constant 0 : i32
    %c0_i32_0 = arith.constant 0 : i32
    %c0_i32_1 = arith.constant 0 : i32
    return %c0_i32, %c0_i32_0 : i32, i32
  }
  func.func @transform_22(%arg0: i32) -> (i32, i32, i32) {
    %c0_i32 = arith.constant 0 : i32
    %c0_i32_0 = arith.constant 0 : i32
    %c0_i32_1 = arith.constant 0 : i32
    %c0_i32_2 = arith.constant 0 : i32
    return %c0_i32, %c0_i32_0, %c0_i32_1 : i32, i32, i32
  }
  func.func @transform_23(%arg0: i32) -> (i32, i32, i32, i32) {
    %c0_i32 = arith.constant 0 : i32
    %c0_i32_0 = arith.constant 0 : i32
    %c0_i32_1 = arith.constant 0 : i32
    %c0_i32_2 = arith.constant 0 : i32
    %c0_i32_3 = arith.constant 0 : i32
    return %c0_i32, %c0_i32_0, %c0_i32_1, %c0_i32_2 : i32, i32, i32, i32
  }
}

</mosaic_0001>

<llo_original>
// kernel: tpu_custom_call.1
$region0: #{tpu_custom_call.1}
  #allocation0 [shape = 'u32[]', space=smem, size = 0x4, offset = 0x4, fixed_abs, tag = 'smem constant byte address 0x4 - core index']
  #allocation1 [shape = 'u32[72,128]{1,0:T(1,128)}', space=vmem, size = 0x9000, scoped, tag = 'internal scratch']
  %s0 = inlined_call_operand.hbm [shape: f32[2,8,128], index: 0, kind: input, shape index: {}]
  %s1 = inlined_call_operand.hbm [shape: f32[2,128,128], index: 1, kind: input, shape index: {}]
  %s2 = inlined_call_operand.hbm [shape: bf16[128,384], index: 2, kind: input, shape index: {}]
  %s3 = inlined_call_operand.hbm [shape: f32[1,384], index: 3, kind: input, shape index: {}]
  %s4 = inlined_call_operand.hbm [shape: bf16[4,32,128], index: 4, kind: input, shape index: {}]
  %s5 = inlined_call_operand.hbm [shape: f32[1,128], index: 5, kind: input, shape index: {}]
  %s6 = inlined_call_operand.vmem [shape: f32[1,128], index: 6, kind: input, shape index: {}]
  %s7 = inlined_call_operand.vmem [shape: f32[1,128], index: 7, kind: input, shape index: {}]
  %s8 = inlined_call_operand.hbm [shape: bf16[128,128], index: 8, kind: input, shape index: {}]
  %s9 = inlined_call_operand.vmem [shape: f32[1,128], index: 9, kind: input, shape index: {}]
  %s10 = inlined_call_operand.hbm [shape: bf16[128,256], index: 10, kind: input, shape index: {}]
  %s11 = inlined_call_operand.vmem [shape: f32[1,256], index: 11, kind: input, shape index: {}]
  %s12 = inlined_call_operand.hbm [shape: bf16[4,32,128], index: 12, kind: input, shape index: {}]
  %s13 = inlined_call_operand.vmem [shape: f32[1,128], index: 13, kind: input, shape index: {}]
  %s14 = inlined_call_operand.vmem [shape: f32[1,128], index: 14, kind: input, shape index: {}]
  %s15 = inlined_call_operand.vmem [shape: f32[1,128], index: 15, kind: input, shape index: {}]
  %s16 = inlined_call_operand.hbm [shape: bf16[128,256], index: 16, kind: input, shape index: {}]
  %s17 = inlined_call_operand.vmem [shape: f32[1,256], index: 17, kind: input, shape index: {}]
  %s18 = inlined_call_operand.hbm [shape: bf16[256,128], index: 18, kind: input, shape index: {}]
  %s19 = inlined_call_operand.vmem [shape: f32[1,128], index: 19, kind: input, shape index: {}]
  %s20 = inlined_call_operand.vmem [shape: f32[1,128], index: 20, kind: input, shape index: {}]
  %s21 = inlined_call_operand.vmem [shape: f32[1,128], index: 21, kind: input, shape index: {}]
  %s22 = inlined_call_operand.hbm [shape: f32[2,8,128], index: 22, kind: output, shape index: {0}]
  %s23 = inlined_call_operand.hbm [shape: f32[4,2,8,128], index: 23, kind: output, shape index: {1}]
  %24 = xla_tuple %s22, %s23
  %s25 = sld [smem:[#allocation0]]
  $region150: #{tpu_custom_call.1} parent=0
    _
  %s27 = ssub.s32 1, %s25
  %s28 = scalar_select 0, %s27, %s25
  $region1: #{tpu_custom_call.1} parent=0
    #allocation2 [shape = 'u8[8192]{0}', space=vmem, size = 0x2000, scoped, tag = 'input window, operand 0, single buffered']
    #allocation3 [shape = 's32[1]{0}', space=sflag, size = 0x4, scoped, tag = 'scoped memory for tpu_custom_call.1']
    #allocation4 [shape = 's32[1]{0}', space=sflag, size = 0x4, scoped, tag = 'scoped memory for tpu_custom_call.1']
    #allocation5 [shape = 'u8[131072]{0}', space=vmem, size = 0x20000, scoped, tag = 'input window, operand 1, single buffered']
    #allocation6 [shape = 's32[1]{0}', space=sflag, size = 0x4, scoped, tag = 'scoped memory for tpu_custom_call.1']
    #allocation7 [shape = 'u8[98304]{0}', space=vmem, size = 0x18000, scoped, tag = 'input window, operand 2, single buffered']
    #allocation8 [shape = 'u8[1536]{0}', space=vmem, size = 0x800, scoped, tag = 'input window, operand 3, single buffered']
    #allocation9 [shape = 's32[1]{0}', space=sflag, size = 0x4, scoped, tag = 'scoped memory for tpu_custom_call.1']
    #allocation10 [shape = 'u8[32768]{0}', space=vmem, size = 0x8000, scoped, tag = 'input window, operand 4, single buffered']
    #allocation11 [shape = 'u8[512]{0}', space=vmem, size = 0x400, scoped, tag = 'input window, operand 5, single buffered']
    #allocation12 [shape = 's32[1]{0}', space=sflag, size = 0x4, scoped, tag = 'scoped memory for tpu_custom_call.1']
    #allocation13 [shape = 'u8[32768]{0}', space=vmem, size = 0x8000, scoped, tag = 'input window, operand 8, single buffered']
    #allocation14 [shape = 'u8[65536]{0}', space=vmem, size = 0x10000, scoped, tag = 'input window, operand 10, single buffered']
    #allocation15 [shape = 's32[1]{0}', space=sflag, size = 0x4, scoped, tag = 'scoped memory for tpu_custom_call.1']
    #allocation16 [shape = 'u8[32768]{0}', space=vmem, size = 0x8000, scoped, tag = 'input window, operand 12, single buffered']
    #allocation17 [shape = 'u8[65536]{0}', space=vmem, size = 0x10000, scoped, tag = 'input window, operand 16, single buffered']
    #allocation18 [shape = 's32[1]{0}', space=sflag, size = 0x4, scoped, tag = 'scoped memory for tpu_custom_call.1']
    #allocation19 [shape = 'u8[65536]{0}', space=vmem, size = 0x10000, scoped, tag = 'input window, operand 18, single buffered']
    #allocation20 [shape = 'u8[8192]{0}', space=vmem, size = 0x2000, scoped, tag = 'output window, operand 0, single buffered']
    #allocation21 [shape = 'u8[32768]{0}', space=vmem, size = 0x8000, scoped, tag = 'output window, operand 1, single buffered']
    #allocation22 [shape = 's32[1]{0}', space=sflag, size = 0x4, scoped, tag = 'scoped memory for tpu_custom_call.1']
    %29 = vsyncpa [#allocation3], 0
    %30 = vsyncpa [#allocation6], 0
    %31 = vsyncpa [#allocation9], 0
    %32 = vsyncpa [#allocation12], 0
    %33 = vsyncpa [#allocation15], 0
    %34 = vsyncpa [#allocation18], 0
    %35 = vsyncpa [#allocation4], 0
    %36 = vsyncpa [#allocation22], 0
    // Predicated region
    $region2: #{tpu_custom_call.1} parent=1 // pred_check
      _
    $region3: #{tpu_custom_call.1} parent=1 // pred_check_branch
      %38 = sbr.rel (0) target = $region5
    $region4: #{tpu_custom_call.1} parent=1 // pred_region
      %40 = vsyncadd [#allocation3], 0
      %s41 = sshll.u32 %s0, 4
      %s42 = int_to_ptr.hbm [resolvable:$true] %s41
      %s43 = sshll.u32 [#allocation2], 4
      %s44 = int_to_ptr.vmem [resolvable:$true] %s43
      %49 = dma.hbm_to_vmem [thread:$0]  %s42, 256, %s44, [#allocation3], 128, 128, 8
    $region5: #{tpu_custom_call.1} parent=1 // pred_fallthru
      _
    // Predicated region
    $region6: #{tpu_custom_call.1} parent=1 // pred_check
      _
    $region7: #{tpu_custom_call.1} parent=1 // pred_check_branch
      %51 = sbr.rel (0) target = $region9
    $region8: #{tpu_custom_call.1} parent=1 // pred_region
      %53 = vsyncadd [#allocation6], 0
      %s54 = sshll.u32 %s1, 4
      %s55 = int_to_ptr.hbm [resolvable:$true] %s54
      %s56 = sshll.u32 [#allocation5], 4
      %s57 = int_to_ptr.vmem [resolvable:$true] %s56
      %62 = dma.hbm_to_vmem [thread:$0]  %s55, 4096, %s57, [#allocation6], 128, 128, 8
    $region9: #{tpu_custom_call.1} parent=1 // pred_fallthru
      _
    // Predicated region
    $region10: #{tpu_custom_call.1} parent=1 // pred_check
      _
    $region11: #{tpu_custom_call.1} parent=1 // pred_check_branch
      %64 = sbr.rel (0) target = $region13
    $region12: #{tpu_custom_call.1} parent=1 // pred_region
      %66 = vsyncadd [#allocation6], 0
      %s67 = sshll.u32 %s2, 4
      %s68 = int_to_ptr.hbm [resolvable:$true] %s67
      %s69 = sshll.u32 [#allocation7], 4
      %s70 = int_to_ptr.vmem [resolvable:$true] %s69
      %75 = dma.hbm_to_vmem [thread:$0]  %s68, 3072, %s70, [#allocation6], 192, 192, 12
    $region13: #{tpu_custom_call.1} parent=1 // pred_fallthru
      _
    // Predicated region
    $region14: #{tpu_custom_call.1} parent=1 // pred_check
      _
    $region15: #{tpu_custom_call.1} parent=1 // pred_check_branch
      %77 = sbr.rel (0) target = $region17
    $region16: #{tpu_custom_call.1} parent=1 // pred_region
      %79 = vsyncadd [#allocation9], 0
      %s81 = sshll.u32 %s3, 4
      %s82 = int_to_ptr.hbm [resolvable:$true] %s81
      %s83 = sshll.u32 [#allocation8], 4
      %s84 = int_to_ptr.vmem [resolvable:$true] %s83
      %86 = dma.hbm_to_vmem [thread:$0]  %s82, 48, %s84, [#allocation9]
    $region17: #{tpu_custom_call.1} parent=1 // pred_fallthru
      _
    // Predicated region
    $region18: #{tpu_custom_call.1} parent=1 // pred_check
      _
    $region19: #{tpu_custom_call.1} parent=1 // pred_check_branch
      %88 = sbr.rel (0) target = $region21
    $region20: #{tpu_custom_call.1} parent=1 // pred_region
      %90 = vsyncadd [#allocation9], 0
      %s91 = sshll.u32 %s4, 4
      %s92 = int_to_ptr.hbm [resolvable:$true] %s91
      %s93 = sshll.u32 [#allocation10], 4
      %s94 = int_to_ptr.vmem [resolvable:$true] %s93
      %99 = dma.hbm_to_vmem [thread:$0]  %s92, 1024, %s94, [#allocation9], 64, 64, 4
    $region21: #{tpu_custom_call.1} parent=1 // pred_fallthru
      _
    // Predicated region
    $region22: #{tpu_custom_call.1} parent=1 // pred_check
      _
    $region23: #{tpu_custom_call.1} parent=1 // pred_check_branch
      %101 = sbr.rel (0) target = $region25
    $region24: #{tpu_custom_call.1} parent=1 // pred_region
      %103 = vsyncadd [#allocation12], 0
      %s105 = sshll.u32 %s5, 4
      %s106 = int_to_ptr.hbm [resolvable:$true] %s105
      %s107 = sshll.u32 [#allocation11], 4
      %s108 = int_to_ptr.vmem [resolvable:$true] %s107
      %110 = dma.hbm_to_vmem [thread:$0]  %s106, 16, %s108, [#allocation12]
    $region25: #{tpu_custom_call.1} parent=1 // pred_fallthru
      _
    // Predicated region
    $region26: #{tpu_custom_call.1} parent=1 // pred_check
      _
    $region27: #{tpu_custom_call.1} parent=1 // pred_check_branch
      %112 = sbr.rel (0) target = $region29
    $region28: #{tpu_custom_call.1} parent=1 // pred_region
      _
    $region29: #{tpu_custom_call.1} parent=1 // pred_fallthru
      _
    // Predicated region
    $region30: #{tpu_custom_call.1} parent=1 // pred_check
      _
    $region31: #{tpu_custom_call.1} parent=1 // pred_check_branch
      %114 = sbr.rel (0) target = $region33
    $region32: #{tpu_custom_call.1} parent=1 // pred_region
      _
    $region33: #{tpu_custom_call.1} parent=1 // pred_fallthru
      _
    // Predicated region
    $region34: #{tpu_custom_call.1} parent=1 // pred_check
      _
    $region35: #{tpu_custom_call.1} parent=1 // pred_check_branch
      %116 = sbr.rel (0) target = $region37
    $region36: #{tpu_custom_call.1} parent=1 // pred_region
      %118 = vsyncadd [#allocation12], 0
      %s119 = sshll.u32 %s8, 4
      %s120 = int_to_ptr.hbm [resolvable:$true] %s119
      %s121 = sshll.u32 [#allocation13], 4
      %s122 = int_to_ptr.vmem [resolvable:$true] %s121
      %127 = dma.hbm_to_vmem [thread:$0]  %s120, 1024, %s122, [#allocation12], 64, 64, 4
    $region37: #{tpu_custom_call.1} parent=1 // pred_fallthru
      _
    // Predicated region
    $region38: #{tpu_custom_call.1} parent=1 // pred_check
      _
    $region39: #{tpu_custom_call.1} parent=1 // pred_check_branch
      %129 = sbr.rel (0) target = $region41
    $region40: #{tpu_custom_call.1} parent=1 // pred_region
      _
    $region41: #{tpu_custom_call.1} parent=1 // pred_fallthru
      _
    // Predicated region
    $region42: #{tpu_custom_call.1} parent=1 // pred_check
      _
    $region43: #{tpu_custom_call.1} parent=1 // pred_check_branch
      %131 = sbr.rel (0) target = $region45
    $region44: #{tpu_custom_call.1} parent=1 // pred_region
      %133 = vsyncadd [#allocation15], 0
      %s134 = sshll.u32 %s10, 4
      %s135 = int_to_ptr.hbm [resolvable:$true] %s134
      %s136 = sshll.u32 [#allocation14], 4
      %s137 = int_to_ptr.vmem [resolvable:$true] %s136
      %142 = dma.hbm_to_vmem [thread:$0]  %s135, 2048, %s137, [#allocation15], 128, 128, 8
    $region45: #{tpu_custom_call.1} parent=1 // pred_fallthru
      _
    // Predicated region
    $region46: #{tpu_custom_call.1} parent=1 // pred_check
      _
    $region47: #{tpu_custom_call.1} parent=1 // pred_check_branch
      %144 = sbr.rel (0) target = $region49
    $region48: #{tpu_custom_call.1} parent=1 // pred_region
      _
    $region49: #{tpu_custom_call.1} parent=1 // pred_fallthru
      _
    // Predicated region
    $region50: #{tpu_custom_call.1} parent=1 // pred_check
      _
    $region51: #{tpu_custom_call.1} parent=1 // pred_check_branch
      %146 = sbr.rel (0) target = $region53
    $region52: #{tpu_custom_call.1} parent=1 // pred_region
      %148 = vsyncadd [#allocation15], 0
      %s149 = sshll.u32 %s12, 4
      %s150 = int_to_ptr.hbm [resolvable:$true] %s149
      %s151 = sshll.u32 [#allocation16], 4
      %s152 = int_to_ptr.vmem [resolvable:$true] %s151
      %157 = dma.hbm_to_vmem [thread:$0]  %s150, 1024, %s152, [#allocation15], 64, 64, 4
    $region53: #{tpu_custom_call.1} parent=1 // pred_fallthru
      _
    // Predicated region
    $region54: #{tpu_custom_call.1} parent=1 // pred_check
      _
    $region55: #{tpu_custom_call.1} parent=1 // pred_check_branch
      %159 = sbr.rel (0) target = $region57
    $region56: #{tpu_custom_call.1} parent=1 // pred_region
      _
    $region57: #{tpu_custom_call.1} parent=1 // pred_fallthru
      _
    // Predicated region
    $region58: #{tpu_custom_call.1} parent=1 // pred_check
      _
    $region59: #{tpu_custom_call.1} parent=1 // pred_check_branch
      %161 = sbr.rel (0) target = $region61
    $region60: #{tpu_custom_call.1} parent=1 // pred_region
      _
    $region61: #{tpu_custom_call.1} parent=1 // pred_fallthru
      _
    // Predicated region
    $region62: #{tpu_custom_call.1} parent=1 // pred_check
      _
    $region63: #{tpu_custom_call.1} parent=1 // pred_check_branch
      %163 = sbr.rel (0) target = $region65
    $region64: #{tpu_custom_call.1} parent=1 // pred_region
      _
    $region65: #{tpu_custom_call.1} parent=1 // pred_fallthru
      _
    // Predicated region
    $region66: #{tpu_custom_call.1} parent=1 // pred_check
      _
    $region67: #{tpu_custom_call.1} parent=1 // pred_check_branch
      %165 = sbr.rel (0) target = $region69
    $region68: #{tpu_custom_call.1} parent=1 // pred_region
      %167 = vsyncadd [#allocation18], 0
      %s168 = sshll.u32 %s16, 4
      %s169 = int_to_ptr.hbm [resolvable:$true] %s168
      %s170 = sshll.u32 [#allocation17], 4
      %s171 = int_to_ptr.vmem [resolvable:$true] %s170
      %176 = dma.hbm_to_vmem [thread:$0]  %s169, 2048, %s171, [#allocation18], 128, 128, 8
    $region69: #{tpu_custom_call.1} parent=1 // pred_fallthru
      _
    // Predicated region
    $region70: #{tpu_custom_call.1} parent=1 // pred_check
      _
    $region71: #{tpu_custom_call.1} parent=1 // pred_check_branch
      %178 = sbr.rel (0) target = $region73
    $region72: #{tpu_custom_call.1} parent=1 // pred_region
      _
    $region73: #{tpu_custom_call.1} parent=1 // pred_fallthru
      _
    // Predicated region
    $region74: #{tpu_custom_call.1} parent=1 // pred_check
      _
    $region75: #{tpu_custom_call.1} parent=1 // pred_check_branch
      %180 = sbr.rel (0) target = $region77
    $region76: #{tpu_custom_call.1} parent=1 // pred_region
      %182 = vsyncadd [#allocation18], 0
      %s183 = sshll.u32 %s18, 4
      %s184 = int_to_ptr.hbm [resolvable:$true] %s183
      %s185 = sshll.u32 [#allocation19], 4
      %s186 = int_to_ptr.vmem [resolvable:$true] %s185
      %191 = dma.hbm_to_vmem [thread:$0]  %s184, 2048, %s186, [#allocation18], 64, 64, 4
    $region77: #{tpu_custom_call.1} parent=1 // pred_fallthru
      _
    // Predicated region
    $region78: #{tpu_custom_call.1} parent=1 // pred_check
      _
    $region79: #{tpu_custom_call.1} parent=1 // pred_check_branch
      %193 = sbr.rel (0) target = $region81
    $region80: #{tpu_custom_call.1} parent=1 // pred_region
      _
    $region81: #{tpu_custom_call.1} parent=1 // pred_fallthru
      _
    // Predicated region
    $region82: #{tpu_custom_call.1} parent=1 // pred_check
      _
    $region83: #{tpu_custom_call.1} parent=1 // pred_check_branch
      %195 = sbr.rel (0) target = $region85
    $region84: #{tpu_custom_call.1} parent=1 // pred_region
      _
    $region85: #{tpu_custom_call.1} parent=1 // pred_fallthru
      _
    // Predicated region
    $region86: #{tpu_custom_call.1} parent=1 // pred_check
      _
    $region87: #{tpu_custom_call.1} parent=1 // pred_check_branch
      %197 = sbr.rel (0) target = $region89
    $region88: #{tpu_custom_call.1} parent=1 // pred_region
      _
    $region89: #{tpu_custom_call.1} parent=1 // pred_fallthru
      _
    // Predicated region
    $region90: #{tpu_custom_call.1} parent=1 // pred_check
      _
    $region91: #{tpu_custom_call.1} parent=1 // pred_check_branch
      %199 = sbr.rel (0) target = $region93
    $region92: #{tpu_custom_call.1} parent=1 // pred_region
      %201 = dma.done [#allocation3], 256
    $region93: #{tpu_custom_call.1} parent=1 // pred_fallthru
      _
    // Predicated region
    $region94: #{tpu_custom_call.1} parent=1 // pred_check
      _
    $region95: #{tpu_custom_call.1} parent=1 // pred_check_branch
      %203 = sbr.rel (0) target = $region97
    $region96: #{tpu_custom_call.1} parent=1 // pred_region
      %205 = dma.done [#allocation6], 4096
    $region97: #{tpu_custom_call.1} parent=1 // pred_fallthru
      _
    // Predicated region
    $region98: #{tpu_custom_call.1} parent=1 // pred_check
      _
    $region99: #{tpu_custom_call.1} parent=1 // pred_check_branch
      %207 = sbr.rel (0) target = $region101
    $region100: #{tpu_custom_call.1} parent=1 // pred_region
      %209 = dma.done [#allocation6], 3072
    $region101: #{tpu_custom_call.1} parent=1 // pred_fallthru
      _
    // Predicated region
    $region102: #{tpu_custom_call.1} parent=1 // pred_check
      _
    $region103: #{tpu_custom_call.1} parent=1 // pred_check_branch
      %211 = sbr.rel (0) target = $region105
    $region104: #{tpu_custom_call.1} parent=1 // pred_region
      %213 = dma.done [#allocation9], 48
    $region105: #{tpu_custom_call.1} parent=1 // pred_fallthru
      _
    // Predicated region
    $region106: #{tpu_custom_call.1} parent=1 // pred_check
      _
    $region107: #{tpu_custom_call.1} parent=1 // pred_check_branch
      %215 = sbr.rel (0) target = $region109
    $region108: #{tpu_custom_call.1} parent=1 // pred_region
      %217 = dma.done [#allocation9], 1024
    $region109: #{tpu_custom_call.1} parent=1 // pred_fallthru
      _
    // Predicated region
    $region110: #{tpu_custom_call.1} parent=1 // pred_check
      _
    $region111: #{tpu_custom_call.1} parent=1 // pred_check_branch
      %219 = sbr.rel (0) target = $region113
    $region112: #{tpu_custom_call.1} parent=1 // pred_region
      %221 = dma.done [#allocation12], 16
    $region113: #{tpu_custom_call.1} parent=1 // pred_fallthru
      _
    // Predicated region
    $region114: #{tpu_custom_call.1} parent=1 // pred_check
      _
    $region115: #{tpu_custom_call.1} parent=1 // pred_check_branch
      %223 = sbr.rel (0) target = $region117
    $region116: #{tpu_custom_call.1} parent=1 // pred_region
      %225 = dma.done [#allocation12], 1024
    $region117: #{tpu_custom_call.1} parent=1 // pred_fallthru
      _
    // Predicated region
    $region118: #{tpu_custom_call.1} parent=1 // pred_check
      _
    $region119: #{tpu_custom_call.1} parent=1 // pred_check_branch
      %227 = sbr.rel (0) target = $region121
    $region120: #{tpu_custom_call.1} parent=1 // pred_region
      %229 = dma.done [#allocation15], 2048
    $region121: #{tpu_custom_call.1} parent=1 // pred_fallthru
      _
    // Predicated region
    $region122: #{tpu_custom_call.1} parent=1 // pred_check
      _
    $region123: #{tpu_custom_call.1} parent=1 // pred_check_branch
      %231 = sbr.rel (0) target = $region125
    $region124: #{tpu_custom_call.1} parent=1 // pred_region
      %233 = dma.done [#allocation15], 1024
    $region125: #{tpu_custom_call.1} parent=1 // pred_fallthru
      _
    // Predicated region
    $region126: #{tpu_custom_call.1} parent=1 // pred_check
      _
    $region127: #{tpu_custom_call.1} parent=1 // pred_check_branch
      %235 = sbr.rel (0) target = $region129
    $region128: #{tpu_custom_call.1} parent=1 // pred_region
      %237 = dma.done [#allocation18], 2048
    $region129: #{tpu_custom_call.1} parent=1 // pred_fallthru
      _
    // Predicated region
    $region130: #{tpu_custom_call.1} parent=1 // pred_check
      _
    $region131: #{tpu_custom_call.1} parent=1 // pred_check_branch
      %239 = sbr.rel (0) target = $region133
    $region132: #{tpu_custom_call.1} parent=1 // pred_region
      %241 = dma.done [#allocation18], 2048
    $region133: #{tpu_custom_call.1} parent=1 // pred_fallthru
      _
    %v243 = vld [vmem:[#allocation2] sm:$0xff]
    %v244 = vld [vmem:[#allocation2 + $0x8] sm:$0xff]
    %v245 = vpack.c.bf16 %v244, %v243
    %v246 = vld [vmem:[#allocation7] sm:$0xff]
    %v247 = vld [vmem:[#allocation7 + $0x8] sm:$0xf]
    %v248 = vld [vmem:[#allocation7 + $0xc] sm:$0xff]
    %v249 = vld [vmem:[#allocation7 + $0x14] sm:$0xf]
    %v250 = vld [vmem:[#allocation7 + $0x18] sm:$0xff]
    %v251 = vld [vmem:[#allocation7 + $0x20] sm:$0xf]
    %v252 = vld [vmem:[#allocation7 + $0x24] sm:$0xff]
    %v253 = vld [vmem:[#allocation7 + $0x2c] sm:$0xf]
    %v254 = vld [vmem:[#allocation7 + $0x30] sm:$0xff]
    %v255 = vld [vmem:[#allocation7 + $0x38] sm:$0xf]
    %v256 = vld [vmem:[#allocation7 + $0x3c] sm:$0xff]
    %v257 = vld [vmem:[#allocation7 + $0x44] sm:$0xf]
    %v258 = vld [vmem:[#allocation7 + $0x48] sm:$0xff]
    %v259 = vld [vmem:[#allocation7 + $0x50] sm:$0xf]
    %v260 = vld [vmem:[#allocation7 + $0x54] sm:$0xff]
    %v261 = vld [vmem:[#allocation7 + $0x5c] sm:$0xf]
    %v262 = vld [vmem:[#allocation7 + $0x60] sm:$0xff]
    %v263 = vld [vmem:[#allocation7 + $0x68] sm:$0xf]
    %v264 = vld [vmem:[#allocation7 + $0x6c] sm:$0xff]
    %v265 = vld [vmem:[#allocation7 + $0x74] sm:$0xf]
    %v266 = vld [vmem:[#allocation7 + $0x78] sm:$0xff]
    %v267 = vld [vmem:[#allocation7 + $0x80] sm:$0xf]
    %v268 = vld [vmem:[#allocation7 + $0x84] sm:$0xff]
    %v269 = vld [vmem:[#allocation7 + $0x8c] sm:$0xf]
    %v270 = vld [vmem:[#allocation7 + $0x90] sm:$0xff]
    %v271 = vld [vmem:[#allocation7 + $0x98] sm:$0xf]
    %v272 = vld [vmem:[#allocation7 + $0x9c] sm:$0xff]
    %v273 = vld [vmem:[#allocation7 + $0xa4] sm:$0xf]
    %v274 = vld [vmem:[#allocation7 + $0xa8] sm:$0xff]
    %v275 = vld [vmem:[#allocation7 + $0xb0] sm:$0xf]
    %v276 = vld [vmem:[#allocation7 + $0xb4] sm:$0xff]
    %v277 = vld [vmem:[#allocation7 + $0xbc] sm:$0xf]
    %v278 = vld [vmem:[#allocation8] sm:$0x7]
    %v280 = vperm.slane %v278, 0
    %v281 = vperm.slane %v278, 1
    %v282 = vperm.slane %v278, 2
    %v318 = vunpack.c.l.b16 %v246
    %v319 = vunpack.c.h.b16 %v246
    %v320 = vunpack.c.l.b16 %v247
    %v321 = vunpack.c.l.b16 %v248
    %v322 = vunpack.c.h.b16 %v248
    %v323 = vunpack.c.l.b16 %v249
    %v324 = vunpack.c.l.b16 %v250
    %v325 = vunpack.c.h.b16 %v250
    %v326 = vunpack.c.l.b16 %v251
    %v327 = vunpack.c.l.b16 %v252
    %v328 = vunpack.c.h.b16 %v252
    %v329 = vunpack.c.l.b16 %v253
    %v330 = vunpack.c.l.b16 %v254
    %v331 = vunpack.c.h.b16 %v254
    %v332 = vunpack.c.l.b16 %v255
    %v333 = vunpack.c.l.b16 %v256
    %v334 = vunpack.c.h.b16 %v256
    %v335 = vunpack.c.l.b16 %v257
    %v336 = vunpack.c.l.b16 %v258
    %v337 = vunpack.c.h.b16 %v258
    %v338 = vunpack.c.l.b16 %v259
    %v339 = vunpack.c.l.b16 %v260
    %v340 = vunpack.c.h.b16 %v260
    %v341 = vunpack.c.l.b16 %v261
    %v342 = vunpack.c.l.b16 %v262
    %v343 = vunpack.c.h.b16 %v262
    %v344 = vunpack.c.l.b16 %v263
    %v345 = vunpack.c.l.b16 %v264
    %v346 = vunpack.c.h.b16 %v264
    %v347 = vunpack.c.l.b16 %v265
    %v348 = vunpack.c.l.b16 %v266
    %v349 = vunpack.c.h.b16 %v266
    %v350 = vunpack.c.l.b16 %v267
    %v351 = vunpack.c.l.b16 %v268
    %v352 = vunpack.c.h.b16 %v268
    %v353 = vunpack.c.l.b16 %v269
    %v354 = vunpack.c.l.b16 %v270
    %v355 = vunpack.c.h.b16 %v270
    %v356 = vunpack.c.l.b16 %v271
    %v357 = vunpack.c.l.b16 %v272
    %v358 = vunpack.c.h.b16 %v272
    %v359 = vunpack.c.l.b16 %v273
    %v360 = vunpack.c.l.b16 %v274
    %v361 = vunpack.c.h.b16 %v274
    %v362 = vunpack.c.l.b16 %v275
    %v363 = vunpack.c.l.b16 %v276
    %v364 = vunpack.c.h.b16 %v276
    %v365 = vunpack.c.l.b16 %v277
    %v366 = vpack.c.b16 %v321, %v318
    %v367 = vpack.c.b16 %v322, %v319
    %v368 = vpack.c.b16 %v323, %v320
    %v369 = vpack.c.b16 %v327, %v324
    %v370 = vpack.c.b16 %v328, %v325
    %v371 = vpack.c.b16 %v329, %v326
    %v372 = vpack.c.b16 %v333, %v330
    %v373 = vpack.c.b16 %v334, %v331
    %v374 = vpack.c.b16 %v335, %v332
    %v375 = vpack.c.b16 %v339, %v336
    %v376 = vpack.c.b16 %v340, %v337
    %v377 = vpack.c.b16 %v341, %v338
    %v378 = vpack.c.b16 %v345, %v342
    %v379 = vpack.c.b16 %v346, %v343
    %v380 = vpack.c.b16 %v347, %v344
    %v381 = vpack.c.b16 %v351, %v348
    %v382 = vpack.c.b16 %v352, %v349
    %v383 = vpack.c.b16 %v353, %v350
    %v384 = vpack.c.b16 %v357, %v354
    %v385 = vpack.c.b16 %v358, %v355
    %v386 = vpack.c.b16 %v359, %v356
    %v387 = vpack.c.b16 %v363, %v360
    %v388 = vpack.c.b16 %v364, %v361
    %v389 = vpack.c.b16 %v365, %v362
    %414 = vmatpush.bf16.msra.mxu0 %v387
    %415 = vmatpush.bf16.msra.mxu0 %v384
    %416 = vmatpush.bf16.msra.mxu0 %v381
    %417 = vmatpush.bf16.msra.mxu0 %v378
    %418 = vmatpush.bf16.msra.mxu0 %v375
    %419 = vmatpush.bf16.msra.mxu0 %v372
    %420 = vmatpush.bf16.msra.mxu0 %v369
    %421 = vmatpush.bf16.msra.mxu0 %v366
    %422 = vmatmul.bf16.gmra.mxu0 %v245
    %v423 = vpop.f32.mrf.mxu0
    %v424 = vadd.f32 %v280, %v423
    %v425 = vpop.f32.mrf.mxu0
    %v426 = vadd.f32 %v280, %v425
    %427 = vdwg.mxu0
    %428 = vmatpush.bf16.msra.mxu0 %v388
    %429 = vmatpush.bf16.msra.mxu0 %v385
    %430 = vmatpush.bf16.msra.mxu0 %v382
    %431 = vmatpush.bf16.msra.mxu0 %v379
    %432 = vmatpush.bf16.msra.mxu0 %v376
    %433 = vmatpush.bf16.msra.mxu0 %v373
    %434 = vmatpush.bf16.msra.mxu0 %v370
    %435 = vmatpush.bf16.msra.mxu0 %v367
    %436 = vmatmul.bf16.gmra.mxu0 %v245
    %v437 = vpop.f32.mrf.mxu0
    %v438 = vadd.f32 %v281, %v437
    %v439 = vpop.f32.mrf.mxu0
    %v440 = vadd.f32 %v281, %v439
    %441 = vdwg.mxu0
    %442 = vmatpush.bf16.msra.mxu0 %v389
    %443 = vmatpush.bf16.msra.mxu0 %v386
    %444 = vmatpush.bf16.msra.mxu0 %v383
    %445 = vmatpush.bf16.msra.mxu0 %v380
    %446 = vmatpush.bf16.msra.mxu0 %v377
    %447 = vmatpush.bf16.msra.mxu0 %v374
    %448 = vmatpush.bf16.msra.mxu0 %v371
    %449 = vmatpush.bf16.msra.mxu0 %v368
    %450 = vmatmul.bf16.gmra.mxu0 %v245
    %v451 = vpop.f32.mrf.mxu0
    %v452 = vadd.f32 %v282, %v451
    %v453 = vpop.f32.mrf.mxu0
    %v454 = vadd.f32 %v282, %v453
    %455 = vdwg.mxu0
    %v456 = vlaneseq
    %v457 = vshrl.u32 %v456, 7
    %v458 = vlaneseq
    %v459 = vand.u32 %v458, 127
    %vm460 = vcmp.le.s32.totalorder %v459, %v457
    %v461 = vsel %vm460, 0.0, -1e+30
    %v462 = vpack.c.bf16 %v424, %v424
    %v463 = vpack.c.bf16 %v426, %v426
    %v464 = vpack.c.bf16 %v438, %v438
    %v465 = vpack.c.bf16 %v440, %v440
    %v466 = vpack.c.bf16 %v452, %v452
    %v467 = vpack.c.bf16 %v454, %v454
    %vm468 = vcmask 261120
    %v470 = vsel %vm468, %v462, 0
    %v473 = vsel %vm468, %v464, 0
    %475 = vmatpush.bf16.xpose.msra.mxu0 0
    %476 = vmatpush.bf16.xpose.msra.mxu0 0
    %477 = vmatpush.bf16.xpose.msra.mxu0 0
    %478 = vmatpush.bf16.xpose.msra.mxu0 0
    %479 = vmatpush.bf16.xpose.msra.mxu0 0
    %480 = vmatpush.bf16.xpose.msra.mxu0 0
    %481 = vmatpush.bf16.xpose.msra.mxu0 0
    %482 = vmatpush.bf16.xpose.msra.mxu0 %v473
    %483 = vmatmul.bf16.gmra.mxu0 %v470
    %v484 = vpop.f32.mrf.mxu0
    %v485 = vadd.f32 %v461, %v484
    %v486 = vpop.f32.mrf.mxu0
    %487 = vdwg.mxu0
    %v489 = vsel %vm468, %v463, 0
    %v492 = vsel %vm468, %v465, 0
    %494 = vmatpush.bf16.xpose.msra.mxu0 0
    %495 = vmatpush.bf16.xpose.msra.mxu0 0
    %496 = vmatpush.bf16.xpose.msra.mxu0 0
    %497 = vmatpush.bf16.xpose.msra.mxu0 0
    %498 = vmatpush.bf16.xpose.msra.mxu0 0
    %499 = vmatpush.bf16.xpose.msra.mxu0 0
    %500 = vmatpush.bf16.xpose.msra.mxu0 0
    %501 = vmatpush.bf16.xpose.msra.mxu0 %v492
    %502 = vmatmul.bf16.gmra.mxu0 %v489
    %v503 = vpop.f32.mrf.mxu0
    %v504 = vadd.f32 %v461, %v503
    %v505 = vpop.f32.mrf.mxu0
    %506 = vdwg.mxu0
    %vm507 = vcmask 64512
    %v508 = vsel %vm507, %v485, -inf
    %509 = vmax.xlane.f32.xlu0 %v508
    %v510 = vpop.xlane.xlu0 %509
    %v511 = vsel %vm507, %v504, -inf
    %512 = vmax.xlane.f32.xlu0 %v511
    %v513 = vpop.xlane.xlu0 %512
    %v514 = vsub.f32 %v485, %v510
    %v515 = vsub.f32 %v504, %v513
    %v516 = vmul.f32 %v514, 1.442695
    %v517 = vpow.pop %v516
    %v518 = vmul.f32 %v515, 1.442695
    %v519 = vpow.pop %v518
    %v520 = vsel %vm507, %v517, 0.0
    %521 = vadd.xlane.f32.xlu0 %v520
    %v522 = vpop.xlane.xlu0 %521
    %v523 = vsel %vm507, %v519, 0.0
    %524 = vadd.xlane.f32.xlu0 %v523
    %v525 = vpop.xlane.xlu0 %524
    %v526 = vrcp.pop %v522
    %v527 = vrcp.pop %v525
    %v528 = vmul.f32 %v517, %v526
    %v529 = vmul.f32 %v519, %v527
    %v530 = vpack.c.bf16 %v528, %v528
    %v531 = vpack.c.bf16 %v529, %v529
    %v533 = vsel %vm507, %v530, 0
    %vm535 = vcmask 1043456
    %v537 = vsel %vm535, %v466, 0
    %539 = vmatpush.bf16.msra.mxu0 0
    %540 = vmatpush.bf16.msra.mxu0 0
    %541 = vmatpush.bf16.msra.mxu0 0
    %542 = vmatpush.bf16.msra.mxu0 0
    %543 = vmatpush.bf16.msra.mxu0 0
    %544 = vmatpush.bf16.msra.mxu0 0
    %545 = vmatpush.bf16.msra.mxu0 0
    %546 = vmatpush.bf16.msra.mxu0 %v537
    %547 = vmatmul.bf16.gmra.mxu0 %v533
    %v548 = vpop.f32.mrf.mxu0
    %v549 = vadd.f32 0.0, %v548
    %v550 = vpop.f32.mrf.mxu0
    %551 = vdwg.mxu0
    %v553 = vsel %vm507, %v531, 0
    %v556 = vsel %vm535, %v467, 0
    %558 = vmatpush.bf16.msra.mxu0 0
    %559 = vmatpush.bf16.msra.mxu0 0
    %560 = vmatpush.bf16.msra.mxu0 0
    %561 = vmatpush.bf16.msra.mxu0 0
    %562 = vmatpush.bf16.msra.mxu0 0
    %563 = vmatpush.bf16.msra.mxu0 0
    %564 = vmatpush.bf16.msra.mxu0 0
    %565 = vmatpush.bf16.msra.mxu0 %v556
    %566 = vmatmul.bf16.gmra.mxu0 %v553
    %v567 = vpop.f32.mrf.mxu0
    %v568 = vadd.f32 0.0, %v567
    %v569 = vpop.f32.mrf.mxu0
    %570 = vdwg.mxu0
    %v571 = vpack.c.bf16 %v568, %v549
    %v572 = vld [vmem:[#allocation10] sm:$0xf]
    %v573 = vld [vmem:[#allocation10 + $0x4] sm:$0xf]
    %v574 = vld [vmem:[#allocation10 + $0x8] sm:$0xf]
    %v575 = vld [vmem:[#allocation10 + $0xc] sm:$0xf]
    %v577 = vunpack.c.l.b16 %v462
    %v578 = vpack.c.b16 %v577, %v577
    %579 = vrot.lane.b32.xlu0 %v578, 96
    %v580 = vpop.permute.xlu0 %579
    %v582 = vunpack.c.l.b16 %v464
    %v583 = vpack.c.b16 %v582, %v582
    %584 = vrot.lane.b32.xlu0 %v583, 96
    %v585 = vpop.permute.xlu0 %584
    %v587 = vsel %vm468, %v580, 0
    %v590 = vsel %vm468, %v585, 0
    %592 = vmatpush.bf16.xpose.msra.mxu0 0
    %593 = vmatpush.bf16.xpose.msra.mxu0 0
    %594 = vmatpush.bf16.xpose.msra.mxu0 0
    %595 = vmatpush.bf16.xpose.msra.mxu0 0
    %596 = vmatpush.bf16.xpose.msra.mxu0 0
    %597 = vmatpush.bf16.xpose.msra.mxu0 0
    %598 = vmatpush.bf16.xpose.msra.mxu0 0
    %599 = vmatpush.bf16.xpose.msra.mxu0 %v590
    %600 = vmatmul.bf16.gmra.mxu0 %v587
    %v601 = vpop.f32.mrf.mxu0
    %v602 = vadd.f32 %v461, %v601
    %v603 = vpop.f32.mrf.mxu0
    %604 = vdwg.mxu0
    %v606 = vunpack.c.l.b16 %v463
    %v607 = vpack.c.b16 %v606, %v606
    %608 = vrot.lane.b32.xlu0 %v607, 96
    %v609 = vpop.permute.xlu0 %608
    %v611 = vunpack.c.l.b16 %v465
    %v612 = vpack.c.b16 %v611, %v611
    %613 = vrot.lane.b32.xlu0 %v612, 96
    %v614 = vpop.permute.xlu0 %613
    %v616 = vsel %vm468, %v609, 0
    %v619 = vsel %vm468, %v614, 0
    %621 = vmatpush.bf16.xpose.msra.mxu0 0
    %622 = vmatpush.bf16.xpose.msra.mxu0 0
    %623 = vmatpush.bf16.xpose.msra.mxu0 0
    %624 = vmatpush.bf16.xpose.msra.mxu0 0
    %625 = vmatpush.bf16.xpose.msra.mxu0 0
    %626 = vmatpush.bf16.xpose.msra.mxu0 0
    %627 = vmatpush.bf16.xpose.msra.mxu0 0
    %628 = vmatpush.bf16.xpose.msra.mxu0 %v619
    %629 = vmatmul.bf16.gmra.mxu0 %v616
    %v630 = vpop.f32.mrf.mxu0
    %v631 = vadd.f32 %v461, %v630
    %v632 = vpop.f32.mrf.mxu0
    %633 = vdwg.mxu0
    %v634 = vsel %vm507, %v602, -inf
    %635 = vmax.xlane.f32.xlu0 %v634
    %v636 = vpop.xlane.xlu0 %635
    %v637 = vsel %vm507, %v631, -inf
    %638 = vmax.xlane.f32.xlu0 %v637
    %v639 = vpop.xlane.xlu0 %638
    %v640 = vsub.f32 %v602, %v636
    %v641 = vsub.f32 %v631, %v639
    %v642 = vmul.f32 %v640, 1.442695
    %v643 = vpow.pop %v642
    %v644 = vmul.f32 %v641, 1.442695
    %v645 = vpow.pop %v644
    %v646 = vsel %vm507, %v643, 0.0
    %647 = vadd.xlane.f32.xlu0 %v646
    %v648 = vpop.xlane.xlu0 %647
    %v649 = vsel %vm507, %v645, 0.0
    %650 = vadd.xlane.f32.xlu0 %v649
    %v651 = vpop.xlane.xlu0 %650
    %v652 = vrcp.pop %v648
    %v653 = vrcp.pop %v651
    %v654 = vmul.f32 %v643, %v652
    %v655 = vmul.f32 %v645, %v653
    %v656 = vpack.c.bf16 %v654, %v654
    %v657 = vpack.c.bf16 %v655, %v655
    %v659 = vunpack.c.l.b16 %v466
    %v660 = vpack.c.b16 %v659, %v659
    %661 = vrot.lane.b32.xlu0 %v660, 96
    %v662 = vpop.permute.xlu0 %661
    %v664 = vsel %vm507, %v656, 0
    %v667 = vsel %vm535, %v662, 0
    %669 = vmatpush.bf16.msra.mxu0 0
    %670 = vmatpush.bf16.msra.mxu0 0
    %671 = vmatpush.bf16.msra.mxu0 0
    %672 = vmatpush.bf16.msra.mxu0 0
    %673 = vmatpush.bf16.msra.mxu0 0
    %674 = vmatpush.bf16.msra.mxu0 0
    %675 = vmatpush.bf16.msra.mxu0 0
    %676 = vmatpush.bf16.msra.mxu0 %v667
    %677 = vmatmul.bf16.gmra.mxu0 %v664
    %v678 = vpop.f32.mrf.mxu0
    %v679 = vadd.f32 0.0, %v678
    %v680 = vpop.f32.mrf.mxu0
    %681 = vdwg.mxu0
    %v683 = vunpack.c.l.b16 %v467
    %v684 = vpack.c.b16 %v683, %v683
    %685 = vrot.lane.b32.xlu0 %v684, 96
    %v686 = vpop.permute.xlu0 %685
    %v688 = vsel %vm507, %v657, 0
    %v691 = vsel %vm535, %v686, 0
    %693 = vmatpush.bf16.msra.mxu0 0
    %694 = vmatpush.bf16.msra.mxu0 0
    %695 = vmatpush.bf16.msra.mxu0 0
    %696 = vmatpush.bf16.msra.mxu0 0
    %697 = vmatpush.bf16.msra.mxu0 0
    %698 = vmatpush.bf16.msra.mxu0 0
    %699 = vmatpush.bf16.msra.mxu0 0
    %700 = vmatpush.bf16.msra.mxu0 %v691
    %701 = vmatmul.bf16.gmra.mxu0 %v688
    %v702 = vpop.f32.mrf.mxu0
    %v703 = vadd.f32 0.0, %v702
    %v704 = vpop.f32.mrf.mxu0
    %705 = vdwg.mxu0
    %v706 = vpack.c.bf16 %v703, %v679
    %s707 = scalar_lea.vmem [#allocation10], 16
    %v708 = vld [vmem:[%s707] sm:$0xf]
    %v709 = vld [vmem:[%s707 + $0x4] sm:$0xf]
    %v710 = vld [vmem:[%s707 + $0x8] sm:$0xf]
    %v711 = vld [vmem:[%s707 + $0xc] sm:$0xf]
    %v716 = vunpack.c.l.b16 %v708
    %v717 = vunpack.c.l.b16 %v709
    %v718 = vunpack.c.l.b16 %v710
    %v719 = vunpack.c.l.b16 %v711
    %v720 = vpack.c.b16 %v717, %v716
    %v721 = vpack.c.b16 %v719, %v718
    %v725 = vsel %vm468, %v706, 0
    %727 = vmatpush.bf16.msra.mxu0 0
    %728 = vmatpush.bf16.msra.mxu0 0
    %729 = vmatpush.bf16.msra.mxu0 0
    %730 = vmatpush.bf16.msra.mxu0 0
    %731 = vmatpush.bf16.msra.mxu0 0
    %732 = vmatpush.bf16.msra.mxu0 0
    %733 = vmatpush.bf16.msra.mxu0 %v721
    %734 = vmatpush.bf16.msra.mxu0 %v720
    %735 = vmatmul.bf16.gmra.mxu0 %v725
    %v736 = vpop.f32.mrf.mxu0
    %v737 = vadd.f32 0.0, %v736
    %v738 = vpop.f32.mrf.mxu0
    %v739 = vadd.f32 0.0, %v738
    %740 = vdwg.mxu0
    %v745 = vunpack.c.l.b16 %v572
    %v746 = vunpack.c.l.b16 %v573
    %v747 = vunpack.c.l.b16 %v574
    %v748 = vunpack.c.l.b16 %v575
    %v749 = vpack.c.b16 %v746, %v745
    %v750 = vpack.c.b16 %v748, %v747
    %v754 = vsel %vm468, %v571, 0
    %756 = vmatpush.bf16.msra.mxu0 0
    %757 = vmatpush.bf16.msra.mxu0 0
    %758 = vmatpush.bf16.msra.mxu0 0
    %759 = vmatpush.bf16.msra.mxu0 0
    %760 = vmatpush.bf16.msra.mxu0 0
    %761 = vmatpush.bf16.msra.mxu0 0
    %762 = vmatpush.bf16.msra.mxu0 %v750
    %763 = vmatpush.bf16.msra.mxu0 %v749
    %764 = vmatmul.bf16.gmra.mxu0 %v754
    %v765 = vpop.f32.mrf.mxu0
    %v766 = vadd.f32 %v737, %v765
    %v767 = vpop.f32.mrf.mxu0
    %v768 = vadd.f32 %v739, %v767
    %769 = vdwg.mxu0
    %770 = vrot.lane.b32.xlu0 %v578, 64
    %v771 = vpop.permute.xlu0 %770
    %772 = vrot.lane.b32.xlu0 %v583, 64
    %v773 = vpop.permute.xlu0 %772
    %v775 = vsel %vm468, %v771, 0
    %v778 = vsel %vm468, %v773, 0
    %780 = vmatpush.bf16.xpose.msra.mxu0 0
    %781 = vmatpush.bf16.xpose.msra.mxu0 0
    %782 = vmatpush.bf16.xpose.msra.mxu0 0
    %783 = vmatpush.bf16.xpose.msra.mxu0 0
    %784 = vmatpush.bf16.xpose.msra.mxu0 0
    %785 = vmatpush.bf16.xpose.msra.mxu0 0
    %786 = vmatpush.bf16.xpose.msra.mxu0 0
    %787 = vmatpush.bf16.xpose.msra.mxu0 %v778
    %788 = vmatmul.bf16.gmra.mxu0 %v775
    %v789 = vpop.f32.mrf.mxu0
    %v790 = vadd.f32 %v461, %v789
    %v791 = vpop.f32.mrf.mxu0
    %792 = vdwg.mxu0
    %793 = vrot.lane.b32.xlu0 %v607, 64
    %v794 = vpop.permute.xlu0 %793
    %795 = vrot.lane.b32.xlu0 %v612, 64
    %v796 = vpop.permute.xlu0 %795
    %v798 = vsel %vm468, %v794, 0
    %v801 = vsel %vm468, %v796, 0
    %803 = vmatpush.bf16.xpose.msra.mxu0 0
    %804 = vmatpush.bf16.xpose.msra.mxu0 0
    %805 = vmatpush.bf16.xpose.msra.mxu0 0
    %806 = vmatpush.bf16.xpose.msra.mxu0 0
    %807 = vmatpush.bf16.xpose.msra.mxu0 0
    %808 = vmatpush.bf16.xpose.msra.mxu0 0
    %809 = vmatpush.bf16.xpose.msra.mxu0 0
    %810 = vmatpush.bf16.xpose.msra.mxu0 %v801
    %811 = vmatmul.bf16.gmra.mxu0 %v798
    %v812 = vpop.f32.mrf.mxu0
    %v813 = vadd.f32 %v461, %v812
    %v814 = vpop.f32.mrf.mxu0
    %815 = vdwg.mxu0
    %v816 = vsel %vm507, %v790, -inf
    %817 = vmax.xlane.f32.xlu0 %v816
    %v818 = vpop.xlane.xlu0 %817
    %v819 = vsel %vm507, %v813, -inf
    %820 = vmax.xlane.f32.xlu0 %v819
    %v821 = vpop.xlane.xlu0 %820
    %v822 = vsub.f32 %v790, %v818
    %v823 = vsub.f32 %v813, %v821
    %v824 = vmul.f32 %v822, 1.442695
    %v825 = vpow.pop %v824
    %v826 = vmul.f32 %v823, 1.442695
    %v827 = vpow.pop %v826
    %v828 = vsel %vm507, %v825, 0.0
    %829 = vadd.xlane.f32.xlu0 %v828
    %v830 = vpop.xlane.xlu0 %829
    %v831 = vsel %vm507, %v827, 0.0
    %832 = vadd.xlane.f32.xlu0 %v831
    %v833 = vpop.xlane.xlu0 %832
    %v834 = vrcp.pop %v830
    %v835 = vrcp.pop %v833
    %v836 = vmul.f32 %v825, %v834
    %v837 = vmul.f32 %v827, %v835
    %v838 = vpack.c.bf16 %v836, %v836
    %v839 = vpack.c.bf16 %v837, %v837
    %840 = vrot.lane.b32.xlu0 %v660, 64
    %v841 = vpop.permute.xlu0 %840
    %v843 = vsel %vm507, %v838, 0
    %v846 = vsel %vm535, %v841, 0
    %848 = vmatpush.bf16.msra.mxu0 0
    %849 = vmatpush.bf16.msra.mxu0 0
    %850 = vmatpush.bf16.msra.mxu0 0
    %851 = vmatpush.bf16.msra.mxu0 0
    %852 = vmatpush.bf16.msra.mxu0 0
    %853 = vmatpush.bf16.msra.mxu0 0
    %854 = vmatpush.bf16.msra.mxu0 0
    %855 = vmatpush.bf16.msra.mxu0 %v846
    %856 = vmatmul.bf16.gmra.mxu0 %v843
    %v857 = vpop.f32.mrf.mxu0
    %v858 = vadd.f32 0.0, %v857
    %v859 = vpop.f32.mrf.mxu0
    %860 = vdwg.mxu0
    %861 = vrot.lane.b32.xlu0 %v684, 64
    %v862 = vpop.permute.xlu0 %861
    %v864 = vsel %vm507, %v839, 0
    %v867 = vsel %vm535, %v862, 0
    %869 = vmatpush.bf16.msra.mxu0 0
    %870 = vmatpush.bf16.msra.mxu0 0
    %871 = vmatpush.bf16.msra.mxu0 0
    %872 = vmatpush.bf16.msra.mxu0 0
    %873 = vmatpush.bf16.msra.mxu0 0
    %874 = vmatpush.bf16.msra.mxu0 0
    %875 = vmatpush.bf16.msra.mxu0 0
    %876 = vmatpush.bf16.msra.mxu0 %v867
    %877 = vmatmul.bf16.gmra.mxu0 %v864
    %v878 = vpop.f32.mrf.mxu0
    %v879 = vadd.f32 0.0, %v878
    %v880 = vpop.f32.mrf.mxu0
    %881 = vdwg.mxu0
    %v882 = vpack.c.bf16 %v879, %v858
    %s883 = scalar_lea.vmem [#allocation10], 32
    %v884 = vld [vmem:[%s883] sm:$0xf]
    %v885 = vld [vmem:[%s883 + $0x4] sm:$0xf]
    %v886 = vld [vmem:[%s883 + $0x8] sm:$0xf]
    %v887 = vld [vmem:[%s883 + $0xc] sm:$0xf]
    %v892 = vunpack.c.l.b16 %v884
    %v893 = vunpack.c.l.b16 %v885
    %v894 = vunpack.c.l.b16 %v886
    %v895 = vunpack.c.l.b16 %v887
    %v896 = vpack.c.b16 %v893, %v892
    %v897 = vpack.c.b16 %v895, %v894
    %v901 = vsel %vm468, %v882, 0
    %903 = vmatpush.bf16.msra.mxu0 0
    %904 = vmatpush.bf16.msra.mxu0 0
    %905 = vmatpush.bf16.msra.mxu0 0
    %906 = vmatpush.bf16.msra.mxu0 0
    %907 = vmatpush.bf16.msra.mxu0 0
    %908 = vmatpush.bf16.msra.mxu0 0
    %909 = vmatpush.bf16.msra.mxu0 %v897
    %910 = vmatpush.bf16.msra.mxu0 %v896
    %911 = vmatmul.bf16.gmra.mxu0 %v901
    %v912 = vpop.f32.mrf.mxu0
    %v913 = vadd.f32 0.0, %v912
    %v914 = vpop.f32.mrf.mxu0
    %v915 = vadd.f32 0.0, %v914
    %916 = vdwg.mxu0
    %v917 = vadd.f32 %v766, %v913
    %v918 = vadd.f32 %v768, %v915
    %919 = vrot.lane.b32.xlu0 %v578, 32
    %v920 = vpop.permute.xlu0 %919
    %921 = vrot.lane.b32.xlu0 %v583, 32
    %v922 = vpop.permute.xlu0 %921
    %v924 = vsel %vm468, %v920, 0
    %v927 = vsel %vm468, %v922, 0
    %929 = vmatpush.bf16.xpose.msra.mxu0 0
    %930 = vmatpush.bf16.xpose.msra.mxu0 0
    %931 = vmatpush.bf16.xpose.msra.mxu0 0
    %932 = vmatpush.bf16.xpose.msra.mxu0 0
    %933 = vmatpush.bf16.xpose.msra.mxu0 0
    %934 = vmatpush.bf16.xpose.msra.mxu0 0
    %935 = vmatpush.bf16.xpose.msra.mxu0 0
    %936 = vmatpush.bf16.xpose.msra.mxu0 %v927
    %937 = vmatmul.bf16.gmra.mxu0 %v924
    %v938 = vpop.f32.mrf.mxu0
    %v939 = vadd.f32 %v461, %v938
    %v940 = vpop.f32.mrf.mxu0
    %941 = vdwg.mxu0
    %942 = vrot.lane.b32.xlu0 %v607, 32
    %v943 = vpop.permute.xlu0 %942
    %944 = vrot.lane.b32.xlu0 %v612, 32
    %v945 = vpop.permute.xlu0 %944
    %v947 = vsel %vm468, %v943, 0
    %v950 = vsel %vm468, %v945, 0
    %952 = vmatpush.bf16.xpose.msra.mxu0 0
    %953 = vmatpush.bf16.xpose.msra.mxu0 0
    %954 = vmatpush.bf16.xpose.msra.mxu0 0
    %955 = vmatpush.bf16.xpose.msra.mxu0 0
    %956 = vmatpush.bf16.xpose.msra.mxu0 0
    %957 = vmatpush.bf16.xpose.msra.mxu0 0
    %958 = vmatpush.bf16.xpose.msra.mxu0 0
    %959 = vmatpush.bf16.xpose.msra.mxu0 %v950
    %960 = vmatmul.bf16.gmra.mxu0 %v947
    %v961 = vpop.f32.mrf.mxu0
    %v962 = vadd.f32 %v461, %v961
    %v963 = vpop.f32.mrf.mxu0
    %964 = vdwg.mxu0
    %v965 = vsel %vm507, %v939, -inf
    %966 = vmax.xlane.f32.xlu0 %v965
    %v967 = vpop.xlane.xlu0 %966
    %v968 = vsel %vm507, %v962, -inf
    %969 = vmax.xlane.f32.xlu0 %v968
    %v970 = vpop.xlane.xlu0 %969
    %v971 = vsub.f32 %v939, %v967
    %v972 = vsub.f32 %v962, %v970
    %v973 = vmul.f32 %v971, 1.442695
    %v974 = vpow.pop %v973
    %v975 = vmul.f32 %v972, 1.442695
    %v976 = vpow.pop %v975
    %v977 = vsel %vm507, %v974, 0.0
    %978 = vadd.xlane.f32.xlu0 %v977
    %v979 = vpop.xlane.xlu0 %978
    %v980 = vsel %vm507, %v976, 0.0
    %981 = vadd.xlane.f32.xlu0 %v980
    %v982 = vpop.xlane.xlu0 %981
    %v983 = vrcp.pop %v979
    %v984 = vrcp.pop %v982
    %v985 = vmul.f32 %v974, %v983
    %v986 = vmul.f32 %v976, %v984
    %v987 = vpack.c.bf16 %v985, %v985
    %v988 = vpack.c.bf16 %v986, %v986
    %989 = vrot.lane.b32.xlu0 %v660, 32
    %v990 = vpop.permute.xlu0 %989
    %v992 = vsel %vm507, %v987, 0
    %v995 = vsel %vm535, %v990, 0
    %997 = vmatpush.bf16.msra.mxu0 0
    %998 = vmatpush.bf16.msra.mxu0 0
    %999 = vmatpush.bf16.msra.mxu0 0
    %1000 = vmatpush.bf16.msra.mxu0 0
    %1001 = vmatpush.bf16.msra.mxu0 0
    %1002 = vmatpush.bf16.msra.mxu0 0
    %1003 = vmatpush.bf16.msra.mxu0 0
    %1004 = vmatpush.bf16.msra.mxu0 %v995
    %1005 = vmatmul.bf16.gmra.mxu0 %v992
    %v1006 = vpop.f32.mrf.mxu0
    %v1007 = vadd.f32 0.0, %v1006
    %v1008 = vpop.f32.mrf.mxu0
    %1009 = vdwg.mxu0
    %1010 = vrot.lane.b32.xlu0 %v684, 32
    %v1011 = vpop.permute.xlu0 %1010
    %v1013 = vsel %vm507, %v988, 0
    %v1016 = vsel %vm535, %v1011, 0
    %1018 = vmatpush.bf16.msra.mxu0 0
    %1019 = vmatpush.bf16.msra.mxu0 0
    %1020 = vmatpush.bf16.msra.mxu0 0
    %1021 = vmatpush.bf16.msra.mxu0 0
    %1022 = vmatpush.bf16.msra.mxu0 0
    %1023 = vmatpush.bf16.msra.mxu0 0
    %1024 = vmatpush.bf16.msra.mxu0 0
    %1025 = vmatpush.bf16.msra.mxu0 %v1016
    %1026 = vmatmul.bf16.gmra.mxu0 %v1013
    %v1027 = vpop.f32.mrf.mxu0
    %v1028 = vadd.f32 0.0, %v1027
    %v1029 = vpop.f32.mrf.mxu0
    %1030 = vdwg.mxu0
    %v1031 = vpack.c.bf16 %v1028, %v1007
    %s1032 = scalar_lea.vmem [#allocation10], 48
    %v1033 = vld [vmem:[%s1032] sm:$0xf]
    %v1034 = vld [vmem:[%s1032 + $0x4] sm:$0xf]
    %v1035 = vld [vmem:[%s1032 + $0x8] sm:$0xf]
    %v1036 = vld [vmem:[%s1032 + $0xc] sm:$0xf]
    %v1041 = vunpack.c.l.b16 %v1033
    %v1042 = vunpack.c.l.b16 %v1034
    %v1043 = vunpack.c.l.b16 %v1035
    %v1044 = vunpack.c.l.b16 %v1036
    %v1045 = vpack.c.b16 %v1042, %v1041
    %v1046 = vpack.c.b16 %v1044, %v1043
    %v1050 = vsel %vm468, %v1031, 0
    %1052 = vmatpush.bf16.msra.mxu0 0
    %1053 = vmatpush.bf16.msra.mxu0 0
    %1054 = vmatpush.bf16.msra.mxu0 0
    %1055 = vmatpush.bf16.msra.mxu0 0
    %1056 = vmatpush.bf16.msra.mxu0 0
    %1057 = vmatpush.bf16.msra.mxu0 0
    %1058 = vmatpush.bf16.msra.mxu0 %v1046
    %1059 = vmatpush.bf16.msra.mxu0 %v1045
    %1060 = vmatmul.bf16.gmra.mxu0 %v1050
    %v1061 = vpop.f32.mrf.mxu0
    %v1062 = vadd.f32 0.0, %v1061
    %v1063 = vpop.f32.mrf.mxu0
    %v1064 = vadd.f32 0.0, %v1063
    %1065 = vdwg.mxu0
    %v1066 = vadd.f32 %v917, %v1062
    %v1067 = vadd.f32 %v918, %v1064
    %v1068 = vld [vmem:[#allocation11] sm:$0x1]
    %v1070 = vperm.slane %v1068, 0
    %v1072 = vadd.f32 %v1066, %v1070
    %v1073 = vadd.f32 %v1067, %v1070
    %v1074 = vadd.f32 %v243, %v1072
    %v1075 = vadd.f32 %v244, %v1073
    %v1076 = vld [vmem:[%s6] sm:$0x1]
    %v1077 = vld [vmem:[%s7] sm:$0x1]
    %1078 = vadd.xlane.f32.xlu0 %v1074
    %v1079 = vpop.xlane.xlu0 %1078
    %1080 = vadd.xlane.f32.xlu0 %v1075
    %v1081 = vpop.xlane.xlu0 %1080
    %v1082 = vrcp.pop 128.0
    %v1083 = vmul.f32 128.0, %v1082
    %v1084 = vsub.f32 1.0, %v1083
    %v1085 = vmul.f32 %v1082, %v1084
    %v1086 = vadd.f32 %v1082, %v1085
    %vm1087 = vweird.f32 %v1082
    %v1088 = vsel %vm1087, %v1082, %v1086
    %v1089 = vmul.f32 %v1079, %v1088
    %v1090 = vmul.f32 %v1081, %v1088
    %v1091 = vsub.f32 %v1074, %v1089
    %v1092 = vsub.f32 %v1075, %v1090
    %v1093 = vmul.f32 %v1091, %v1091
    %v1094 = vmul.f32 %v1092, %v1092
    %1095 = vadd.xlane.f32.xlu0 %v1093
    %v1096 = vpop.xlane.xlu0 %1095
    %1097 = vadd.xlane.f32.xlu0 %v1094
    %v1098 = vpop.xlane.xlu0 %1097
    %v1099 = vrcp.pop 127.0
    %v1100 = vmul.f32 127.0, %v1099
    %v1101 = vsub.f32 1.0, %v1100
    %v1102 = vmul.f32 %v1099, %v1101
    %v1103 = vadd.f32 %v1099, %v1102
    %vm1104 = vweird.f32 %v1099
    %v1105 = vsel %vm1104, %v1099, %v1103
    %v1106 = vmul.f32 %v1096, %v1105
    %v1107 = vmul.f32 %v1098, %v1105
    %v1109 = vperm.slane %v1076, 0
    %v1111 = vmul.f32 %v1109, %v1091
    %v1112 = vmul.f32 %v1109, %v1092
    %v1113 = vrsqrt.pop %v1106
    %v1114 = vmul.f32 %v1113, %v1106
    %v1115 = vmul.f32 %v1114, %v1113
    %v1116 = vmul.f32 0.5, %v1115
    %v1117 = vsub.f32 1.5, %v1116
    %v1118 = vmul.f32 %v1113, %v1117
    %v1119 = vmul.f32 %v1106, %v1118
    %vm1120 = vcmp.eq.f32.partialorder %v1106, inf
    %v1121 = vsel %vm1120, %v1106, %v1119
    %vm1122 = vcmp.eq.f32.partialorder %v1106, 0.0
    %v1123 = vand.u32 %v1106, 2147483648
    %v1124 = vsel %vm1122, %v1123, %v1121
    %v1125 = vrsqrt.pop %v1107
    %v1126 = vmul.f32 %v1125, %v1107
    %v1127 = vmul.f32 %v1126, %v1125
    %v1128 = vmul.f32 0.5, %v1127
    %v1129 = vsub.f32 1.5, %v1128
    %v1130 = vmul.f32 %v1125, %v1129
    %v1131 = vmul.f32 %v1107, %v1130
    %vm1132 = vcmp.eq.f32.partialorder %v1107, inf
    %v1133 = vsel %vm1132, %v1107, %v1131
    %vm1134 = vcmp.eq.f32.partialorder %v1107, 0.0
    %v1135 = vand.u32 %v1107, 2147483648
    %v1136 = vsel %vm1134, %v1135, %v1133
    %v1137 = vadd.f32 %v1124, 1e-06
    %v1138 = vadd.f32 %v1136, 1e-06
    %v1139 = vrcp.pop %v1137
    %v1140 = vmul.f32 %v1137, %v1139
    %v1141 = vsub.f32 1.0, %v1140
    %v1142 = vmul.f32 %v1139, %v1141
    %v1143 = vadd.f32 %v1139, %v1142
    %vm1144 = vweird.f32 %v1137
    %vm1145 = vweird.f32 %v1139
    %vm1146 = vmor %vm1144, %vm1145
    %v1147 = vsel %vm1146, %v1139, %v1143
    %v1148 = vand.u32 2147483647, %v1137
    %vm1149 = vcmp.eq.f32.partialorder %v1148, 8.507059e+37
    %v1150 = vand.u32 %v1137, 2147483648
    %v1151 = vor.u32 1.1754944e-38, %v1150
    %v1152 = vsel %vm1149, %v1151, %v1147
    %v1153 = vmul.f32 1.0, %v1152
    %v1154 = vrcp.pop %v1138
    %v1155 = vmul.f32 %v1138, %v1154
    %v1156 = vsub.f32 1.0, %v1155
    %v1157 = vmul.f32 %v1154, %v1156
    %v1158 = vadd.f32 %v1154, %v1157
    %vm1159 = vweird.f32 %v1138
    %vm1160 = vweird.f32 %v1154
    %vm1161 = vmor %vm1159, %vm1160
    %v1162 = vsel %vm1161, %v1154, %v1158
    %v1163 = vand.u32 2147483647, %v1138
    %vm1164 = vcmp.eq.f32.partialorder %v1163, 8.507059e+37
    %v1165 = vand.u32 %v1138, 2147483648
    %v1166 = vor.u32 1.1754944e-38, %v1165
    %v1167 = vsel %vm1164, %v1166, %v1162
    %v1168 = vmul.f32 1.0, %v1167
    %v1169 = vmul.f32 %v1111, %v1153
    %v1170 = vmul.f32 %v1112, %v1168
    %v1172 = vperm.slane %v1077, 0
    %v1174 = vadd.f32 %v1169, %v1172
    %v1175 = vadd.f32 %v1170, %v1172
    %v1176 = vld [vmem:[#allocation5] sm:$0xff]
    %v1177 = vld [vmem:[#allocation5 + $0x8] sm:$0xff]
    %v1178 = vld [vmem:[#allocation5 + $0x10] sm:$0xff]
    %v1179 = vld [vmem:[#allocation5 + $0x18] sm:$0xff]
    %v1180 = vld [vmem:[#allocation5 + $0x20] sm:$0xff]
    %v1181 = vld [vmem:[#allocation5 + $0x28] sm:$0xff]
    %v1182 = vld [vmem:[#allocation5 + $0x30] sm:$0xff]
    %v1183 = vld [vmem:[#allocation5 + $0x38] sm:$0xff]
    %v1184 = vld [vmem:[#allocation5 + $0x40] sm:$0xff]
    %v1185 = vld [vmem:[#allocation5 + $0x48] sm:$0xff]
    %v1186 = vld [vmem:[#allocation5 + $0x50] sm:$0xff]
    %v1187 = vld [vmem:[#allocation5 + $0x58] sm:$0xff]
    %v1188 = vld [vmem:[#allocation5 + $0x60] sm:$0xff]
    %v1189 = vld [vmem:[#allocation5 + $0x68] sm:$0xff]
    %v1190 = vld [vmem:[#allocation5 + $0x70] sm:$0xff]
    %v1191 = vld [vmem:[#allocation5 + $0x78] sm:$0xff]
    %v1192 = vld [vmem:[#allocation5 + $0x80] sm:$0xff]
    %v1193 = vld [vmem:[#allocation5 + $0x88] sm:$0xff]
    %v1194 = vld [vmem:[#allocation5 + $0x90] sm:$0xff]
    %v1195 = vld [vmem:[#allocation5 + $0x98] sm:$0xff]
    %v1196 = vld [vmem:[#allocation5 + $0xa0] sm:$0xff]
    %v1197 = vld [vmem:[#allocation5 + $0xa8] sm:$0xff]
    %v1198 = vld [vmem:[#allocation5 + $0xb0] sm:$0xff]
    %v1199 = vld [vmem:[#allocation5 + $0xb8] sm:$0xff]
    %v1200 = vld [vmem:[#allocation5 + $0xc0] sm:$0xff]
    %v1201 = vld [vmem:[#allocation5 + $0xc8] sm:$0xff]
    %v1202 = vld [vmem:[#allocation5 + $0xd0] sm:$0xff]
    %v1203 = vld [vmem:[#allocation5 + $0xd8] sm:$0xff]
    %v1204 = vld [vmem:[#allocation5 + $0xe0] sm:$0xff]
    %v1205 = vld [vmem:[#allocation5 + $0xe8] sm:$0xff]
    %v1206 = vld [vmem:[#allocation5 + $0xf0] sm:$0xff]
    %v1207 = vld [vmem:[#allocation5 + $0xf8] sm:$0xff]
    %v1208 = vpack.c.bf16 %v1176, %v1176
    %v1209 = vpack.c.bf16 %v1177, %v1177
    %v1210 = vpack.c.bf16 %v1178, %v1178
    %v1211 = vpack.c.bf16 %v1179, %v1179
    %v1212 = vpack.c.bf16 %v1180, %v1180
    %v1213 = vpack.c.bf16 %v1181, %v1181
    %v1214 = vpack.c.bf16 %v1182, %v1182
    %v1215 = vpack.c.bf16 %v1183, %v1183
    %v1216 = vpack.c.bf16 %v1184, %v1184
    %v1217 = vpack.c.bf16 %v1185, %v1185
    %v1218 = vpack.c.bf16 %v1186, %v1186
    %v1219 = vpack.c.bf16 %v1187, %v1187
    %v1220 = vpack.c.bf16 %v1188, %v1188
    %v1221 = vpack.c.bf16 %v1189, %v1189
    %v1222 = vpack.c.bf16 %v1190, %v1190
    %v1223 = vpack.c.bf16 %v1191, %v1191
    %v1224 = vpack.c.bf16 %v1192, %v1192
    %v1225 = vpack.c.bf16 %v1193, %v1193
    %v1226 = vpack.c.bf16 %v1194, %v1194
    %v1227 = vpack.c.bf16 %v1195, %v1195
    %v1228 = vpack.c.bf16 %v1196, %v1196
    %v1229 = vpack.c.bf16 %v1197, %v1197
    %v1230 = vpack.c.bf16 %v1198, %v1198
    %v1231 = vpack.c.bf16 %v1199, %v1199
    %v1232 = vpack.c.bf16 %v1200, %v1200
    %v1233 = vpack.c.bf16 %v1201, %v1201
    %v1234 = vpack.c.bf16 %v1202, %v1202
    %v1235 = vpack.c.bf16 %v1203, %v1203
    %v1236 = vpack.c.bf16 %v1204, %v1204
    %v1237 = vpack.c.bf16 %v1205, %v1205
    %v1238 = vpack.c.bf16 %v1206, %v1206
    %v1239 = vpack.c.bf16 %v1207, %v1207
    %v1240 = vpack.c.bf16 %v1175, %v1174
    %v1241 = vld [vmem:[#allocation13] sm:$0xf]
    %v1242 = vld [vmem:[#allocation13 + $0x4] sm:$0xf]
    %v1243 = vld [vmem:[#allocation13 + $0x8] sm:$0xf]
    %v1244 = vld [vmem:[#allocation13 + $0xc] sm:$0xf]
    %v1245 = vld [vmem:[#allocation13 + $0x10] sm:$0xf]
    %v1246 = vld [vmem:[#allocation13 + $0x14] sm:$0xf]
    %v1247 = vld [vmem:[#allocation13 + $0x18] sm:$0xf]
    %v1248 = vld [vmem:[#allocation13 + $0x1c] sm:$0xf]
    %v1249 = vld [vmem:[#allocation13 + $0x20] sm:$0xf]
    %v1250 = vld [vmem:[#allocation13 + $0x24] sm:$0xf]
    %v1251 = vld [vmem:[#allocation13 + $0x28] sm:$0xf]
    %v1252 = vld [vmem:[#allocation13 + $0x2c] sm:$0xf]
    %v1253 = vld [vmem:[#allocation13 + $0x30] sm:$0xf]
    %v1254 = vld [vmem:[#allocation13 + $0x34] sm:$0xf]
    %v1255 = vld [vmem:[#allocation13 + $0x38] sm:$0xf]
    %v1256 = vld [vmem:[#allocation13 + $0x3c] sm:$0xf]
    %v1257 = vld [vmem:[%s9] sm:$0x1]
    %v1259 = vperm.slane %v1257, 0
    %v1277 = vunpack.c.l.b16 %v1241
    %v1278 = vunpack.c.l.b16 %v1242
    %v1279 = vunpack.c.l.b16 %v1243
    %v1280 = vunpack.c.l.b16 %v1244
    %v1281 = vunpack.c.l.b16 %v1245
    %v1282 = vunpack.c.l.b16 %v1246
    %v1283 = vunpack.c.l.b16 %v1247
    %v1284 = vunpack.c.l.b16 %v1248
    %v1285 = vunpack.c.l.b16 %v1249
    %v1286 = vunpack.c.l.b16 %v1250
    %v1287 = vunpack.c.l.b16 %v1251
    %v1288 = vunpack.c.l.b16 %v1252
    %v1289 = vunpack.c.l.b16 %v1253
    %v1290 = vunpack.c.l.b16 %v1254
    %v1291 = vunpack.c.l.b16 %v1255
    %v1292 = vunpack.c.l.b16 %v1256
    %v1293 = vpack.c.b16 %v1278, %v1277
    %v1294 = vpack.c.b16 %v1280, %v1279
    %v1295 = vpack.c.b16 %v1282, %v1281
    %v1296 = vpack.c.b16 %v1284, %v1283
    %v1297 = vpack.c.b16 %v1286, %v1285
    %v1298 = vpack.c.b16 %v1288, %v1287
    %v1299 = vpack.c.b16 %v1290, %v1289
    %v1300 = vpack.c.b16 %v1292, %v1291
    %1309 = vmatpush.bf16.msra.mxu0 %v1300
    %1310 = vmatpush.bf16.msra.mxu0 %v1299
    %1311 = vmatpush.bf16.msra.mxu0 %v1298
    %1312 = vmatpush.bf16.msra.mxu0 %v1297
    %1313 = vmatpush.bf16.msra.mxu0 %v1296
    %1314 = vmatpush.bf16.msra.mxu0 %v1295
    %1315 = vmatpush.bf16.msra.mxu0 %v1294
    %1316 = vmatpush.bf16.msra.mxu0 %v1293
    %1317 = vmatmul.bf16.gmra.mxu0 %v1240
    %v1318 = vpop.f32.mrf.mxu0
    %v1319 = vadd.f32 %v1259, %v1318
    %v1320 = vpop.f32.mrf.mxu0
    %v1321 = vadd.f32 %v1259, %v1320
    %1322 = vdwg.mxu0
    %v1323 = vld [vmem:[#allocation14] sm:$0xff]
    %v1324 = vld [vmem:[#allocation14 + $0x8] sm:$0xff]
    %v1325 = vld [vmem:[#allocation14 + $0x10] sm:$0xff]
    %v1326 = vld [vmem:[#allocation14 + $0x18] sm:$0xff]
    %v1327 = vld [vmem:[#allocation14 + $0x20] sm:$0xff]
    %v1328 = vld [vmem:[#allocation14 + $0x28] sm:$0xff]
    %v1329 = vld [vmem:[#allocation14 + $0x30] sm:$0xff]
    %v1330 = vld [vmem:[#allocation14 + $0x38] sm:$0xff]
    %v1331 = vld [vmem:[#allocation14 + $0x40] sm:$0xff]
    %v1332 = vld [vmem:[#allocation14 + $0x48] sm:$0xff]
    %v1333 = vld [vmem:[#allocation14 + $0x50] sm:$0xff]
    %v1334 = vld [vmem:[#allocation14 + $0x58] sm:$0xff]
    %v1335 = vld [vmem:[#allocation14 + $0x60] sm:$0xff]
    %v1336 = vld [vmem:[#allocation14 + $0x68] sm:$0xff]
    %v1337 = vld [vmem:[#allocation14 + $0x70] sm:$0xff]
    %v1338 = vld [vmem:[#allocation14 + $0x78] sm:$0xff]
    %v1339 = vld [vmem:[%s11] sm:$0x3]
    %v1341 = vperm.slane %v1339, 0
    %v1342 = vperm.slane %v1339, 1
    %v1377 = vunpack.c.l.b16 %v1208
    %v1378 = vunpack.c.l.b16 %v1209
    %v1379 = vunpack.c.l.b16 %v1210
    %v1380 = vunpack.c.l.b16 %v1211
    %v1381 = vunpack.c.l.b16 %v1212
    %v1382 = vunpack.c.l.b16 %v1213
    %v1383 = vunpack.c.l.b16 %v1214
    %v1384 = vunpack.c.l.b16 %v1215
    %v1385 = vunpack.c.l.b16 %v1216
    %v1386 = vunpack.c.l.b16 %v1217
    %v1387 = vunpack.c.l.b16 %v1218
    %v1388 = vunpack.c.l.b16 %v1219
    %v1389 = vunpack.c.l.b16 %v1220
    %v1390 = vunpack.c.l.b16 %v1221
    %v1391 = vunpack.c.l.b16 %v1222
    %v1392 = vunpack.c.l.b16 %v1223
    %v1393 = vunpack.c.l.b16 %v1224
    %v1394 = vunpack.c.l.b16 %v1225
    %v1395 = vunpack.c.l.b16 %v1226
    %v1396 = vunpack.c.l.b16 %v1227
    %v1397 = vunpack.c.l.b16 %v1228
    %v1398 = vunpack.c.l.b16 %v1229
    %v1399 = vunpack.c.l.b16 %v1230
    %v1400 = vunpack.c.l.b16 %v1231
    %v1401 = vunpack.c.l.b16 %v1232
    %v1402 = vunpack.c.l.b16 %v1233
    %v1403 = vunpack.c.l.b16 %v1234
    %v1404 = vunpack.c.l.b16 %v1235
    %v1405 = vunpack.c.l.b16 %v1236
    %v1406 = vunpack.c.l.b16 %v1237
    %v1407 = vunpack.c.l.b16 %v1238
    %v1408 = vunpack.c.l.b16 %v1239
    %v1409 = vpack.c.b16 %v1378, %v1377
    %v1410 = vpack.c.b16 %v1380, %v1379
    %v1411 = vpack.c.b16 %v1382, %v1381
    %v1412 = vpack.c.b16 %v1384, %v1383
    %v1413 = vpack.c.b16 %v1386, %v1385
    %v1414 = vpack.c.b16 %v1388, %v1387
    %v1415 = vpack.c.b16 %v1390, %v1389
    %v1416 = vpack.c.b16 %v1392, %v1391
    %v1417 = vpack.c.b16 %v1394, %v1393
    %v1418 = vpack.c.b16 %v1396, %v1395
    %v1419 = vpack.c.b16 %v1398, %v1397
    %v1420 = vpack.c.b16 %v1400, %v1399
    %v1421 = vpack.c.b16 %v1402, %v1401
    %v1422 = vpack.c.b16 %v1404, %v1403
    %v1423 = vpack.c.b16 %v1406, %v1405
    %v1424 = vpack.c.b16 %v1408, %v1407
    %v1457 = vunpack.c.l.b16 %v1323
    %v1458 = vunpack.c.h.b16 %v1323
    %v1459 = vunpack.c.l.b16 %v1324
    %v1460 = vunpack.c.h.b16 %v1324
    %v1461 = vunpack.c.l.b16 %v1325
    %v1462 = vunpack.c.h.b16 %v1325
    %v1463 = vunpack.c.l.b16 %v1326
    %v1464 = vunpack.c.h.b16 %v1326
    %v1465 = vunpack.c.l.b16 %v1327
    %v1466 = vunpack.c.h.b16 %v1327
    %v1467 = vunpack.c.l.b16 %v1328
    %v1468 = vunpack.c.h.b16 %v1328
    %v1469 = vunpack.c.l.b16 %v1329
    %v1470 = vunpack.c.h.b16 %v1329
    %v1471 = vunpack.c.l.b16 %v1330
    %v1472 = vunpack.c.h.b16 %v1330
    %v1473 = vunpack.c.l.b16 %v1331
    %v1474 = vunpack.c.h.b16 %v1331
    %v1475 = vunpack.c.l.b16 %v1332
    %v1476 = vunpack.c.h.b16 %v1332
    %v1477 = vunpack.c.l.b16 %v1333
    %v1478 = vunpack.c.h.b16 %v1333
    %v1479 = vunpack.c.l.b16 %v1334
    %v1480 = vunpack.c.h.b16 %v1334
    %v1481 = vunpack.c.l.b16 %v1335
    %v1482 = vunpack.c.h.b16 %v1335
    %v1483 = vunpack.c.l.b16 %v1336
    %v1484 = vunpack.c.h.b16 %v1336
    %v1485 = vunpack.c.l.b16 %v1337
    %v1486 = vunpack.c.h.b16 %v1337
    %v1487 = vunpack.c.l.b16 %v1338
    %v1488 = vunpack.c.h.b16 %v1338
    %v1489 = vpack.c.b16 %v1459, %v1457
    %v1490 = vpack.c.b16 %v1460, %v1458
    %v1491 = vpack.c.b16 %v1463, %v1461
    %v1492 = vpack.c.b16 %v1464, %v1462
    %v1493 = vpack.c.b16 %v1467, %v1465
    %v1494 = vpack.c.b16 %v1468, %v1466
    %v1495 = vpack.c.b16 %v1471, %v1469
    %v1496 = vpack.c.b16 %v1472, %v1470
    %v1497 = vpack.c.b16 %v1475, %v1473
    %v1498 = vpack.c.b16 %v1476, %v1474
    %v1499 = vpack.c.b16 %v1479, %v1477
    %v1500 = vpack.c.b16 %v1480, %v1478
    %v1501 = vpack.c.b16 %v1483, %v1481
    %v1502 = vpack.c.b16 %v1484, %v1482
    %v1503 = vpack.c.b16 %v1487, %v1485
    %v1504 = vpack.c.b16 %v1488, %v1486
    %1521 = vmatpush.bf16.msra.mxu0 %v1503
    %1522 = vmatpush.bf16.msra.mxu0 %v1501
    %1523 = vmatpush.bf16.msra.mxu0 %v1499
    %1524 = vmatpush.bf16.msra.mxu0 %v1497
    %1525 = vmatpush.bf16.msra.mxu0 %v1495
    %1526 = vmatpush.bf16.msra.mxu0 %v1493
    %1527 = vmatpush.bf16.msra.mxu0 %v1491
    %1528 = vmatpush.bf16.msra.mxu0 %v1489
    %1529 = vmatmul.bf16.gmra.mxu0 %v1409
    %v1530 = vpop.f32.mrf.mxu0
    %v1531 = vadd.f32 %v1341, %v1530
    %v1532 = vpop.f32.mrf.mxu0
    %v1533 = vadd.f32 %v1341, %v1532
    %1534 = vmatmul.bf16.gmra.mxu0 %v1410
    %v1535 = vpop.f32.mrf.mxu0
    %v1536 = vadd.f32 %v1341, %v1535
    %v1537 = vpop.f32.mrf.mxu0
    %v1538 = vadd.f32 %v1341, %v1537
    %1539 = vmatmul.bf16.gmra.mxu0 %v1411
    %v1540 = vpop.f32.mrf.mxu0
    %v1541 = vadd.f32 %v1341, %v1540
    %v1542 = vpop.f32.mrf.mxu0
    %v1543 = vadd.f32 %v1341, %v1542
    %1544 = vmatmul.bf16.gmra.mxu0 %v1412
    %v1545 = vpop.f32.mrf.mxu0
    %v1546 = vadd.f32 %v1341, %v1545
    %v1547 = vpop.f32.mrf.mxu0
    %v1548 = vadd.f32 %v1341, %v1547
    %1549 = vmatmul.bf16.gmra.mxu0 %v1413
    %v1550 = vpop.f32.mrf.mxu0
    %v1551 = vadd.f32 %v1341, %v1550
    %v1552 = vpop.f32.mrf.mxu0
    %v1553 = vadd.f32 %v1341, %v1552
    %1554 = vmatmul.bf16.gmra.mxu0 %v1414
    %v1555 = vpop.f32.mrf.mxu0
    %v1556 = vadd.f32 %v1341, %v1555
    %v1557 = vpop.f32.mrf.mxu0
    %v1558 = vadd.f32 %v1341, %v1557
    %1559 = vmatmul.bf16.gmra.mxu0 %v1415
    %v1560 = vpop.f32.mrf.mxu0
    %v1561 = vadd.f32 %v1341, %v1560
    %v1562 = vpop.f32.mrf.mxu0
    %v1563 = vadd.f32 %v1341, %v1562
    %1564 = vmatmul.bf16.gmra.mxu0 %v1416
    %v1565 = vpop.f32.mrf.mxu0
    %v1566 = vadd.f32 %v1341, %v1565
    %v1567 = vpop.f32.mrf.mxu0
    %v1568 = vadd.f32 %v1341, %v1567
    %1569 = vmatmul.bf16.gmra.mxu0 %v1417
    %v1570 = vpop.f32.mrf.mxu0
    %v1571 = vadd.f32 %v1341, %v1570
    %v1572 = vpop.f32.mrf.mxu0
    %v1573 = vadd.f32 %v1341, %v1572
    %1574 = vmatmul.bf16.gmra.mxu0 %v1418
    %v1575 = vpop.f32.mrf.mxu0
    %v1576 = vadd.f32 %v1341, %v1575
    %v1577 = vpop.f32.mrf.mxu0
    %v1578 = vadd.f32 %v1341, %v1577
    %1579 = vmatmul.bf16.gmra.mxu0 %v1419
    %v1580 = vpop.f32.mrf.mxu0
    %v1581 = vadd.f32 %v1341, %v1580
    %v1582 = vpop.f32.mrf.mxu0
    %v1583 = vadd.f32 %v1341, %v1582
    %1584 = vmatmul.bf16.gmra.mxu0 %v1420
    %v1585 = vpop.f32.mrf.mxu0
    %v1586 = vadd.f32 %v1341, %v1585
    %v1587 = vpop.f32.mrf.mxu0
    %v1588 = vadd.f32 %v1341, %v1587
    %1589 = vmatmul.bf16.gmra.mxu0 %v1421
    %v1590 = vpop.f32.mrf.mxu0
    %v1591 = vadd.f32 %v1341, %v1590
    %v1592 = vpop.f32.mrf.mxu0
    %v1593 = vadd.f32 %v1341, %v1592
    %1594 = vmatmul.bf16.gmra.mxu0 %v1422
    %v1595 = vpop.f32.mrf.mxu0
    %v1596 = vadd.f32 %v1341, %v1595
    %v1597 = vpop.f32.mrf.mxu0
    %v1598 = vadd.f32 %v1341, %v1597
    %1599 = vmatmul.bf16.gmra.mxu0 %v1423
    %v1600 = vpop.f32.mrf.mxu0
    %v1601 = vadd.f32 %v1341, %v1600
    %v1602 = vpop.f32.mrf.mxu0
    %v1603 = vadd.f32 %v1341, %v1602
    %1604 = vmatmul.bf16.gmra.mxu0 %v1424
    %v1605 = vpop.f32.mrf.mxu0
    %v1606 = vadd.f32 %v1341, %v1605
    %v1607 = vpop.f32.mrf.mxu0
    %v1608 = vadd.f32 %v1341, %v1607
    %1609 = vdwg.mxu0
    %1610 = vmatpush.bf16.msra.mxu0 %v1504
    %1611 = vmatpush.bf16.msra.mxu0 %v1502
    %1612 = vmatpush.bf16.msra.mxu0 %v1500
    %1613 = vmatpush.bf16.msra.mxu0 %v1498
    %1614 = vmatpush.bf16.msra.mxu0 %v1496
    %1615 = vmatpush.bf16.msra.mxu0 %v1494
    %1616 = vmatpush.bf16.msra.mxu0 %v1492
    %1617 = vmatpush.bf16.msra.mxu0 %v1490
    %1618 = vmatmul.bf16.gmra.mxu0 %v1409
    %v1619 = vpop.f32.mrf.mxu0
    %v1620 = vadd.f32 %v1342, %v1619
    %v1621 = vpop.f32.mrf.mxu0
    %v1622 = vadd.f32 %v1342, %v1621
    %1623 = vmatmul.bf16.gmra.mxu0 %v1410
    %v1624 = vpop.f32.mrf.mxu0
    %v1625 = vadd.f32 %v1342, %v1624
    %v1626 = vpop.f32.mrf.mxu0
    %v1627 = vadd.f32 %v1342, %v1626
    %1628 = vmatmul.bf16.gmra.mxu0 %v1411
    %v1629 = vpop.f32.mrf.mxu0
    %v1630 = vadd.f32 %v1342, %v1629
    %v1631 = vpop.f32.mrf.mxu0
    %v1632 = vadd.f32 %v1342, %v1631
    %1633 = vmatmul.bf16.gmra.mxu0 %v1412
    %v1634 = vpop.f32.mrf.mxu0
    %v1635 = vadd.f32 %v1342, %v1634
    %v1636 = vpop.f32.mrf.mxu0
    %v1637 = vadd.f32 %v1342, %v1636
    %1638 = vmatmul.bf16.gmra.mxu0 %v1413
    %v1639 = vpop.f32.mrf.mxu0
    %v1640 = vadd.f32 %v1342, %v1639
    %v1641 = vpop.f32.mrf.mxu0
    %v1642 = vadd.f32 %v1342, %v1641
    %1643 = vmatmul.bf16.gmra.mxu0 %v1414
    %v1644 = vpop.f32.mrf.mxu0
    %v1645 = vadd.f32 %v1342, %v1644
    %v1646 = vpop.f32.mrf.mxu0
    %v1647 = vadd.f32 %v1342, %v1646
    %1648 = vmatmul.bf16.gmra.mxu0 %v1415
    %v1649 = vpop.f32.mrf.mxu0
    %v1650 = vadd.f32 %v1342, %v1649
    %v1651 = vpop.f32.mrf.mxu0
    %v1652 = vadd.f32 %v1342, %v1651
    %1653 = vmatmul.bf16.gmra.mxu0 %v1416
    %v1654 = vpop.f32.mrf.mxu0
    %v1655 = vadd.f32 %v1342, %v1654
    %v1656 = vpop.f32.mrf.mxu0
    %v1657 = vadd.f32 %v1342, %v1656
    %1658 = vmatmul.bf16.gmra.mxu0 %v1417
    %v1659 = vpop.f32.mrf.mxu0
    %v1660 = vadd.f32 %v1342, %v1659
    %v1661 = vpop.f32.mrf.mxu0
    %v1662 = vadd.f32 %v1342, %v1661
    %1663 = vmatmul.bf16.gmra.mxu0 %v1418
    %v1664 = vpop.f32.mrf.mxu0
    %v1665 = vadd.f32 %v1342, %v1664
    %v1666 = vpop.f32.mrf.mxu0
    %v1667 = vadd.f32 %v1342, %v1666
    %1668 = vmatmul.bf16.gmra.mxu0 %v1419
    %v1669 = vpop.f32.mrf.mxu0
    %v1670 = vadd.f32 %v1342, %v1669
    %v1671 = vpop.f32.mrf.mxu0
    %v1672 = vadd.f32 %v1342, %v1671
    %1673 = vmatmul.bf16.gmra.mxu0 %v1420
    %v1674 = vpop.f32.mrf.mxu0
    %v1675 = vadd.f32 %v1342, %v1674
    %v1676 = vpop.f32.mrf.mxu0
    %v1677 = vadd.f32 %v1342, %v1676
    %1678 = vmatmul.bf16.gmra.mxu0 %v1421
    %v1679 = vpop.f32.mrf.mxu0
    %v1680 = vadd.f32 %v1342, %v1679
    %v1681 = vpop.f32.mrf.mxu0
    %v1682 = vadd.f32 %v1342, %v1681
    %1683 = vmatmul.bf16.gmra.mxu0 %v1422
    %v1684 = vpop.f32.mrf.mxu0
    %v1685 = vadd.f32 %v1342, %v1684
    %v1686 = vpop.f32.mrf.mxu0
    %v1687 = vadd.f32 %v1342, %v1686
    %1688 = vmatmul.bf16.gmra.mxu0 %v1423
    %v1689 = vpop.f32.mrf.mxu0
    %v1690 = vadd.f32 %v1342, %v1689
    %v1691 = vpop.f32.mrf.mxu0
    %v1692 = vadd.f32 %v1342, %v1691
    %1693 = vmatmul.bf16.gmra.mxu0 %v1424
    %v1694 = vpop.f32.mrf.mxu0
    %v1695 = vadd.f32 %v1342, %v1694
    %v1696 = vpop.f32.mrf.mxu0
    %v1697 = vadd.f32 %v1342, %v1696
    %1698 = vdwg.mxu0
    %v1699 = vpack.c.bf16 %v1319, %v1319
    %v1700 = vpack.c.bf16 %v1321, %v1321
    %v1701 = vpack.c.bf16 %v1531, %v1531
    %v1702 = vpack.c.bf16 %v1533, %v1533
    %v1703 = vpack.c.bf16 %v1536, %v1536
    %v1704 = vpack.c.bf16 %v1538, %v1538
    %v1705 = vpack.c.bf16 %v1541, %v1541
    %v1706 = vpack.c.bf16 %v1543, %v1543
    %v1707 = vpack.c.bf16 %v1546, %v1546
    %v1708 = vpack.c.bf16 %v1548, %v1548
    %v1709 = vpack.c.bf16 %v1551, %v1551
    %v1710 = vpack.c.bf16 %v1553, %v1553
    %v1711 = vpack.c.bf16 %v1556, %v1556
    %v1712 = vpack.c.bf16 %v1558, %v1558
    %v1713 = vpack.c.bf16 %v1561, %v1561
    %v1714 = vpack.c.bf16 %v1563, %v1563
    %v1715 = vpack.c.bf16 %v1566, %v1566
    %v1716 = vpack.c.bf16 %v1568, %v1568
    %v1717 = vpack.c.bf16 %v1571, %v1571
    %v1718 = vpack.c.bf16 %v1573, %v1573
    %v1719 = vpack.c.bf16 %v1576, %v1576
    %v1720 = vpack.c.bf16 %v1578, %v1578
    %v1721 = vpack.c.bf16 %v1581, %v1581
    %v1722 = vpack.c.bf16 %v1583, %v1583
    %v1723 = vpack.c.bf16 %v1586, %v1586
    %v1724 = vpack.c.bf16 %v1588, %v1588
    %v1725 = vpack.c.bf16 %v1591, %v1591
    %v1726 = vpack.c.bf16 %v1593, %v1593
    %v1727 = vpack.c.bf16 %v1596, %v1596
    %v1728 = vpack.c.bf16 %v1598, %v1598
    %v1729 = vpack.c.bf16 %v1601, %v1601
    %v1730 = vpack.c.bf16 %v1603, %v1603
    %v1731 = vpack.c.bf16 %v1606, %v1606
    %v1732 = vpack.c.bf16 %v1608, %v1608
    %v1733 = vpack.c.bf16 %v1620, %v1620
    %v1734 = vpack.c.bf16 %v1622, %v1622
    %v1735 = vpack.c.bf16 %v1625, %v1625
    %v1736 = vpack.c.bf16 %v1627, %v1627
    %v1737 = vpack.c.bf16 %v1630, %v1630
    %v1738 = vpack.c.bf16 %v1632, %v1632
    %v1739 = vpack.c.bf16 %v1635, %v1635
    %v1740 = vpack.c.bf16 %v1637, %v1637
    %v1741 = vpack.c.bf16 %v1640, %v1640
    %v1742 = vpack.c.bf16 %v1642, %v1642
    %v1743 = vpack.c.bf16 %v1645, %v1645
    %v1744 = vpack.c.bf16 %v1647, %v1647
    %v1745 = vpack.c.bf16 %v1650, %v1650
    %v1746 = vpack.c.bf16 %v1652, %v1652
    %v1747 = vpack.c.bf16 %v1655, %v1655
    %v1748 = vpack.c.bf16 %v1657, %v1657
    %v1749 = vpack.c.bf16 %v1660, %v1660
    %v1750 = vpack.c.bf16 %v1662, %v1662
    %v1751 = vpack.c.bf16 %v1665, %v1665
    %v1752 = vpack.c.bf16 %v1667, %v1667
    %v1753 = vpack.c.bf16 %v1670, %v1670
    %v1754 = vpack.c.bf16 %v1672, %v1672
    %v1755 = vpack.c.bf16 %v1675, %v1675
    %v1756 = vpack.c.bf16 %v1677, %v1677
    %v1757 = vpack.c.bf16 %v1680, %v1680
    %v1758 = vpack.c.bf16 %v1682, %v1682
    %v1759 = vpack.c.bf16 %v1685, %v1685
    %v1760 = vpack.c.bf16 %v1687, %v1687
    %v1761 = vpack.c.bf16 %v1690, %v1690
    %v1762 = vpack.c.bf16 %v1692, %v1692
    %v1763 = vpack.c.bf16 %v1695, %v1695
    %v1764 = vpack.c.bf16 %v1697, %v1697
    %v1781 = vunpack.c.l.b16 %v1701
    %v1782 = vunpack.c.l.b16 %v1702
    %v1783 = vunpack.c.l.b16 %v1703
    %v1784 = vunpack.c.l.b16 %v1704
    %v1785 = vunpack.c.l.b16 %v1705
    %v1786 = vunpack.c.l.b16 %v1706
    %v1787 = vunpack.c.l.b16 %v1707
    %v1788 = vunpack.c.l.b16 %v1708
    %v1789 = vunpack.c.l.b16 %v1709
    %v1790 = vunpack.c.l.b16 %v1710
    %v1791 = vunpack.c.l.b16 %v1711
    %v1792 = vunpack.c.l.b16 %v1712
    %v1793 = vunpack.c.l.b16 %v1713
    %v1794 = vunpack.c.l.b16 %v1714
    %v1795 = vunpack.c.l.b16 %v1715
    %v1796 = vunpack.c.l.b16 %v1716
    %v1797 = vpack.c.b16 %v1782, %v1781
    %v1798 = vpack.c.b16 %v1784, %v1783
    %v1799 = vpack.c.b16 %v1786, %v1785
    %v1800 = vpack.c.b16 %v1788, %v1787
    %v1801 = vpack.c.b16 %v1790, %v1789
    %v1802 = vpack.c.b16 %v1792, %v1791
    %v1803 = vpack.c.b16 %v1794, %v1793
    %v1804 = vpack.c.b16 %v1796, %v1795
    %v1806 = vsel %vm468, %v1699, 0
    %v1809 = vsel %vm468, %v1797, 0
    %v1812 = vsel %vm468, %v1798, 0
    %v1815 = vsel %vm468, %v1799, 0
    %v1818 = vsel %vm468, %v1800, 0
    %v1821 = vsel %vm468, %v1801, 0
    %v1824 = vsel %vm468, %v1802, 0
    %v1827 = vsel %vm468, %v1803, 0
    %v1830 = vsel %vm468, %v1804, 0
    %1832 = vmatpush.bf16.xpose.msra.mxu0 %v1830
    %1833 = vmatpush.bf16.xpose.msra.mxu0 %v1827
    %1834 = vmatpush.bf16.xpose.msra.mxu0 %v1824
    %1835 = vmatpush.bf16.xpose.msra.mxu0 %v1821
    %1836 = vmatpush.bf16.xpose.msra.mxu0 %v1818
    %1837 = vmatpush.bf16.xpose.msra.mxu0 %v1815
    %1838 = vmatpush.bf16.xpose.msra.mxu0 %v1812
    %1839 = vmatpush.bf16.xpose.msra.mxu0 %v1809
    %1840 = vmatmul.bf16.gmra.mxu0 %v1806
    %v1841 = vpop.f32.mrf.mxu0
    %v1842 = vadd.f32 0.0, %v1841
    %v1843 = vpop.f32.mrf.mxu0
    %1844 = vdwg.mxu0
    %v1861 = vunpack.c.l.b16 %v1717
    %v1862 = vunpack.c.l.b16 %v1718
    %v1863 = vunpack.c.l.b16 %v1719
    %v1864 = vunpack.c.l.b16 %v1720
    %v1865 = vunpack.c.l.b16 %v1721
    %v1866 = vunpack.c.l.b16 %v1722
    %v1867 = vunpack.c.l.b16 %v1723
    %v1868 = vunpack.c.l.b16 %v1724
    %v1869 = vunpack.c.l.b16 %v1725
    %v1870 = vunpack.c.l.b16 %v1726
    %v1871 = vunpack.c.l.b16 %v1727
    %v1872 = vunpack.c.l.b16 %v1728
    %v1873 = vunpack.c.l.b16 %v1729
    %v1874 = vunpack.c.l.b16 %v1730
    %v1875 = vunpack.c.l.b16 %v1731
    %v1876 = vunpack.c.l.b16 %v1732
    %v1877 = vpack.c.b16 %v1862, %v1861
    %v1878 = vpack.c.b16 %v1864, %v1863
    %v1879 = vpack.c.b16 %v1866, %v1865
    %v1880 = vpack.c.b16 %v1868, %v1867
    %v1881 = vpack.c.b16 %v1870, %v1869
    %v1882 = vpack.c.b16 %v1872, %v1871
    %v1883 = vpack.c.b16 %v1874, %v1873
    %v1884 = vpack.c.b16 %v1876, %v1875
    %v1886 = vsel %vm468, %v1700, 0
    %v1889 = vsel %vm468, %v1877, 0
    %v1892 = vsel %vm468, %v1878, 0
    %v1895 = vsel %vm468, %v1879, 0
    %v1898 = vsel %vm468, %v1880, 0
    %v1901 = vsel %vm468, %v1881, 0
    %v1904 = vsel %vm468, %v1882, 0
    %v1907 = vsel %vm468, %v1883, 0
    %v1910 = vsel %vm468, %v1884, 0
    %1912 = vmatpush.bf16.xpose.msra.mxu0 %v1910
    %1913 = vmatpush.bf16.xpose.msra.mxu0 %v1907
    %1914 = vmatpush.bf16.xpose.msra.mxu0 %v1904
    %1915 = vmatpush.bf16.xpose.msra.mxu0 %v1901
    %1916 = vmatpush.bf16.xpose.msra.mxu0 %v1898
    %1917 = vmatpush.bf16.xpose.msra.mxu0 %v1895
    %1918 = vmatpush.bf16.xpose.msra.mxu0 %v1892
    %1919 = vmatpush.bf16.xpose.msra.mxu0 %v1889
    %1920 = vmatmul.bf16.gmra.mxu0 %v1886
    %v1921 = vpop.f32.mrf.mxu0
    %v1922 = vadd.f32 0.0, %v1921
    %v1923 = vpop.f32.mrf.mxu0
    %1924 = vdwg.mxu0
    %1925 = vmax.xlane.f32.xlu0 %v1842
    %v1926 = vpop.xlane.xlu0 %1925
    %1927 = vmax.xlane.f32.xlu0 %v1922
    %v1928 = vpop.xlane.xlu0 %1927
    %v1929 = vsub.f32 %v1842, %v1926
    %v1930 = vsub.f32 %v1922, %v1928
    %v1931 = vmul.f32 %v1929, 1.442695
    %v1932 = vpow.pop %v1931
    %v1933 = vmul.f32 %v1930, 1.442695
    %v1934 = vpow.pop %v1933
    %1935 = vadd.xlane.f32.xlu0 %v1932
    %v1936 = vpop.xlane.xlu0 %1935
    %1937 = vadd.xlane.f32.xlu0 %v1934
    %v1938 = vpop.xlane.xlu0 %1937
    %v1939 = vrcp.pop %v1936
    %v1940 = vrcp.pop %v1938
    %v1941 = vmul.f32 %v1932, %v1939
    %v1942 = vmul.f32 %v1934, %v1940
    %1943 = vst [vmem:[#allocation21] sm:$0xff] %v1941
    %1944 = vst [vmem:[#allocation21 + $0x8] sm:$0xff] %v1942
    %v1945 = vpack.c.bf16 %v1941, %v1941
    %v1946 = vpack.c.bf16 %v1942, %v1942
    %v1963 = vunpack.c.l.b16 %v1733
    %v1964 = vunpack.c.l.b16 %v1734
    %v1965 = vunpack.c.l.b16 %v1735
    %v1966 = vunpack.c.l.b16 %v1736
    %v1967 = vunpack.c.l.b16 %v1737
    %v1968 = vunpack.c.l.b16 %v1738
    %v1969 = vunpack.c.l.b16 %v1739
    %v1970 = vunpack.c.l.b16 %v1740
    %v1971 = vunpack.c.l.b16 %v1741
    %v1972 = vunpack.c.l.b16 %v1742
    %v1973 = vunpack.c.l.b16 %v1743
    %v1974 = vunpack.c.l.b16 %v1744
    %v1975 = vunpack.c.l.b16 %v1745
    %v1976 = vunpack.c.l.b16 %v1746
    %v1977 = vunpack.c.l.b16 %v1747
    %v1978 = vunpack.c.l.b16 %v1748
    %v1979 = vpack.c.b16 %v1964, %v1963
    %v1980 = vpack.c.b16 %v1966, %v1965
    %v1981 = vpack.c.b16 %v1968, %v1967
    %v1982 = vpack.c.b16 %v1970, %v1969
    %v1983 = vpack.c.b16 %v1972, %v1971
    %v1984 = vpack.c.b16 %v1974, %v1973
    %v1985 = vpack.c.b16 %v1976, %v1975
    %v1986 = vpack.c.b16 %v1978, %v1977
    %1995 = vmatpush.bf16.msra.mxu0 %v1986
    %1996 = vmatpush.bf16.msra.mxu0 %v1985
    %1997 = vmatpush.bf16.msra.mxu0 %v1984
    %1998 = vmatpush.bf16.msra.mxu0 %v1983
    %1999 = vmatpush.bf16.msra.mxu0 %v1982
    %2000 = vmatpush.bf16.msra.mxu0 %v1981
    %2001 = vmatpush.bf16.msra.mxu0 %v1980
    %2002 = vmatpush.bf16.msra.mxu0 %v1979
    %2003 = vmatmul.bf16.gmra.mxu0 %v1945
    %v2004 = vpop.f32.mrf.mxu0
    %v2005 = vadd.f32 0.0, %v2004
    %v2006 = vpop.f32.mrf.mxu0
    %2007 = vdwg.mxu0
    %v2024 = vunpack.c.l.b16 %v1749
    %v2025 = vunpack.c.l.b16 %v1750
    %v2026 = vunpack.c.l.b16 %v1751
    %v2027 = vunpack.c.l.b16 %v1752
    %v2028 = vunpack.c.l.b16 %v1753
    %v2029 = vunpack.c.l.b16 %v1754
    %v2030 = vunpack.c.l.b16 %v1755
    %v2031 = vunpack.c.l.b16 %v1756
    %v2032 = vunpack.c.l.b16 %v1757
    %v2033 = vunpack.c.l.b16 %v1758
    %v2034 = vunpack.c.l.b16 %v1759
    %v2035 = vunpack.c.l.b16 %v1760
    %v2036 = vunpack.c.l.b16 %v1761
    %v2037 = vunpack.c.l.b16 %v1762
    %v2038 = vunpack.c.l.b16 %v1763
    %v2039 = vunpack.c.l.b16 %v1764
    %v2040 = vpack.c.b16 %v2025, %v2024
    %v2041 = vpack.c.b16 %v2027, %v2026
    %v2042 = vpack.c.b16 %v2029, %v2028
    %v2043 = vpack.c.b16 %v2031, %v2030
    %v2044 = vpack.c.b16 %v2033, %v2032
    %v2045 = vpack.c.b16 %v2035, %v2034
    %v2046 = vpack.c.b16 %v2037, %v2036
    %v2047 = vpack.c.b16 %v2039, %v2038
    %2056 = vmatpush.bf16.msra.mxu0 %v2047
    %2057 = vmatpush.bf16.msra.mxu0 %v2046
    %2058 = vmatpush.bf16.msra.mxu0 %v2045
    %2059 = vmatpush.bf16.msra.mxu0 %v2044
    %2060 = vmatpush.bf16.msra.mxu0 %v2043
    %2061 = vmatpush.bf16.msra.mxu0 %v2042
    %2062 = vmatpush.bf16.msra.mxu0 %v2041
    %2063 = vmatpush.bf16.msra.mxu0 %v2040
    %2064 = vmatmul.bf16.gmra.mxu0 %v1946
    %v2065 = vpop.f32.mrf.mxu0
    %v2066 = vadd.f32 0.0, %v2065
    %v2067 = vpop.f32.mrf.mxu0
    %2068 = vdwg.mxu0
    %v2069 = vpack.c.bf16 %v2066, %v2005
    %v2070 = vld [vmem:[#allocation16] sm:$0xf]
    %v2071 = vld [vmem:[#allocation16 + $0x4] sm:$0xf]
    %v2072 = vld [vmem:[#allocation16 + $0x8] sm:$0xf]
    %v2073 = vld [vmem:[#allocation16 + $0xc] sm:$0xf]
    %v2075 = vunpack.c.l.b16 %v1699
    %v2076 = vpack.c.b16 %v2075, %v2075
    %2077 = vrot.lane.b32.xlu0 %v2076, 96
    %v2078 = vpop.permute.xlu0 %2077
    %2079 = vrot.lane.b32.xlu0 %v1797, 96
    %v2080 = vpop.permute.xlu0 %2079
    %2081 = vrot.lane.b32.xlu0 %v1798, 96
    %v2082 = vpop.permute.xlu0 %2081
    %2083 = vrot.lane.b32.xlu0 %v1799, 96
    %v2084 = vpop.permute.xlu0 %2083
    %2085 = vrot.lane.b32.xlu0 %v1800, 96
    %v2086 = vpop.permute.xlu0 %2085
    %2087 = vrot.lane.b32.xlu0 %v1801, 96
    %v2088 = vpop.permute.xlu0 %2087
    %2089 = vrot.lane.b32.xlu0 %v1802, 96
    %v2090 = vpop.permute.xlu0 %2089
    %2091 = vrot.lane.b32.xlu0 %v1803, 96
    %v2092 = vpop.permute.xlu0 %2091
    %2093 = vrot.lane.b32.xlu0 %v1804, 96
    %v2094 = vpop.permute.xlu0 %2093
    %v2096 = vsel %vm468, %v2078, 0
    %v2099 = vsel %vm468, %v2080, 0
    %v2102 = vsel %vm468, %v2082, 0
    %v2105 = vsel %vm468, %v2084, 0
    %v2108 = vsel %vm468, %v2086, 0
    %v2111 = vsel %vm468, %v2088, 0
    %v2114 = vsel %vm468, %v2090, 0
    %v2117 = vsel %vm468, %v2092, 0
    %v2120 = vsel %vm468, %v2094, 0
    %2122 = vmatpush.bf16.xpose.msra.mxu0 %v2120
    %2123 = vmatpush.bf16.xpose.msra.mxu0 %v2117
    %2124 = vmatpush.bf16.xpose.msra.mxu0 %v2114
    %2125 = vmatpush.bf16.xpose.msra.mxu0 %v2111
    %2126 = vmatpush.bf16.xpose.msra.mxu0 %v2108
    %2127 = vmatpush.bf16.xpose.msra.mxu0 %v2105
    %2128 = vmatpush.bf16.xpose.msra.mxu0 %v2102
    %2129 = vmatpush.bf16.xpose.msra.mxu0 %v2099
    %2130 = vmatmul.bf16.gmra.mxu0 %v2096
    %v2131 = vpop.f32.mrf.mxu0
    %v2132 = vadd.f32 0.0, %v2131
    %v2133 = vpop.f32.mrf.mxu0
    %2134 = vdwg.mxu0
    %v2136 = vunpack.c.l.b16 %v1700
    %v2137 = vpack.c.b16 %v2136, %v2136
    %2138 = vrot.lane.b32.xlu0 %v2137, 96
    %v2139 = vpop.permute.xlu0 %2138
    %2140 = vrot.lane.b32.xlu0 %v1877, 96
    %v2141 = vpop.permute.xlu0 %2140
    %2142 = vrot.lane.b32.xlu0 %v1878, 96
    %v2143 = vpop.permute.xlu0 %2142
    %2144 = vrot.lane.b32.xlu0 %v1879, 96
    %v2145 = vpop.permute.xlu0 %2144
    %2146 = vrot.lane.b32.xlu0 %v1880, 96
    %v2147 = vpop.permute.xlu0 %2146
    %2148 = vrot.lane.b32.xlu0 %v1881, 96
    %v2149 = vpop.permute.xlu0 %2148
    %2150 = vrot.lane.b32.xlu0 %v1882, 96
    %v2151 = vpop.permute.xlu0 %2150
    %2152 = vrot.lane.b32.xlu0 %v1883, 96
    %v2153 = vpop.permute.xlu0 %2152
    %2154 = vrot.lane.b32.xlu0 %v1884, 96
    %v2155 = vpop.permute.xlu0 %2154
    %v2157 = vsel %vm468, %v2139, 0
    %v2160 = vsel %vm468, %v2141, 0
    %v2163 = vsel %vm468, %v2143, 0
    %v2166 = vsel %vm468, %v2145, 0
    %v2169 = vsel %vm468, %v2147, 0
    %v2172 = vsel %vm468, %v2149, 0
    %v2175 = vsel %vm468, %v2151, 0
    %v2178 = vsel %vm468, %v2153, 0
    %v2181 = vsel %vm468, %v2155, 0
    %2183 = vmatpush.bf16.xpose.msra.mxu0 %v2181
    %2184 = vmatpush.bf16.xpose.msra.mxu0 %v2178
    %2185 = vmatpush.bf16.xpose.msra.mxu0 %v2175
    %2186 = vmatpush.bf16.xpose.msra.mxu0 %v2172
    %2187 = vmatpush.bf16.xpose.msra.mxu0 %v2169
    %2188 = vmatpush.bf16.xpose.msra.mxu0 %v2166
    %2189 = vmatpush.bf16.xpose.msra.mxu0 %v2163
    %2190 = vmatpush.bf16.xpose.msra.mxu0 %v2160
    %2191 = vmatmul.bf16.gmra.mxu0 %v2157
    %v2192 = vpop.f32.mrf.mxu0
    %v2193 = vadd.f32 0.0, %v2192
    %v2194 = vpop.f32.mrf.mxu0
    %2195 = vdwg.mxu0
    %2196 = vmax.xlane.f32.xlu0 %v2132
    %v2197 = vpop.xlane.xlu0 %2196
    %2198 = vmax.xlane.f32.xlu0 %v2193
    %v2199 = vpop.xlane.xlu0 %2198
    %v2200 = vsub.f32 %v2132, %v2197
    %v2201 = vsub.f32 %v2193, %v2199
    %v2202 = vmul.f32 %v2200, 1.442695
    %v2203 = vpow.pop %v2202
    %v2204 = vmul.f32 %v2201, 1.442695
    %v2205 = vpow.pop %v2204
    %2206 = vadd.xlane.f32.xlu0 %v2203
    %v2207 = vpop.xlane.xlu0 %2206
    %2208 = vadd.xlane.f32.xlu0 %v2205
    %v2209 = vpop.xlane.xlu0 %2208
    %v2210 = vrcp.pop %v2207
    %v2211 = vrcp.pop %v2209
    %v2212 = vmul.f32 %v2203, %v2210
    %v2213 = vmul.f32 %v2205, %v2211
    %s2214 = scalar_lea.vmem [#allocation21], 16
    %2215 = vst [vmem:[%s2214] sm:$0xff] %v2212
    %2216 = vst [vmem:[%s2214 + $0x8] sm:$0xff] %v2213
    %v2217 = vpack.c.bf16 %v2212, %v2212
    %v2218 = vpack.c.bf16 %v2213, %v2213
    %2219 = vrot.lane.b32.xlu0 %v1979, 96
    %v2220 = vpop.permute.xlu0 %2219
    %2221 = vrot.lane.b32.xlu0 %v1980, 96
    %v2222 = vpop.permute.xlu0 %2221
    %2223 = vrot.lane.b32.xlu0 %v1981, 96
    %v2224 = vpop.permute.xlu0 %2223
    %2225 = vrot.lane.b32.xlu0 %v1982, 96
    %v2226 = vpop.permute.xlu0 %2225
    %2227 = vrot.lane.b32.xlu0 %v1983, 96
    %v2228 = vpop.permute.xlu0 %2227
    %2229 = vrot.lane.b32.xlu0 %v1984, 96
    %v2230 = vpop.permute.xlu0 %2229
    %2231 = vrot.lane.b32.xlu0 %v1985, 96
    %v2232 = vpop.permute.xlu0 %2231
    %2233 = vrot.lane.b32.xlu0 %v1986, 96
    %v2234 = vpop.permute.xlu0 %2233
    %2243 = vmatpush.bf16.msra.mxu0 %v2234
    %2244 = vmatpush.bf16.msra.mxu0 %v2232
    %2245 = vmatpush.bf16.msra.mxu0 %v2230
    %2246 = vmatpush.bf16.msra.mxu0 %v2228
    %2247 = vmatpush.bf16.msra.mxu0 %v2226
    %2248 = vmatpush.bf16.msra.mxu0 %v2224
    %2249 = vmatpush.bf16.msra.mxu0 %v2222
    %2250 = vmatpush.bf16.msra.mxu0 %v2220
    %2251 = vmatmul.bf16.gmra.mxu0 %v2217
    %v2252 = vpop.f32.mrf.mxu0
    %v2253 = vadd.f32 0.0, %v2252
    %v2254 = vpop.f32.mrf.mxu0
    %2255 = vdwg.mxu0
    %2256 = vrot.lane.b32.xlu0 %v2040, 96
    %v2257 = vpop.permute.xlu0 %2256
    %2258 = vrot.lane.b32.xlu0 %v2041, 96
    %v2259 = vpop.permute.xlu0 %2258
    %2260 = vrot.lane.b32.xlu0 %v2042, 96
    %v2261 = vpop.permute.xlu0 %2260
    %2262 = vrot.lane.b32.xlu0 %v2043, 96
    %v2263 = vpop.permute.xlu0 %2262
    %2264 = vrot.lane.b32.xlu0 %v2044, 96
    %v2265 = vpop.permute.xlu0 %2264
    %2266 = vrot.lane.b32.xlu0 %v2045, 96
    %v2267 = vpop.permute.xlu0 %2266
    %2268 = vrot.lane.b32.xlu0 %v2046, 96
    %v2269 = vpop.permute.xlu0 %2268
    %2270 = vrot.lane.b32.xlu0 %v2047, 96
    %v2271 = vpop.permute.xlu0 %2270
    %2280 = vmatpush.bf16.msra.mxu0 %v2271
    %2281 = vmatpush.bf16.msra.mxu0 %v2269
    %2282 = vmatpush.bf16.msra.mxu0 %v2267
    %2283 = vmatpush.bf16.msra.mxu0 %v2265
    %2284 = vmatpush.bf16.msra.mxu0 %v2263
    %2285 = vmatpush.bf16.msra.mxu0 %v2261
    %2286 = vmatpush.bf16.msra.mxu0 %v2259
    %2287 = vmatpush.bf16.msra.mxu0 %v2257
    %2288 = vmatmul.bf16.gmra.mxu0 %v2218
    %v2289 = vpop.f32.mrf.mxu0
    %v2290 = vadd.f32 0.0, %v2289
    %v2291 = vpop.f32.mrf.mxu0
    %2292 = vdwg.mxu0
    %v2293 = vpack.c.bf16 %v2290, %v2253
    %s2294 = scalar_lea.vmem [#allocation16], 16
    %v2295 = vld [vmem:[%s2294] sm:$0xf]
    %v2296 = vld [vmem:[%s2294 + $0x4] sm:$0xf]
    %v2297 = vld [vmem:[%s2294 + $0x8] sm:$0xf]
    %v2298 = vld [vmem:[%s2294 + $0xc] sm:$0xf]
    %v2303 = vunpack.c.l.b16 %v2295
    %v2304 = vunpack.c.l.b16 %v2296
    %v2305 = vunpack.c.l.b16 %v2297
    %v2306 = vunpack.c.l.b16 %v2298
    %v2307 = vpack.c.b16 %v2304, %v2303
    %v2308 = vpack.c.b16 %v2306, %v2305
    %v2312 = vsel %vm468, %v2293, 0
    %2314 = vmatpush.bf16.msra.mxu0 0
    %2315 = vmatpush.bf16.msra.mxu0 0
    %2316 = vmatpush.bf16.msra.mxu0 0
    %2317 = vmatpush.bf16.msra.mxu0 0
    %2318 = vmatpush.bf16.msra.mxu0 0
    %2319 = vmatpush.bf16.msra.mxu0 0
    %2320 = vmatpush.bf16.msra.mxu0 %v2308
    %2321 = vmatpush.bf16.msra.mxu0 %v2307
    %2322 = vmatmul.bf16.gmra.mxu0 %v2312
    %v2323 = vpop.f32.mrf.mxu0
    %v2324 = vadd.f32 0.0, %v2323
    %v2325 = vpop.f32.mrf.mxu0
    %v2326 = vadd.f32 0.0, %v2325
    %2327 = vdwg.mxu0
    %v2332 = vunpack.c.l.b16 %v2070
    %v2333 = vunpack.c.l.b16 %v2071
    %v2334 = vunpack.c.l.b16 %v2072
    %v2335 = vunpack.c.l.b16 %v2073
    %v2336 = vpack.c.b16 %v2333, %v2332
    %v2337 = vpack.c.b16 %v2335, %v2334
    %v2341 = vsel %vm468, %v2069, 0
    %2343 = vmatpush.bf16.msra.mxu0 0
    %2344 = vmatpush.bf16.msra.mxu0 0
    %2345 = vmatpush.bf16.msra.mxu0 0
    %2346 = vmatpush.bf16.msra.mxu0 0
    %2347 = vmatpush.bf16.msra.mxu0 0
    %2348 = vmatpush.bf16.msra.mxu0 0
    %2349 = vmatpush.bf16.msra.mxu0 %v2337
    %2350 = vmatpush.bf16.msra.mxu0 %v2336
    %2351 = vmatmul.bf16.gmra.mxu0 %v2341
    %v2352 = vpop.f32.mrf.mxu0
    %v2353 = vadd.f32 %v2324, %v2352
    %v2354 = vpop.f32.mrf.mxu0
    %v2355 = vadd.f32 %v2326, %v2354
    %2356 = vdwg.mxu0
    %2357 = vrot.lane.b32.xlu0 %v2076, 64
    %v2358 = vpop.permute.xlu0 %2357
    %2359 = vrot.lane.b32.xlu0 %v1797, 64
    %v2360 = vpop.permute.xlu0 %2359
    %2361 = vrot.lane.b32.xlu0 %v1798, 64
    %v2362 = vpop.permute.xlu0 %2361
    %2363 = vrot.lane.b32.xlu0 %v1799, 64
    %v2364 = vpop.permute.xlu0 %2363
    %2365 = vrot.lane.b32.xlu0 %v1800, 64
    %v2366 = vpop.permute.xlu0 %2365
    %2367 = vrot.lane.b32.xlu0 %v1801, 64
    %v2368 = vpop.permute.xlu0 %2367
    %2369 = vrot.lane.b32.xlu0 %v1802, 64
    %v2370 = vpop.permute.xlu0 %2369
    %2371 = vrot.lane.b32.xlu0 %v1803, 64
    %v2372 = vpop.permute.xlu0 %2371
    %2373 = vrot.lane.b32.xlu0 %v1804, 64
    %v2374 = vpop.permute.xlu0 %2373
    %v2376 = vsel %vm468, %v2358, 0
    %v2379 = vsel %vm468, %v2360, 0
    %v2382 = vsel %vm468, %v2362, 0
    %v2385 = vsel %vm468, %v2364, 0
    %v2388 = vsel %vm468, %v2366, 0
    %v2391 = vsel %vm468, %v2368, 0
    %v2394 = vsel %vm468, %v2370, 0
    %v2397 = vsel %vm468, %v2372, 0
    %v2400 = vsel %vm468, %v2374, 0
    %2402 = vmatpush.bf16.xpose.msra.mxu0 %v2400
    %2403 = vmatpush.bf16.xpose.msra.mxu0 %v2397
    %2404 = vmatpush.bf16.xpose.msra.mxu0 %v2394
    %2405 = vmatpush.bf16.xpose.msra.mxu0 %v2391
    %2406 = vmatpush.bf16.xpose.msra.mxu0 %v2388
    %2407 = vmatpush.bf16.xpose.msra.mxu0 %v2385
    %2408 = vmatpush.bf16.xpose.msra.mxu0 %v2382
    %2409 = vmatpush.bf16.xpose.msra.mxu0 %v2379
    %2410 = vmatmul.bf16.gmra.mxu0 %v2376
    %v2411 = vpop.f32.mrf.mxu0
    %v2412 = vadd.f32 0.0, %v2411
    %v2413 = vpop.f32.mrf.mxu0
    %2414 = vdwg.mxu0
    %2415 = vrot.lane.b32.xlu0 %v2137, 64
    %v2416 = vpop.permute.xlu0 %2415
    %2417 = vrot.lane.b32.xlu0 %v1877, 64
    %v2418 = vpop.permute.xlu0 %2417
    %2419 = vrot.lane.b32.xlu0 %v1878, 64
    %v2420 = vpop.permute.xlu0 %2419
    %2421 = vrot.lane.b32.xlu0 %v1879, 64
    %v2422 = vpop.permute.xlu0 %2421
    %2423 = vrot.lane.b32.xlu0 %v1880, 64
    %v2424 = vpop.permute.xlu0 %2423
    %2425 = vrot.lane.b32.xlu0 %v1881, 64
    %v2426 = vpop.permute.xlu0 %2425
    %2427 = vrot.lane.b32.xlu0 %v1882, 64
    %v2428 = vpop.permute.xlu0 %2427
    %2429 = vrot.lane.b32.xlu0 %v1883, 64
    %v2430 = vpop.permute.xlu0 %2429
    %2431 = vrot.lane.b32.xlu0 %v1884, 64
    %v2432 = vpop.permute.xlu0 %2431
    %v2434 = vsel %vm468, %v2416, 0
    %v2437 = vsel %vm468, %v2418, 0
    %v2440 = vsel %vm468, %v2420, 0
    %v2443 = vsel %vm468, %v2422, 0
    %v2446 = vsel %vm468, %v2424, 0
    %v2449 = vsel %vm468, %v2426, 0
    %v2452 = vsel %vm468, %v2428, 0
    %v2455 = vsel %vm468, %v2430, 0
    %v2458 = vsel %vm468, %v2432, 0
    %2460 = vmatpush.bf16.xpose.msra.mxu0 %v2458
    %2461 = vmatpush.bf16.xpose.msra.mxu0 %v2455
    %2462 = vmatpush.bf16.xpose.msra.mxu0 %v2452
    %2463 = vmatpush.bf16.xpose.msra.mxu0 %v2449
    %2464 = vmatpush.bf16.xpose.msra.mxu0 %v2446
    %2465 = vmatpush.bf16.xpose.msra.mxu0 %v2443
    %2466 = vmatpush.bf16.xpose.msra.mxu0 %v2440
    %2467 = vmatpush.bf16.xpose.msra.mxu0 %v2437
    %2468 = vmatmul.bf16.gmra.mxu0 %v2434
    %v2469 = vpop.f32.mrf.mxu0
    %v2470 = vadd.f32 0.0, %v2469
    %v2471 = vpop.f32.mrf.mxu0
    %2472 = vdwg.mxu0
    %2473 = vmax.xlane.f32.xlu0 %v2412
    %v2474 = vpop.xlane.xlu0 %2473
    %2475 = vmax.xlane.f32.xlu0 %v2470
    %v2476 = vpop.xlane.xlu0 %2475
    %v2477 = vsub.f32 %v2412, %v2474
    %v2478 = vsub.f32 %v2470, %v2476
    %v2479 = vmul.f32 %v2477, 1.442695
    %v2480 = vpow.pop %v2479
    %v2481 = vmul.f32 %v2478, 1.442695
    %v2482 = vpow.pop %v2481
    %2483 = vadd.xlane.f32.xlu0 %v2480
    %v2484 = vpop.xlane.xlu0 %2483
    %2485 = vadd.xlane.f32.xlu0 %v2482
    %v2486 = vpop.xlane.xlu0 %2485
    %v2487 = vrcp.pop %v2484
    %v2488 = vrcp.pop %v2486
    %v2489 = vmul.f32 %v2480, %v2487
    %v2490 = vmul.f32 %v2482, %v2488
    %s2491 = scalar_lea.vmem [#allocation21], 32
    %2492 = vst [vmem:[%s2491] sm:$0xff] %v2489
    %2493 = vst [vmem:[%s2491 + $0x8] sm:$0xff] %v2490
    %v2494 = vpack.c.bf16 %v2489, %v2489
    %v2495 = vpack.c.bf16 %v2490, %v2490
    %2496 = vrot.lane.b32.xlu0 %v1979, 64
    %v2497 = vpop.permute.xlu0 %2496
    %2498 = vrot.lane.b32.xlu0 %v1980, 64
    %v2499 = vpop.permute.xlu0 %2498
    %2500 = vrot.lane.b32.xlu0 %v1981, 64
    %v2501 = vpop.permute.xlu0 %2500
    %2502 = vrot.lane.b32.xlu0 %v1982, 64
    %v2503 = vpop.permute.xlu0 %2502
    %2504 = vrot.lane.b32.xlu0 %v1983, 64
    %v2505 = vpop.permute.xlu0 %2504
    %2506 = vrot.lane.b32.xlu0 %v1984, 64
    %v2507 = vpop.permute.xlu0 %2506
    %2508 = vrot.lane.b32.xlu0 %v1985, 64
    %v2509 = vpop.permute.xlu0 %2508
    %2510 = vrot.lane.b32.xlu0 %v1986, 64
    %v2511 = vpop.permute.xlu0 %2510
    %2520 = vmatpush.bf16.msra.mxu0 %v2511
    %2521 = vmatpush.bf16.msra.mxu0 %v2509
    %2522 = vmatpush.bf16.msra.mxu0 %v2507
    %2523 = vmatpush.bf16.msra.mxu0 %v2505
    %2524 = vmatpush.bf16.msra.mxu0 %v2503
    %2525 = vmatpush.bf16.msra.mxu0 %v2501
    %2526 = vmatpush.bf16.msra.mxu0 %v2499
    %2527 = vmatpush.bf16.msra.mxu0 %v2497
    %2528 = vmatmul.bf16.gmra.mxu0 %v2494
    %v2529 = vpop.f32.mrf.mxu0
    %v2530 = vadd.f32 0.0, %v2529
    %v2531 = vpop.f32.mrf.mxu0
    %2532 = vdwg.mxu0
    %2533 = vrot.lane.b32.xlu0 %v2040, 64
    %v2534 = vpop.permute.xlu0 %2533
    %2535 = vrot.lane.b32.xlu0 %v2041, 64
    %v2536 = vpop.permute.xlu0 %2535
    %2537 = vrot.lane.b32.xlu0 %v2042, 64
    %v2538 = vpop.permute.xlu0 %2537
    %2539 = vrot.lane.b32.xlu0 %v2043, 64
    %v2540 = vpop.permute.xlu0 %2539
    %2541 = vrot.lane.b32.xlu0 %v2044, 64
    %v2542 = vpop.permute.xlu0 %2541
    %2543 = vrot.lane.b32.xlu0 %v2045, 64
    %v2544 = vpop.permute.xlu0 %2543
    %2545 = vrot.lane.b32.xlu0 %v2046, 64
    %v2546 = vpop.permute.xlu0 %2545
    %2547 = vrot.lane.b32.xlu0 %v2047, 64
    %v2548 = vpop.permute.xlu0 %2547
    %2557 = vmatpush.bf16.msra.mxu0 %v2548
    %2558 = vmatpush.bf16.msra.mxu0 %v2546
    %2559 = vmatpush.bf16.msra.mxu0 %v2544
    %2560 = vmatpush.bf16.msra.mxu0 %v2542
    %2561 = vmatpush.bf16.msra.mxu0 %v2540
    %2562 = vmatpush.bf16.msra.mxu0 %v2538
    %2563 = vmatpush.bf16.msra.mxu0 %v2536
    %2564 = vmatpush.bf16.msra.mxu0 %v2534
    %2565 = vmatmul.bf16.gmra.mxu0 %v2495
    %v2566 = vpop.f32.mrf.mxu0
    %v2567 = vadd.f32 0.0, %v2566
    %v2568 = vpop.f32.mrf.mxu0
    %2569 = vdwg.mxu0
    %v2570 = vpack.c.bf16 %v2567, %v2530
    %s2571 = scalar_lea.vmem [#allocation16], 32
    %v2572 = vld [vmem:[%s2571] sm:$0xf]
    %v2573 = vld [vmem:[%s2571 + $0x4] sm:$0xf]
    %v2574 = vld [vmem:[%s2571 + $0x8] sm:$0xf]
    %v2575 = vld [vmem:[%s2571 + $0xc] sm:$0xf]
    %v2580 = vunpack.c.l.b16 %v2572
    %v2581 = vunpack.c.l.b16 %v2573
    %v2582 = vunpack.c.l.b16 %v2574
    %v2583 = vunpack.c.l.b16 %v2575
    %v2584 = vpack.c.b16 %v2581, %v2580
    %v2585 = vpack.c.b16 %v2583, %v2582
    %v2589 = vsel %vm468, %v2570, 0
    %2591 = vmatpush.bf16.msra.mxu0 0
    %2592 = vmatpush.bf16.msra.mxu0 0
    %2593 = vmatpush.bf16.msra.mxu0 0
    %2594 = vmatpush.bf16.msra.mxu0 0
    %2595 = vmatpush.bf16.msra.mxu0 0
    %2596 = vmatpush.bf16.msra.mxu0 0
    %2597 = vmatpush.bf16.msra.mxu0 %v2585
    %2598 = vmatpush.bf16.msra.mxu0 %v2584
    %2599 = vmatmul.bf16.gmra.mxu0 %v2589
    %v2600 = vpop.f32.mrf.mxu0
    %v2601 = vadd.f32 0.0, %v2600
    %v2602 = vpop.f32.mrf.mxu0
    %v2603 = vadd.f32 0.0, %v2602
    %2604 = vdwg.mxu0
    %v2605 = vadd.f32 %v2353, %v2601
    %v2606 = vadd.f32 %v2355, %v2603
    %2607 = vrot.lane.b32.xlu0 %v2076, 32
    %v2608 = vpop.permute.xlu0 %2607
    %2609 = vrot.lane.b32.xlu0 %v1797, 32
    %v2610 = vpop.permute.xlu0 %2609
    %2611 = vrot.lane.b32.xlu0 %v1798, 32
    %v2612 = vpop.permute.xlu0 %2611
    %2613 = vrot.lane.b32.xlu0 %v1799, 32
    %v2614 = vpop.permute.xlu0 %2613
    %2615 = vrot.lane.b32.xlu0 %v1800, 32
    %v2616 = vpop.permute.xlu0 %2615
    %2617 = vrot.lane.b32.xlu0 %v1801, 32
    %v2618 = vpop.permute.xlu0 %2617
    %2619 = vrot.lane.b32.xlu0 %v1802, 32
    %v2620 = vpop.permute.xlu0 %2619
    %2621 = vrot.lane.b32.xlu0 %v1803, 32
    %v2622 = vpop.permute.xlu0 %2621
    %2623 = vrot.lane.b32.xlu0 %v1804, 32
    %v2624 = vpop.permute.xlu0 %2623
    %v2626 = vsel %vm468, %v2608, 0
    %v2629 = vsel %vm468, %v2610, 0
    %v2632 = vsel %vm468, %v2612, 0
    %v2635 = vsel %vm468, %v2614, 0
    %v2638 = vsel %vm468, %v2616, 0
    %v2641 = vsel %vm468, %v2618, 0
    %v2644 = vsel %vm468, %v2620, 0
    %v2647 = vsel %vm468, %v2622, 0
    %v2650 = vsel %vm468, %v2624, 0
    %2652 = vmatpush.bf16.xpose.msra.mxu0 %v2650
    %2653 = vmatpush.bf16.xpose.msra.mxu0 %v2647
    %2654 = vmatpush.bf16.xpose.msra.mxu0 %v2644
    %2655 = vmatpush.bf16.xpose.msra.mxu0 %v2641
    %2656 = vmatpush.bf16.xpose.msra.mxu0 %v2638
    %2657 = vmatpush.bf16.xpose.msra.mxu0 %v2635
    %2658 = vmatpush.bf16.xpose.msra.mxu0 %v2632
    %2659 = vmatpush.bf16.xpose.msra.mxu0 %v2629
    %2660 = vmatmul.bf16.gmra.mxu0 %v2626
    %v2661 = vpop.f32.mrf.mxu0
    %v2662 = vadd.f32 0.0, %v2661
    %v2663 = vpop.f32.mrf.mxu0
    %2664 = vdwg.mxu0
    %2665 = vrot.lane.b32.xlu0 %v2137, 32
    %v2666 = vpop.permute.xlu0 %2665
    %2667 = vrot.lane.b32.xlu0 %v1877, 32
    %v2668 = vpop.permute.xlu0 %2667
    %2669 = vrot.lane.b32.xlu0 %v1878, 32
    %v2670 = vpop.permute.xlu0 %2669
    %2671 = vrot.lane.b32.xlu0 %v1879, 32
    %v2672 = vpop.permute.xlu0 %2671
    %2673 = vrot.lane.b32.xlu0 %v1880, 32
    %v2674 = vpop.permute.xlu0 %2673
    %2675 = vrot.lane.b32.xlu0 %v1881, 32
    %v2676 = vpop.permute.xlu0 %2675
    %2677 = vrot.lane.b32.xlu0 %v1882, 32
    %v2678 = vpop.permute.xlu0 %2677
    %2679 = vrot.lane.b32.xlu0 %v1883, 32
    %v2680 = vpop.permute.xlu0 %2679
    %2681 = vrot.lane.b32.xlu0 %v1884, 32
    %v2682 = vpop.permute.xlu0 %2681
    %v2684 = vsel %vm468, %v2666, 0
    %v2687 = vsel %vm468, %v2668, 0
    %v2690 = vsel %vm468, %v2670, 0
    %v2693 = vsel %vm468, %v2672, 0
    %v2696 = vsel %vm468, %v2674, 0
    %v2699 = vsel %vm468, %v2676, 0
    %v2702 = vsel %vm468, %v2678, 0
    %v2705 = vsel %vm468, %v2680, 0
    %v2708 = vsel %vm468, %v2682, 0
    %2710 = vmatpush.bf16.xpose.msra.mxu0 %v2708
    %2711 = vmatpush.bf16.xpose.msra.mxu0 %v2705
    %2712 = vmatpush.bf16.xpose.msra.mxu0 %v2702
    %2713 = vmatpush.bf16.xpose.msra.mxu0 %v2699
    %2714 = vmatpush.bf16.xpose.msra.mxu0 %v2696
    %2715 = vmatpush.bf16.xpose.msra.mxu0 %v2693
    %2716 = vmatpush.bf16.xpose.msra.mxu0 %v2690
    %2717 = vmatpush.bf16.xpose.msra.mxu0 %v2687
    %2718 = vmatmul.bf16.gmra.mxu0 %v2684
    %v2719 = vpop.f32.mrf.mxu0
    %v2720 = vadd.f32 0.0, %v2719
    %v2721 = vpop.f32.mrf.mxu0
    %2722 = vdwg.mxu0
    %2723 = vmax.xlane.f32.xlu0 %v2662
    %v2724 = vpop.xlane.xlu0 %2723
    %2725 = vmax.xlane.f32.xlu0 %v2720
    %v2726 = vpop.xlane.xlu0 %2725
    %v2727 = vsub.f32 %v2662, %v2724
    %v2728 = vsub.f32 %v2720, %v2726
    %v2729 = vmul.f32 %v2727, 1.442695
    %v2730 = vpow.pop %v2729
    %v2731 = vmul.f32 %v2728, 1.442695
    %v2732 = vpow.pop %v2731
    %2733 = vadd.xlane.f32.xlu0 %v2730
    %v2734 = vpop.xlane.xlu0 %2733
    %2735 = vadd.xlane.f32.xlu0 %v2732
    %v2736 = vpop.xlane.xlu0 %2735
    %v2737 = vrcp.pop %v2734
    %v2738 = vrcp.pop %v2736
    %v2739 = vmul.f32 %v2730, %v2737
    %v2740 = vmul.f32 %v2732, %v2738
    %s2741 = scalar_lea.vmem [#allocation21], 48
    %2742 = vst [vmem:[%s2741] sm:$0xff] %v2739
    %2743 = vst [vmem:[%s2741 + $0x8] sm:$0xff] %v2740
    %v2744 = vpack.c.bf16 %v2739, %v2739
    %v2745 = vpack.c.bf16 %v2740, %v2740
    %2746 = vrot.lane.b32.xlu0 %v1979, 32
    %v2747 = vpop.permute.xlu0 %2746
    %2748 = vrot.lane.b32.xlu0 %v1980, 32
    %v2749 = vpop.permute.xlu0 %2748
    %2750 = vrot.lane.b32.xlu0 %v1981, 32
    %v2751 = vpop.permute.xlu0 %2750
    %2752 = vrot.lane.b32.xlu0 %v1982, 32
    %v2753 = vpop.permute.xlu0 %2752
    %2754 = vrot.lane.b32.xlu0 %v1983, 32
    %v2755 = vpop.permute.xlu0 %2754
    %2756 = vrot.lane.b32.xlu0 %v1984, 32
    %v2757 = vpop.permute.xlu0 %2756
    %2758 = vrot.lane.b32.xlu0 %v1985, 32
    %v2759 = vpop.permute.xlu0 %2758
    %2760 = vrot.lane.b32.xlu0 %v1986, 32
    %v2761 = vpop.permute.xlu0 %2760
    %2770 = vmatpush.bf16.msra.mxu0 %v2761
    %2771 = vmatpush.bf16.msra.mxu0 %v2759
    %2772 = vmatpush.bf16.msra.mxu0 %v2757
    %2773 = vmatpush.bf16.msra.mxu0 %v2755
    %2774 = vmatpush.bf16.msra.mxu0 %v2753
    %2775 = vmatpush.bf16.msra.mxu0 %v2751
    %2776 = vmatpush.bf16.msra.mxu0 %v2749
    %2777 = vmatpush.bf16.msra.mxu0 %v2747
    %2778 = vmatmul.bf16.gmra.mxu0 %v2744
    %v2779 = vpop.f32.mrf.mxu0
    %v2780 = vadd.f32 0.0, %v2779
    %v2781 = vpop.f32.mrf.mxu0
    %2782 = vdwg.mxu0
    %2783 = vrot.lane.b32.xlu0 %v2040, 32
    %v2784 = vpop.permute.xlu0 %2783
    %2785 = vrot.lane.b32.xlu0 %v2041, 32
    %v2786 = vpop.permute.xlu0 %2785
    %2787 = vrot.lane.b32.xlu0 %v2042, 32
    %v2788 = vpop.permute.xlu0 %2787
    %2789 = vrot.lane.b32.xlu0 %v2043, 32
    %v2790 = vpop.permute.xlu0 %2789
    %2791 = vrot.lane.b32.xlu0 %v2044, 32
    %v2792 = vpop.permute.xlu0 %2791
    %2793 = vrot.lane.b32.xlu0 %v2045, 32
    %v2794 = vpop.permute.xlu0 %2793
    %2795 = vrot.lane.b32.xlu0 %v2046, 32
    %v2796 = vpop.permute.xlu0 %2795
    %2797 = vrot.lane.b32.xlu0 %v2047, 32
    %v2798 = vpop.permute.xlu0 %2797
    %2807 = vmatpush.bf16.msra.mxu0 %v2798
    %2808 = vmatpush.bf16.msra.mxu0 %v2796
    %2809 = vmatpush.bf16.msra.mxu0 %v2794
    %2810 = vmatpush.bf16.msra.mxu0 %v2792
    %2811 = vmatpush.bf16.msra.mxu0 %v2790
    %2812 = vmatpush.bf16.msra.mxu0 %v2788
    %2813 = vmatpush.bf16.msra.mxu0 %v2786
    %2814 = vmatpush.bf16.msra.mxu0 %v2784
    %2815 = vmatmul.bf16.gmra.mxu0 %v2745
    %v2816 = vpop.f32.mrf.mxu0
    %v2817 = vadd.f32 0.0, %v2816
    %v2818 = vpop.f32.mrf.mxu0
    %2819 = vdwg.mxu0
    %v2820 = vpack.c.bf16 %v2817, %v2780
    %s2821 = scalar_lea.vmem [#allocation16], 48
    %v2822 = vld [vmem:[%s2821] sm:$0xf]
    %v2823 = vld [vmem:[%s2821 + $0x4] sm:$0xf]
    %v2824 = vld [vmem:[%s2821 + $0x8] sm:$0xf]
    %v2825 = vld [vmem:[%s2821 + $0xc] sm:$0xf]
    %v2830 = vunpack.c.l.b16 %v2822
    %v2831 = vunpack.c.l.b16 %v2823
    %v2832 = vunpack.c.l.b16 %v2824
    %v2833 = vunpack.c.l.b16 %v2825
    %v2834 = vpack.c.b16 %v2831, %v2830
    %v2835 = vpack.c.b16 %v2833, %v2832
    %v2839 = vsel %vm468, %v2820, 0
    %2841 = vmatpush.bf16.msra.mxu0 0
    %2842 = vmatpush.bf16.msra.mxu0 0
    %2843 = vmatpush.bf16.msra.mxu0 0
    %2844 = vmatpush.bf16.msra.mxu0 0
    %2845 = vmatpush.bf16.msra.mxu0 0
    %2846 = vmatpush.bf16.msra.mxu0 0
    %2847 = vmatpush.bf16.msra.mxu0 %v2835
    %2848 = vmatpush.bf16.msra.mxu0 %v2834
    %2849 = vmatmul.bf16.gmra.mxu0 %v2839
    %v2850 = vpop.f32.mrf.mxu0
    %v2851 = vadd.f32 0.0, %v2850
    %v2852 = vpop.f32.mrf.mxu0
    %v2853 = vadd.f32 0.0, %v2852
    %2854 = vdwg.mxu0
    %v2855 = vadd.f32 %v2605, %v2851
    %v2856 = vadd.f32 %v2606, %v2853
    %v2857 = vld [vmem:[%s13] sm:$0x1]
    %v2859 = vperm.slane %v2857, 0
    %v2861 = vadd.f32 %v2855, %v2859
    %v2862 = vadd.f32 %v2856, %v2859
    %v2863 = vadd.f32 %v1174, %v2861
    %v2864 = vadd.f32 %v1175, %v2862
    %v2865 = vld [vmem:[%s14] sm:$0x1]
    %v2866 = vld [vmem:[%s15] sm:$0x1]
    %2867 = vadd.xlane.f32.xlu0 %v2863
    %v2868 = vpop.xlane.xlu0 %2867
    %2869 = vadd.xlane.f32.xlu0 %v2864
    %v2870 = vpop.xlane.xlu0 %2869
    %v2871 = vmul.f32 %v2868, %v1088
    %v2872 = vmul.f32 %v2870, %v1088
    %v2873 = vsub.f32 %v2863, %v2871
    %v2874 = vsub.f32 %v2864, %v2872
    %v2875 = vmul.f32 %v2873, %v2873
    %v2876 = vmul.f32 %v2874, %v2874
    %2877 = vadd.xlane.f32.xlu0 %v2875
    %v2878 = vpop.xlane.xlu0 %2877
    %2879 = vadd.xlane.f32.xlu0 %v2876
    %v2880 = vpop.xlane.xlu0 %2879
    %v2881 = vmul.f32 %v2878, %v1105
    %v2882 = vmul.f32 %v2880, %v1105
    %v2884 = vperm.slane %v2865, 0
    %v2886 = vmul.f32 %v2884, %v2873
    %v2887 = vmul.f32 %v2884, %v2874
    %v2888 = vrsqrt.pop %v2881
    %v2889 = vmul.f32 %v2888, %v2881
    %v2890 = vmul.f32 %v2889, %v2888
    %v2891 = vmul.f32 0.5, %v2890
    %v2892 = vsub.f32 1.5, %v2891
    %v2893 = vmul.f32 %v2888, %v2892
    %v2894 = vmul.f32 %v2881, %v2893
    %vm2895 = vcmp.eq.f32.partialorder %v2881, inf
    %v2896 = vsel %vm2895, %v2881, %v2894
    %vm2897 = vcmp.eq.f32.partialorder %v2881, 0.0
    %v2898 = vand.u32 %v2881, 2147483648
    %v2899 = vsel %vm2897, %v2898, %v2896
    %v2900 = vrsqrt.pop %v2882
    %v2901 = vmul.f32 %v2900, %v2882
    %v2902 = vmul.f32 %v2901, %v2900
    %v2903 = vmul.f32 0.5, %v2902
    %v2904 = vsub.f32 1.5, %v2903
    %v2905 = vmul.f32 %v2900, %v2904
    %v2906 = vmul.f32 %v2882, %v2905
    %vm2907 = vcmp.eq.f32.partialorder %v2882, inf
    %v2908 = vsel %vm2907, %v2882, %v2906
    %vm2909 = vcmp.eq.f32.partialorder %v2882, 0.0
    %v2910 = vand.u32 %v2882, 2147483648
    %v2911 = vsel %vm2909, %v2910, %v2908
    %v2912 = vadd.f32 %v2899, 1e-06
    %v2913 = vadd.f32 %v2911, 1e-06
    %v2914 = vrcp.pop %v2912
    %v2915 = vmul.f32 %v2912, %v2914
    %v2916 = vsub.f32 1.0, %v2915
    %v2917 = vmul.f32 %v2914, %v2916
    %v2918 = vadd.f32 %v2914, %v2917
    %vm2919 = vweird.f32 %v2912
    %vm2920 = vweird.f32 %v2914
    %vm2921 = vmor %vm2919, %vm2920
    %v2922 = vsel %vm2921, %v2914, %v2918
    %v2923 = vand.u32 2147483647, %v2912
    %vm2924 = vcmp.eq.f32.partialorder %v2923, 8.507059e+37
    %v2925 = vand.u32 %v2912, 2147483648
    %v2926 = vor.u32 1.1754944e-38, %v2925
    %v2927 = vsel %vm2924, %v2926, %v2922
    %v2928 = vmul.f32 1.0, %v2927
    %v2929 = vrcp.pop %v2913
    %v2930 = vmul.f32 %v2913, %v2929
    %v2931 = vsub.f32 1.0, %v2930
    %v2932 = vmul.f32 %v2929, %v2931
    %v2933 = vadd.f32 %v2929, %v2932
    %vm2934 = vweird.f32 %v2913
    %vm2935 = vweird.f32 %v2929
    %vm2936 = vmor %vm2934, %vm2935
    %v2937 = vsel %vm2936, %v2929, %v2933
    %v2938 = vand.u32 2147483647, %v2913
    %vm2939 = vcmp.eq.f32.partialorder %v2938, 8.507059e+37
    %v2940 = vand.u32 %v2913, 2147483648
    %v2941 = vor.u32 1.1754944e-38, %v2940
    %v2942 = vsel %vm2939, %v2941, %v2937
    %v2943 = vmul.f32 1.0, %v2942
    %v2944 = vmul.f32 %v2886, %v2928
    %v2945 = vmul.f32 %v2887, %v2943
    %v2947 = vperm.slane %v2866, 0
    %v2949 = vadd.f32 %v2944, %v2947
    %v2950 = vadd.f32 %v2945, %v2947
    %v2951 = vpack.c.bf16 %v2950, %v2949
    %v2952 = vld [vmem:[#allocation17] sm:$0xff]
    %v2953 = vld [vmem:[#allocation17 + $0x8] sm:$0xff]
    %v2954 = vld [vmem:[#allocation17 + $0x10] sm:$0xff]
    %v2955 = vld [vmem:[#allocation17 + $0x18] sm:$0xff]
    %v2956 = vld [vmem:[#allocation17 + $0x20] sm:$0xff]
    %v2957 = vld [vmem:[#allocation17 + $0x28] sm:$0xff]
    %v2958 = vld [vmem:[#allocation17 + $0x30] sm:$0xff]
    %v2959 = vld [vmem:[#allocation17 + $0x38] sm:$0xff]
    %v2960 = vld [vmem:[#allocation17 + $0x40] sm:$0xff]
    %v2961 = vld [vmem:[#allocation17 + $0x48] sm:$0xff]
    %v2962 = vld [vmem:[#allocation17 + $0x50] sm:$0xff]
    %v2963 = vld [vmem:[#allocation17 + $0x58] sm:$0xff]
    %v2964 = vld [vmem:[#allocation17 + $0x60] sm:$0xff]
    %v2965 = vld [vmem:[#allocation17 + $0x68] sm:$0xff]
    %v2966 = vld [vmem:[#allocation17 + $0x70] sm:$0xff]
    %v2967 = vld [vmem:[#allocation17 + $0x78] sm:$0xff]
    %v2968 = vld [vmem:[%s17] sm:$0x3]
    %v2970 = vperm.slane %v2968, 0
    %v2971 = vperm.slane %v2968, 1
    %v2990 = vunpack.c.l.b16 %v2952
    %v2991 = vunpack.c.h.b16 %v2952
    %v2992 = vunpack.c.l.b16 %v2953
    %v2993 = vunpack.c.h.b16 %v2953
    %v2994 = vunpack.c.l.b16 %v2954
    %v2995 = vunpack.c.h.b16 %v2954
    %v2996 = vunpack.c.l.b16 %v2955
    %v2997 = vunpack.c.h.b16 %v2955
    %v2998 = vunpack.c.l.b16 %v2956
    %v2999 = vunpack.c.h.b16 %v2956
    %v3000 = vunpack.c.l.b16 %v2957
    %v3001 = vunpack.c.h.b16 %v2957
    %v3002 = vunpack.c.l.b16 %v2958
    %v3003 = vunpack.c.h.b16 %v2958
    %v3004 = vunpack.c.l.b16 %v2959
    %v3005 = vunpack.c.h.b16 %v2959
    %v3006 = vunpack.c.l.b16 %v2960
    %v3007 = vunpack.c.h.b16 %v2960
    %v3008 = vunpack.c.l.b16 %v2961
    %v3009 = vunpack.c.h.b16 %v2961
    %v3010 = vunpack.c.l.b16 %v2962
    %v3011 = vunpack.c.h.b16 %v2962
    %v3012 = vunpack.c.l.b16 %v2963
    %v3013 = vunpack.c.h.b16 %v2963
    %v3014 = vunpack.c.l.b16 %v2964
    %v3015 = vunpack.c.h.b16 %v2964
    %v3016 = vunpack.c.l.b16 %v2965
    %v3017 = vunpack.c.h.b16 %v2965
    %v3018 = vunpack.c.l.b16 %v2966
    %v3019 = vunpack.c.h.b16 %v2966
    %v3020 = vunpack.c.l.b16 %v2967
    %v3021 = vunpack.c.h.b16 %v2967
    %v3022 = vpack.c.b16 %v2992, %v2990
    %v3023 = vpack.c.b16 %v2993, %v2991
    %v3024 = vpack.c.b16 %v2996, %v2994
    %v3025 = vpack.c.b16 %v2997, %v2995
    %v3026 = vpack.c.b16 %v3000, %v2998
    %v3027 = vpack.c.b16 %v3001, %v2999
    %v3028 = vpack.c.b16 %v3004, %v3002
    %v3029 = vpack.c.b16 %v3005, %v3003
    %v3030 = vpack.c.b16 %v3008, %v3006
    %v3031 = vpack.c.b16 %v3009, %v3007
    %v3032 = vpack.c.b16 %v3012, %v3010
    %v3033 = vpack.c.b16 %v3013, %v3011
    %v3034 = vpack.c.b16 %v3016, %v3014
    %v3035 = vpack.c.b16 %v3017, %v3015
    %v3036 = vpack.c.b16 %v3020, %v3018
    %v3037 = vpack.c.b16 %v3021, %v3019
    %3054 = vmatpush.bf16.msra.mxu0 %v3036
    %3055 = vmatpush.bf16.msra.mxu0 %v3034
    %3056 = vmatpush.bf16.msra.mxu0 %v3032
    %3057 = vmatpush.bf16.msra.mxu0 %v3030
    %3058 = vmatpush.bf16.msra.mxu0 %v3028
    %3059 = vmatpush.bf16.msra.mxu0 %v3026
    %3060 = vmatpush.bf16.msra.mxu0 %v3024
    %3061 = vmatpush.bf16.msra.mxu0 %v3022
    %3062 = vmatmul.bf16.gmra.mxu0 %v2951
    %v3063 = vpop.f32.mrf.mxu0
    %v3064 = vadd.f32 %v2970, %v3063
    %v3065 = vpop.f32.mrf.mxu0
    %v3066 = vadd.f32 %v2970, %v3065
    %3067 = vdwg.mxu0
    %3068 = vmatpush.bf16.msra.mxu0 %v3037
    %3069 = vmatpush.bf16.msra.mxu0 %v3035
    %3070 = vmatpush.bf16.msra.mxu0 %v3033
    %3071 = vmatpush.bf16.msra.mxu0 %v3031
    %3072 = vmatpush.bf16.msra.mxu0 %v3029
    %3073 = vmatpush.bf16.msra.mxu0 %v3027
    %3074 = vmatpush.bf16.msra.mxu0 %v3025
    %3075 = vmatpush.bf16.msra.mxu0 %v3023
    %3076 = vmatmul.bf16.gmra.mxu0 %v2951
    %v3077 = vpop.f32.mrf.mxu0
    %v3078 = vadd.f32 %v2971, %v3077
    %v3079 = vpop.f32.mrf.mxu0
    %v3080 = vadd.f32 %v2971, %v3079
    %3081 = vdwg.mxu0
    %v3082 = vmax.f32 %v3064, 0.0
    %v3083 = vmax.f32 %v3078, 0.0
    %v3084 = vmax.f32 %v3066, 0.0
    %v3085 = vmax.f32 %v3080, 0.0
    %v3086 = vpack.c.bf16 %v3084, %v3082
    %v3087 = vpack.c.bf16 %v3085, %v3083
    %v3088 = vld [vmem:[#allocation19] sm:$0xf]
    %v3089 = vld [vmem:[#allocation19 + $0x4] sm:$0xf]
    %v3090 = vld [vmem:[#allocation19 + $0x8] sm:$0xf]
    %v3091 = vld [vmem:[#allocation19 + $0xc] sm:$0xf]
    %v3092 = vld [vmem:[#allocation19 + $0x10] sm:$0xf]
    %v3093 = vld [vmem:[#allocation19 + $0x14] sm:$0xf]
    %v3094 = vld [vmem:[#allocation19 + $0x18] sm:$0xf]
    %v3095 = vld [vmem:[#allocation19 + $0x1c] sm:$0xf]
    %v3096 = vld [vmem:[#allocation19 + $0x20] sm:$0xf]
    %v3097 = vld [vmem:[#allocation19 + $0x24] sm:$0xf]
    %v3098 = vld [vmem:[#allocation19 + $0x28] sm:$0xf]
    %v3099 = vld [vmem:[#allocation19 + $0x2c] sm:$0xf]
    %v3100 = vld [vmem:[#allocation19 + $0x30] sm:$0xf]
    %v3101 = vld [vmem:[#allocation19 + $0x34] sm:$0xf]
    %v3102 = vld [vmem:[#allocation19 + $0x38] sm:$0xf]
    %v3103 = vld [vmem:[#allocation19 + $0x3c] sm:$0xf]
    %v3104 = vld [vmem:[#allocation19 + $0x40] sm:$0xf]
    %v3105 = vld [vmem:[#allocation19 + $0x44] sm:$0xf]
    %v3106 = vld [vmem:[#allocation19 + $0x48] sm:$0xf]
    %v3107 = vld [vmem:[#allocation19 + $0x4c] sm:$0xf]
    %v3108 = vld [vmem:[#allocation19 + $0x50] sm:$0xf]
    %v3109 = vld [vmem:[#allocation19 + $0x54] sm:$0xf]
    %v3110 = vld [vmem:[#allocation19 + $0x58] sm:$0xf]
    %v3111 = vld [vmem:[#allocation19 + $0x5c] sm:$0xf]
    %v3112 = vld [vmem:[#allocation19 + $0x60] sm:$0xf]
    %v3113 = vld [vmem:[#allocation19 + $0x64] sm:$0xf]
    %v3114 = vld [vmem:[#allocation19 + $0x68] sm:$0xf]
    %v3115 = vld [vmem:[#allocation19 + $0x6c] sm:$0xf]
    %v3116 = vld [vmem:[#allocation19 + $0x70] sm:$0xf]
    %v3117 = vld [vmem:[#allocation19 + $0x74] sm:$0xf]
    %v3118 = vld [vmem:[#allocation19 + $0x78] sm:$0xf]
    %v3119 = vld [vmem:[#allocation19 + $0x7c] sm:$0xf]
    %v3120 = vld [vmem:[%s19] sm:$0x1]
    %v3122 = vperm.slane %v3120, 0
    %v3156 = vunpack.c.l.b16 %v3088
    %v3157 = vunpack.c.l.b16 %v3089
    %v3158 = vunpack.c.l.b16 %v3090
    %v3159 = vunpack.c.l.b16 %v3091
    %v3160 = vunpack.c.l.b16 %v3092
    %v3161 = vunpack.c.l.b16 %v3093
    %v3162 = vunpack.c.l.b16 %v3094
    %v3163 = vunpack.c.l.b16 %v3095
    %v3164 = vunpack.c.l.b16 %v3096
    %v3165 = vunpack.c.l.b16 %v3097
    %v3166 = vunpack.c.l.b16 %v3098
    %v3167 = vunpack.c.l.b16 %v3099
    %v3168 = vunpack.c.l.b16 %v3100
    %v3169 = vunpack.c.l.b16 %v3101
    %v3170 = vunpack.c.l.b16 %v3102
    %v3171 = vunpack.c.l.b16 %v3103
    %v3172 = vunpack.c.l.b16 %v3104
    %v3173 = vunpack.c.l.b16 %v3105
    %v3174 = vunpack.c.l.b16 %v3106
    %v3175 = vunpack.c.l.b16 %v3107
    %v3176 = vunpack.c.l.b16 %v3108
    %v3177 = vunpack.c.l.b16 %v3109
    %v3178 = vunpack.c.l.b16 %v3110
    %v3179 = vunpack.c.l.b16 %v3111
    %v3180 = vunpack.c.l.b16 %v3112
    %v3181 = vunpack.c.l.b16 %v3113
    %v3182 = vunpack.c.l.b16 %v3114
    %v3183 = vunpack.c.l.b16 %v3115
    %v3184 = vunpack.c.l.b16 %v3116
    %v3185 = vunpack.c.l.b16 %v3117
    %v3186 = vunpack.c.l.b16 %v3118
    %v3187 = vunpack.c.l.b16 %v3119
    %v3188 = vpack.c.b16 %v3157, %v3156
    %v3189 = vpack.c.b16 %v3159, %v3158
    %v3190 = vpack.c.b16 %v3161, %v3160
    %v3191 = vpack.c.b16 %v3163, %v3162
    %v3192 = vpack.c.b16 %v3165, %v3164
    %v3193 = vpack.c.b16 %v3167, %v3166
    %v3194 = vpack.c.b16 %v3169, %v3168
    %v3195 = vpack.c.b16 %v3171, %v3170
    %v3196 = vpack.c.b16 %v3173, %v3172
    %v3197 = vpack.c.b16 %v3175, %v3174
    %v3198 = vpack.c.b16 %v3177, %v3176
    %v3199 = vpack.c.b16 %v3179, %v3178
    %v3200 = vpack.c.b16 %v3181, %v3180
    %v3201 = vpack.c.b16 %v3183, %v3182
    %v3202 = vpack.c.b16 %v3185, %v3184
    %v3203 = vpack.c.b16 %v3187, %v3186
    %3220 = vmatpush.bf16.msra.mxu0 %v3195
    %3221 = vmatpush.bf16.msra.mxu0 %v3194
    %3222 = vmatpush.bf16.msra.mxu0 %v3193
    %3223 = vmatpush.bf16.msra.mxu0 %v3192
    %3224 = vmatpush.bf16.msra.mxu0 %v3191
    %3225 = vmatpush.bf16.msra.mxu0 %v3190
    %3226 = vmatpush.bf16.msra.mxu0 %v3189
    %3227 = vmatpush.bf16.msra.mxu0 %v3188
    %3228 = vmatmul.bf16.gmra.mxu0 %v3086
    %v3229 = vpop.f32.mrf.mxu0
    %v3230 = vadd.f32 %v3122, %v3229
    %v3231 = vpop.f32.mrf.mxu0
    %v3232 = vadd.f32 %v3122, %v3231
    %3233 = vdwg.mxu0
    %3234 = vmatpush.bf16.msra.mxu0 %v3203
    %3235 = vmatpush.bf16.msra.mxu0 %v3202
    %3236 = vmatpush.bf16.msra.mxu0 %v3201
    %3237 = vmatpush.bf16.msra.mxu0 %v3200
    %3238 = vmatpush.bf16.msra.mxu0 %v3199
    %3239 = vmatpush.bf16.msra.mxu0 %v3198
    %3240 = vmatpush.bf16.msra.mxu0 %v3197
    %3241 = vmatpush.bf16.msra.mxu0 %v3196
    %3242 = vmatmul.bf16.gmra.mxu0 %v3087
    %v3243 = vpop.f32.mrf.mxu0
    %v3244 = vadd.f32 %v3230, %v3243
    %v3245 = vpop.f32.mrf.mxu0
    %v3246 = vadd.f32 %v3232, %v3245
    %3247 = vdwg.mxu0
    %v3248 = vadd.f32 %v2949, %v3244
    %v3249 = vadd.f32 %v2950, %v3246
    %v3250 = vld [vmem:[%s20] sm:$0x1]
    %v3251 = vld [vmem:[%s21] sm:$0x1]
    %3252 = vadd.xlane.f32.xlu0 %v3248
    %v3253 = vpop.xlane.xlu0 %3252
    %3254 = vadd.xlane.f32.xlu0 %v3249
    %v3255 = vpop.xlane.xlu0 %3254
    %v3256 = vmul.f32 %v3253, %v1088
    %v3257 = vmul.f32 %v3255, %v1088
    %v3258 = vsub.f32 %v3248, %v3256
    %v3259 = vsub.f32 %v3249, %v3257
    %v3260 = vmul.f32 %v3258, %v3258
    %v3261 = vmul.f32 %v3259, %v3259
    %3262 = vadd.xlane.f32.xlu0 %v3260
    %v3263 = vpop.xlane.xlu0 %3262
    %3264 = vadd.xlane.f32.xlu0 %v3261
    %v3265 = vpop.xlane.xlu0 %3264
    %v3266 = vmul.f32 %v3263, %v1105
    %v3267 = vmul.f32 %v3265, %v1105
    %v3269 = vperm.slane %v3250, 0
    %v3271 = vmul.f32 %v3269, %v3258
    %v3272 = vmul.f32 %v3269, %v3259
    %v3273 = vrsqrt.pop %v3266
    %v3274 = vmul.f32 %v3273, %v3266
    %v3275 = vmul.f32 %v3274, %v3273
    %v3276 = vmul.f32 0.5, %v3275
    %v3277 = vsub.f32 1.5, %v3276
    %v3278 = vmul.f32 %v3273, %v3277
    %v3279 = vmul.f32 %v3266, %v3278
    %vm3280 = vcmp.eq.f32.partialorder %v3266, inf
    %v3281 = vsel %vm3280, %v3266, %v3279
    %vm3282 = vcmp.eq.f32.partialorder %v3266, 0.0
    %v3283 = vand.u32 %v3266, 2147483648
    %v3284 = vsel %vm3282, %v3283, %v3281
    %v3285 = vrsqrt.pop %v3267
    %v3286 = vmul.f32 %v3285, %v3267
    %v3287 = vmul.f32 %v3286, %v3285
    %v3288 = vmul.f32 0.5, %v3287
    %v3289 = vsub.f32 1.5, %v3288
    %v3290 = vmul.f32 %v3285, %v3289
    %v3291 = vmul.f32 %v3267, %v3290
    %vm3292 = vcmp.eq.f32.partialorder %v3267, inf
    %v3293 = vsel %vm3292, %v3267, %v3291
    %vm3294 = vcmp.eq.f32.partialorder %v3267, 0.0
    %v3295 = vand.u32 %v3267, 2147483648
    %v3296 = vsel %vm3294, %v3295, %v3293
    %v3297 = vadd.f32 %v3284, 1e-06
    %v3298 = vadd.f32 %v3296, 1e-06
    %v3299 = vrcp.pop %v3297
    %v3300 = vmul.f32 %v3297, %v3299
    %v3301 = vsub.f32 1.0, %v3300
    %v3302 = vmul.f32 %v3299, %v3301
    %v3303 = vadd.f32 %v3299, %v3302
    %vm3304 = vweird.f32 %v3297
    %vm3305 = vweird.f32 %v3299
    %vm3306 = vmor %vm3304, %vm3305
    %v3307 = vsel %vm3306, %v3299, %v3303
    %v3308 = vand.u32 2147483647, %v3297
    %vm3309 = vcmp.eq.f32.partialorder %v3308, 8.507059e+37
    %v3310 = vand.u32 %v3297, 2147483648
    %v3311 = vor.u32 1.1754944e-38, %v3310
    %v3312 = vsel %vm3309, %v3311, %v3307
    %v3313 = vmul.f32 1.0, %v3312
    %v3314 = vrcp.pop %v3298
    %v3315 = vmul.f32 %v3298, %v3314
    %v3316 = vsub.f32 1.0, %v3315
    %v3317 = vmul.f32 %v3314, %v3316
    %v3318 = vadd.f32 %v3314, %v3317
    %vm3319 = vweird.f32 %v3298
    %vm3320 = vweird.f32 %v3314
    %vm3321 = vmor %vm3319, %vm3320
    %v3322 = vsel %vm3321, %v3314, %v3318
    %v3323 = vand.u32 2147483647, %v3298
    %vm3324 = vcmp.eq.f32.partialorder %v3323, 8.507059e+37
    %v3325 = vand.u32 %v3298, 2147483648
    %v3326 = vor.u32 1.1754944e-38, %v3325
    %v3327 = vsel %vm3324, %v3326, %v3322
    %v3328 = vmul.f32 1.0, %v3327
    %v3329 = vmul.f32 %v3271, %v3313
    %v3330 = vmul.f32 %v3272, %v3328
    %v3332 = vperm.slane %v3251, 0
    %v3334 = vadd.f32 %v3329, %v3332
    %v3335 = vadd.f32 %v3330, %v3332
    %3336 = vst [vmem:[#allocation20] sm:$0xff] %v3334
    %3337 = vst [vmem:[#allocation20 + $0x8] sm:$0xff] %v3335
    // Predicated region
    $region134: #{tpu_custom_call.1} parent=1 // pred_check
      _
    $region135: #{tpu_custom_call.1} parent=1 // pred_check_branch
      %3339 = sbr.rel (0) target = $region137
    $region136: #{tpu_custom_call.1} parent=1 // pred_region
      %3341 = vsyncadd [#allocation4], 0
      %s3342 = sshll.u32 [#allocation20], 4
      %s3343 = int_to_ptr.vmem [resolvable:$true] %s3342
      %s3344 = sshll.u32 %s22, 4
      %s3345 = int_to_ptr.hbm [resolvable:$true] %s3344
      %3350 = dma.vmem_to_hbm [thread:$0]  %s3343, 256, %s3345, [#allocation4], 128, 128, 8
    $region137: #{tpu_custom_call.1} parent=1 // pred_fallthru
      _
    // Predicated region
    $region138: #{tpu_custom_call.1} parent=1 // pred_check
      _
    $region139: #{tpu_custom_call.1} parent=1 // pred_check_branch
      %3352 = sbr.rel (0) target = $region141
    $region140: #{tpu_custom_call.1} parent=1 // pred_region
      %3354 = vsyncadd [#allocation22], 0
      %s3355 = sshll.u32 [#allocation21], 4
      %s3356 = int_to_ptr.vmem [resolvable:$true] %s3355
      %s3357 = sshll.u32 %s23, 4
      %s3358 = int_to_ptr.hbm [resolvable:$true] %s3357
      %3363 = dma.vmem_to_hbm [thread:$0]  %s3356, 1024, %s3358, [#allocation22], 128, 128, 8
    $region141: #{tpu_custom_call.1} parent=1 // pred_fallthru
      _
    // Predicated region
    $region142: #{tpu_custom_call.1} parent=1 // pred_check
      _
    $region143: #{tpu_custom_call.1} parent=1 // pred_check_branch
      %3365 = sbr.rel (0) target = $region145
    $region144: #{tpu_custom_call.1} parent=1 // pred_region
      %3367 = dma.done [#allocation4], 256
    $region145: #{tpu_custom_call.1} parent=1 // pred_fallthru
      _
    // Predicated region
    $region146: #{tpu_custom_call.1} parent=1 // pred_check
      _
    $region147: #{tpu_custom_call.1} parent=1 // pred_check_branch
      %3369 = sbr.rel (0) target = $region149
    $region148: #{tpu_custom_call.1} parent=1 // pred_region
      %3371 = dma.done [#allocation22], 1024
    $region149: #{tpu_custom_call.1} parent=1 // pred_fallthru
      _
    %3372 = vsyncpa [#allocation3], 1
    %3373 = vsyncpa [#allocation6], 1
    %3374 = vsyncpa [#allocation9], 1
    %3375 = vsyncpa [#allocation12], 1
    %3376 = vsyncpa [#allocation15], 1
    %3377 = vsyncpa [#allocation18], 1
    %3378 = vsyncpa [#allocation4], 1
    %3379 = vsyncpa [#allocation22], 1

</llo_original>
